<compile_context>
chip_gen: v6e
topology: v6e:2x2x1
jax: 0.10.0
libtpu: 0.0.40
codegen_flags: <defaults>
</compile_context>

<pallas_src>
import math
import functools

import jax
import jax.numpy as jnp
from jax.experimental import pallas as pl
from jax.experimental.pallas import tpu as pltpu

LN_EPS = 1e-6   # partial(nn.LayerNorm, eps=1e-06)
BN_EPS = 1e-5   # nn.BatchNorm2d default


# ----------------------------- Pallas kernels -------------------------------

def _ln_linear_kernel(x_ref, g_ref, b_ref, w_ref, bias_ref, o_ref):
    """o = LayerNorm(x) @ W + bias  (LN over last dim, eps=1e-6; W is bf16)."""
    x = x_ref[...].astype(jnp.float32)
    mu = jnp.mean(x, axis=-1, keepdims=True)
    var = jnp.mean((x - mu) ** 2, axis=-1, keepdims=True)
    xn = (x - mu) * jax.lax.rsqrt(var + LN_EPS) * g_ref[...] + b_ref[...]
    y = jnp.dot(xn.astype(jnp.bfloat16), w_ref[...],
                preferred_element_type=jnp.float32) + bias_ref[...]
    o_ref[...] = y.astype(o_ref.dtype)


def _proj_residual_kernel(res_ref, y_ref, w_ref, bias_ref, o_ref):
    """o = residual + y @ W + bias  (attention output projection + skip)."""
    y = jnp.dot(y_ref[...].astype(jnp.bfloat16), w_ref[...],
                preferred_element_type=jnp.float32) + bias_ref[...]
    o_ref[...] = (res_ref[...].astype(jnp.float32) + y).astype(o_ref.dtype)


def _mlp_residual_kernel(x_ref, g_ref, b_ref, w1_ref, b1_ref, w2_ref, b2_ref, o_ref):
    """o = x + fc2(GELU(fc1(LayerNorm(x))))  with exact (erf) GELU."""
    x = x_ref[...].astype(jnp.float32)
    mu = jnp.mean(x, axis=-1, keepdims=True)
    var = jnp.mean((x - mu) ** 2, axis=-1, keepdims=True)
    xn = (x - mu) * jax.lax.rsqrt(var + LN_EPS) * g_ref[...] + b_ref[...]
    h = jnp.dot(xn.astype(jnp.bfloat16), w1_ref[...],
                preferred_element_type=jnp.float32) + b1_ref[...]
    h = 0.5 * h * (1.0 + jax.lax.erf(h * 0.7071067811865476))   # nn.GELU (exact)
    y = jnp.dot(h.astype(jnp.bfloat16), w2_ref[...],
                preferred_element_type=jnp.float32) + b2_ref[...]
    o_ref[...] = (x + y).astype(o_ref.dtype)


def _attn_kernel(convm_ref, qq_ref, kv_ref, qg_ref, kg_ref, o_ref):
    """EuclRiemGrassAtt core for one (batch, query-tile) grid step.

    convm_ref: VMEM (H*TQ, 3H*TQ)  kron(W_eff, I_TQ); W_eff has BatchNorm scale and
               the [scale, riem_scale, grassman_scale] folded in.  The additive BN /
               conv-bias terms are constant along the softmax axis and cancel.
    qq_ref:    VMEM (1, TQ, 3C)    query rows of the qkv activation
    kv_ref:    VMEM (1, N, 3C)     full qkv activation (k and v slices are used)
    qg_ref:    VMEM (1, H, TQ, Eg) Grassmann points for the query tile
    kg_ref:    VMEM (1, H, N, Eg)  Grassmann points for all keys
    o_ref:     VMEM (1, TQ, C)     lane-dense output block (head-concatenated)
    """
    _, TQ, three_c = qq_ref.shape
    C = three_c // 3
    _, H, N, _ = kg_ref.shape
    E = C // H

    # ---- per-head score maps for this query tile: [euclid(H), riem(H), grass(H)]
    # (contraction width is only E / Eg; accepted -- the conv mix below is the main
    #  MXU consumer.  bf16 operands, f32 accumulation.)
    maps = []
    for h in range(H):
        qh = qq_ref[0, :, h * E:(h + 1) * E].astype(jnp.bfloat16)            # (TQ, E)
        kh = kv_ref[0, :, C + h * E:C + (h + 1) * E].astype(jnp.bfloat16)    # (N, E)
        maps.append(jnp.einsum('te,ne->tn', qh, kh,
                               preferred_element_type=jnp.float32))          # (TQ, N)
    for h in range(H):
        s = maps[h]
        # TODO(synk): cov_frobenius_norm source was not provided; implemented as the
        # Frobenius inner product of rank-1 token covariances, i.e. (q @ k^T)^2.
        maps.append(s * s)
    for h in range(H):
        qgh = qg_ref[0, h].astype(jnp.bfloat16)                              # (TQ, Eg)
        kgh = kg_ref[0, h].astype(jnp.bfloat16)                              # (N, Eg)
        g = jnp.einsum('te,ne->tn', qgh, kgh,
                       preferred_element_type=jnp.float32)
        maps.append(g * g)

    stacked = jnp.concatenate(maps, axis=0)                                  # (3H*TQ, N)

    # ---- 1x1 conv (+ folded BN scale) as a single MXU matmul
    mix = jnp.dot(convm_ref[...], stacked,
                  preferred_element_type=jnp.float32)                        # (H*TQ, N)

    # ---- softmax over keys (rows are (out_head, query) pairs)
    mmax = jnp.max(mix, axis=-1, keepdims=True)
    p = jnp.exp(mix - mmax)
    a = p * pl.reciprocal(jnp.sum(p, axis=-1, keepdims=True), approx=True)
    a16 = a.astype(jnp.bfloat16)

    # ---- attn @ v, written head-by-head into the lane-dense (TQ, C) output block
    for h in range(H):
        vh = kv_ref[0, :, 2 * C + h * E:2 * C + (h + 1) * E].astype(jnp.bfloat16)
        ah = a16[h * TQ:(h + 1) * TQ, :]                                     # (TQ, N)
        o_ref[0, :, h * E:(h + 1) * E] = jnp.dot(
            ah, vh, preferred_element_type=jnp.float32).astype(o_ref.dtype)


# ----------------------------- kernel wrappers -------------------------------

def _row_tile(m, target=256):
    t = math.gcd(m, target)
    return t if t >= 8 else m


def ln_linear(x2d, gamma, beta, w, bias):
    M, C = x2d.shape
    OUT = w.shape[1]
    tm = _row_tile(M)
    return pl.pallas_call(
        _ln_linear_kernel,
        out_shape=jax.ShapeDtypeStruct((M, OUT), jnp.float32),
        grid=(M // tm,),
        in_specs=[pl.BlockSpec((tm, C), lambda i: (i, 0)),
                  pl.BlockSpec((1, C), lambda i: (0, 0)),
                  pl.BlockSpec((1, C), lambda i: (0, 0)),
                  pl.BlockSpec((C, OUT), lambda i: (0, 0)),
                  pl.BlockSpec((1, OUT), lambda i: (0, 0))],
        out_specs=pl.BlockSpec((tm, OUT), lambda i: (i, 0)),
        compiler_params=pltpu.CompilerParams(dimension_semantics=("parallel",)),
    )(x2d, gamma, beta, w.astype(jnp.bfloat16), bias)


def proj_residual(res2d, y2d, w, bias):
    M, C = res2d.shape
    tm = _row_tile(M)
    return pl.pallas_call(
        _proj_residual_kernel,
        out_shape=jax.ShapeDtypeStruct((M, C), jnp.float32),
        grid=(M // tm,),
        in_specs=[pl.BlockSpec((tm, C), lambda i: (i, 0)),
                  pl.BlockSpec((tm, C), lambda i: (i, 0)),
                  pl.BlockSpec((C, C), lambda i: (0, 0)),
                  pl.BlockSpec((1, C), lambda i: (0, 0))],
        out_specs=pl.BlockSpec((tm, C), lambda i: (i, 0)),
        compiler_params=pltpu.CompilerParams(dimension_semantics=("parallel",)),
    )(res2d, y2d, w.astype(jnp.bfloat16), bias)


def mlp_residual(x2d, gamma, beta, w1, b1, w2, b2):
    M, C = x2d.shape
    HID = w1.shape[1]
    tm = _row_tile(M)
    return pl.pallas_call(
        _mlp_residual_kernel,
        out_shape=jax.ShapeDtypeStruct((M, C), jnp.float32),
        grid=(M // tm,),
        in_specs=[pl.BlockSpec((tm, C), lambda i: (i, 0)),
                  pl.BlockSpec((1, C), lambda i: (0, 0)),
                  pl.BlockSpec((1, C), lambda i: (0, 0)),
                  pl.BlockSpec((C, HID), lambda i: (0, 0)),
                  pl.BlockSpec((1, HID), lambda i: (0, 0)),
                  pl.BlockSpec((HID, C), lambda i: (0, 0)),
                  pl.BlockSpec((1, C), lambda i: (0, 0))],
        out_specs=pl.BlockSpec((tm, C), lambda i: (i, 0)),
        compiler_params=pltpu.CompilerParams(dimension_semantics=("parallel",)),
    )(x2d, gamma, beta, w1.astype(jnp.bfloat16), b1, w2.astype(jnp.bfloat16), b2)


def fold_conv_bn(conv_w, bn_gamma, bn_var, scales):
    """Fold BN(inference) scale and [scale, riem_scale, grassman_scale] into the
    1x1 conv weight.  All per-output-channel additive terms (conv bias, BN running
    mean, BN beta) are constant along the softmax axis and cancel, so they are
    dropped entirely."""
    H = conv_w.shape[0]
    g = bn_gamma * jax.lax.rsqrt(bn_var + BN_EPS)            # (H,)
    col_scale = jnp.repeat(scales, H)                         # (3H,) [eucl|riem|grass]
    return conv_w * g[:, None] * col_scale[None, :]           # (H, 3H)


def attn_core(conv_w_eff, qkv3, qg, kg, num_heads, q_tile=8):
    B, N, three_c = qkv3.shape
    C = three_c // 3
    H = num_heads
    Eg = qg.shape[-1]
    assert N % q_tile == 0, "token count must be a multiple of the query tile"
    nt = N // q_tile

    # kron(W_eff, I_TQ): puts the cross-channel 1x1-conv contraction on the MXU.
    m_kron = jnp.kron(conv_w_eff.astype(jnp.float32),
                      jnp.eye(q_tile, dtype=jnp.float32))     # (H*TQ, 3H*TQ)

    return pl.pallas_call(
        _attn_kernel,
        out_shape=jax.ShapeDtypeStruct((B, N, C), jnp.float32),
        grid=(B, nt),
        in_specs=[
            pl.BlockSpec((H * q_tile, 3 * H * q_tile), lambda b, t: (0, 0)),
            pl.BlockSpec((1, q_tile, three_c), lambda b, t: (b, t, 0)),   # q rows
            pl.BlockSpec((1, N, three_c), lambda b, t: (b, 0, 0)),        # full k/v
            pl.BlockSpec((1, H, q_tile, Eg), lambda b, t: (b, 0, t, 0)),  # qg tile
            pl.BlockSpec((1, H, N, Eg), lambda b, t: (b, 0, 0, 0)),       # kg full
        ],
        out_specs=pl.BlockSpec((1, q_tile, C), lambda b, t: (b, t, 0)),
        compiler_params=pltpu.CompilerParams(
            dimension_semantics=("parallel", "parallel"),
            vmem_limit_bytes=32 * 1024 * 1024),
    )(m_kron, qkv3, qkv3, qg, kg)


# ----------------------------- model forward ---------------------------------

def block_forward(x, p, num_heads, q_tile=8):
    B, N, C = x.shape
    H = num_heads
    E = C // H
    x2d = x.reshape(B * N, C)

    # norm1 + qkv  (dropouts are identity at inference)
    qkv2d = ln_linear(x2d, p['ln1_g'], p['ln1_b'], p['qkv_w'], p['qkv_b'])   # (B*N, 3C)
    qkv3 = qkv2d.reshape(B, N, 3 * C)

    # grassmanian_point := Q-factor of the reduced QR (orthonormal span representative).
    # TODO(synk): original grassmanian_point source not provided; QR has no Pallas
    # primitive, so this stays in plain JAX (the only per-head transposes left).
    q = qkv3[..., :C].reshape(B, N, H, E).transpose(0, 2, 1, 3)
    k = qkv3[..., C:2 * C].reshape(B, N, H, E).transpose(0, 2, 1, 3)
    qg = jnp.linalg.qr(q)[0]
    kg = jnp.linalg.qr(k)[0]

    conv_w_eff = fold_conv_bn(p['conv_w'], p['bn_gamma'], p['bn_var'], p['scales'])
    out = attn_core(conv_w_eff, qkv3, qg, kg, num_heads, q_tile)             # (B, N, C)

    # proj + residual, then norm2 + MLP + residual
    x2d = proj_residual(x2d, out.reshape(B * N, C), p['proj_w'], p['proj_b'])
    x2d = mlp_residual(x2d, p['ln2_g'], p['ln2_b'],
                       p['fc1_w'], p['fc1_b'], p['fc2_w'], p['fc2_b'])
    return x2d.reshape(B, N, C)


def transformer_forward(x_img, cls_tokens, block_params, num_heads):
    B, C, Hh, Ww = x_img.shape
    T = cls_tokens.shape[1]
    tokens = x_img.reshape(B, C, Hh * Ww).transpose(0, 2, 1)   # flatten(2).transpose(1,2)
    x = jnp.concatenate([cls_tokens, tokens], axis=1)          # (B, N, C)
    for p in block_params:
        x = block_forward(x, p, num_heads)
    cls_out = x[:, :T]
    x_out = x[:, T:].transpose(0, 2, 1).reshape(B, C, Hh, Ww)
    return x_out, cls_out                                      # pool is None


# ----------------------------- parameters ------------------------------------

def init_block_params(key, dim, heads, hidden):
    E = dim // heads
    ks = jax.random.split(key, 9)

    def w(k, shape, s=0.02):
        return (s * jax.random.normal(k, shape)).astype(jnp.float32)

    return dict(
        ln1_g=jnp.ones((1, dim), jnp.float32),
        ln1_b=jnp.zeros((1, dim), jnp.float32),
        qkv_w=w(ks[0], (dim, 3 * dim)),
        qkv_b=w(ks[1], (1, 3 * dim)),
        scales=jnp.full((3,), E ** -0.5, jnp.float32),   # scale, riem_scale, grassman_scale
        conv_w=w(ks[2], (heads, 3 * heads), s=0.2),
        # conv bias / BN beta / BN running-mean are kept for module fidelity but are
        # mathematically dropped: constant along the softmax axis -> cancel.
        conv_b=w(ks[3], (heads,), s=0.02),
        bn_gamma=jnp.ones((heads,), jnp.float32),
        bn_beta=jnp.zeros((heads,), jnp.float32),
        bn_mean=(0.05 * jax.random.normal(ks[4], (heads,))).astype(jnp.float32),
        bn_var=(1.0 + 0.1 * jax.random.uniform(ks[5], (heads,))).astype(jnp.float32),
        proj_w=w(ks[6], (dim, dim)),
        proj_b=jnp.zeros((1, dim), jnp.float32),
        ln2_g=jnp.ones((1, dim), jnp.float32),
        ln2_b=jnp.zeros((1, dim), jnp.float32),
        fc1_w=w(ks[7], (dim, hidden)),
        fc1_b=jnp.zeros((1, hidden), jnp.float32),
        fc2_w=w(ks[8], (hidden, dim)),
        fc2_b=jnp.zeros((1, dim), jnp.float32),
    )


# ----------------------------- main -------------------------------------------

if __name__ == "__main__":
    key = jax.random.PRNGKey(0)
    base_dim, heads, depth, mlp_ratio = 8, 4, 2, 2.0
    embed_dim = base_dim * heads                     # 32 (input channels must equal this)
    # N = Himg*Wimg + token_length = 16 + 8 = 24  (multiple of the query tile = 8)
    B, Himg, Wimg, token_length = 2, 4, 4, 8

    k_img, k_cls, k_par = jax.random.split(key, 3)
    x_img = jax.random.normal(k_img, (B, embed_dim, Himg, Wimg), jnp.float32)      # NCHW
    cls_tokens = jax.random.normal(k_cls, (B, token_length, embed_dim), jnp.float32)

    block_params = [init_block_params(k, embed_dim, heads, int(embed_dim * mlp_ratio))
                    for k in jax.random.split(k_par, depth)]

    fwd = jax.jit(functools.partial(transformer_forward, num_heads=heads))
    x_out, cls_out = fwd(x_img, cls_tokens, block_params)
    jax.block_until_ready((x_out, cls_out))

    assert x_out.shape == (B, embed_dim, Himg, Wimg)
    assert cls_out.shape == (B, token_length, embed_dim)
    assert jnp.all(jnp.isfinite(x_out)) and jnp.all(jnp.isfinite(cls_out))
    print("KERNEL_OK")
</pallas_src>

<mosaic_0001>
module attributes {stable_mosaic.version = 11 : i64} {
  func.func @_ln_linear_kernel(%arg0: i32, %arg1: memref<16x32xf32, #tpu.memory_space<vmem>>, %arg2: memref<1x32xf32, #tpu.memory_space<vmem>>, %arg3: memref<1x32xf32, #tpu.memory_space<vmem>>, %arg4: memref<32x96xbf16, #tpu.memory_space<vmem>>, %arg5: memref<1x96xf32, #tpu.memory_space<vmem>>, %arg6: memref<16x96xf32, #tpu.memory_space<vmem>>) attributes {dimension_semantics = [#tpu.dimension_semantics<parallel>], iteration_bounds = array<i64: 3>, scalar_prefetch = 0 : i64, scratch_operands = 0 : i64, tpu.core_type = #tpu.core_type<tc>, window_params = [{transform_indices = @transform_0, window_bounds = array<i64: 16, 32>}, {pipeline_mode = #tpu.pipeline_mode<synchronous>, transform_indices = @transform_1, window_bounds = array<i64: 1, 32>}, {pipeline_mode = #tpu.pipeline_mode<synchronous>, transform_indices = @transform_2, window_bounds = array<i64: 1, 32>}, {pipeline_mode = #tpu.pipeline_mode<synchronous>, transform_indices = @transform_3, window_bounds = array<i64: 32, 96>}, {pipeline_mode = #tpu.pipeline_mode<synchronous>, transform_indices = @transform_4, window_bounds = array<i64: 1, 96>}, {transform_indices = @transform_5, window_bounds = array<i64: 16, 96>}]} {
    %c0 = arith.constant 0 : index
    %c0_0 = arith.constant 0 : index
    %0 = vector.load %arg1[%c0, %c0_0] : memref<16x32xf32, #tpu.memory_space<vmem>>, vector<16x32xf32>
    %cst = arith.constant dense<0.000000e+00> : vector<16xf32>
    %1 = vector.multi_reduction <add>, %0, %cst [1] : vector<16x32xf32> to vector<16xf32>
    %2 = vector.shape_cast %1 : vector<16xf32> to vector<16x1xf32>
    %cst_1 = arith.constant 3.200000e+01 : f32
    %3 = vector.broadcast %cst_1 : f32 to vector<16x1xf32>
    %4 = arith.divf %2, %3 : vector<16x1xf32>
    %5 = vector.broadcast %4 : vector<16x1xf32> to vector<16x32xf32>
    %6 = arith.subf %0, %5 : vector<16x32xf32>
    %7 = arith.mulf %6, %6 : vector<16x32xf32>
    %cst_2 = arith.constant dense<0.000000e+00> : vector<16xf32>
    %8 = vector.multi_reduction <add>, %7, %cst_2 [1] : vector<16x32xf32> to vector<16xf32>
    %9 = vector.shape_cast %8 : vector<16xf32> to vector<16x1xf32>
    %cst_3 = arith.constant 3.200000e+01 : f32
    %10 = vector.broadcast %cst_3 : f32 to vector<16x1xf32>
    %11 = arith.divf %9, %10 : vector<16x1xf32>
    %12 = vector.broadcast %4 : vector<16x1xf32> to vector<16x32xf32>
    %13 = arith.subf %0, %12 : vector<16x32xf32>
    %cst_4 = arith.constant 9.99999997E-7 : f32
    %14 = vector.broadcast %cst_4 : f32 to vector<16x1xf32>
    %15 = arith.addf %11, %14 : vector<16x1xf32>
    %16 = math.rsqrt %15 : vector<16x1xf32>
    %17 = vector.broadcast %16 : vector<16x1xf32> to vector<16x32xf32>
    %18 = arith.mulf %13, %17 : vector<16x32xf32>
    %c0_5 = arith.constant 0 : index
    %c0_6 = arith.constant 0 : index
    %19 = vector.load %arg2[%c0_5, %c0_6] : memref<1x32xf32, #tpu.memory_space<vmem>>, vector<1x32xf32>
    %20 = vector.broadcast %19 : vector<1x32xf32> to vector<16x32xf32>
    %21 = arith.mulf %18, %20 : vector<16x32xf32>
    %c0_7 = arith.constant 0 : index
    %c0_8 = arith.constant 0 : index
    %22 = vector.load %arg3[%c0_7, %c0_8] : memref<1x32xf32, #tpu.memory_space<vmem>>, vector<1x32xf32>
    %23 = vector.broadcast %22 : vector<1x32xf32> to vector<16x32xf32>
    %24 = arith.addf %21, %23 : vector<16x32xf32>
    %25 = arith.truncf %24 : vector<16x32xf32> to vector<16x32xbf16>
    %c0_9 = arith.constant 0 : index
    %c0_10 = arith.constant 0 : index
    %26 = vector.load %arg4[%c0_9, %c0_10] : memref<32x96xbf16, #tpu.memory_space<vmem>>, vector<32x96xbf16>
    %cst_11 = arith.constant dense<0.000000e+00> : vector<16x96xf32>
    %27 = tpu.matmul %25, %26, %cst_11 {dimension_numbers = #tpu.dot_dimension_numbers<[1], [0], [0], [1], [0, 0, 1, 1], [], []>} : vector<16x32xbf16>, vector<32x96xbf16>, vector<16x96xf32> -> vector<16x96xf32>
    %c0_12 = arith.constant 0 : index
    %c0_13 = arith.constant 0 : index
    %28 = vector.load %arg5[%c0_12, %c0_13] : memref<1x96xf32, #tpu.memory_space<vmem>>, vector<1x96xf32>
    %29 = vector.broadcast %28 : vector<1x96xf32> to vector<16x96xf32>
    %30 = arith.addf %27, %29 : vector<16x96xf32>
    %c0_14 = arith.constant 0 : index
    %c0_15 = arith.constant 0 : index
    %31 = vector.load %arg6[%c0_14, %c0_15] : memref<16x96xf32, #tpu.memory_space<vmem>>, vector<16x96xf32>
    tpu.vector_store %arg6[%c0_14, %c0_15], %30 {strides = array<i32>} : memref<16x96xf32, #tpu.memory_space<vmem>>, vector<16x96xf32>,
    return
  }
  func.func @transform_0(%arg0: i32) -> (i32, i32) {
    %c0_i32 = arith.constant 0 : i32
    %c0_i32_0 = arith.constant 0 : i32
    return %arg0, %c0_i32 : i32, i32
  }
  func.func @transform_1(%arg0: i32) -> (i32, i32) {
    %c0_i32 = arith.constant 0 : i32
    %c0_i32_0 = arith.constant 0 : i32
    %c0_i32_1 = arith.constant 0 : i32
    return %c0_i32, %c0_i32_0 : i32, i32
  }
  func.func @transform_2(%arg0: i32) -> (i32, i32) {
    %c0_i32 = arith.constant 0 : i32
    %c0_i32_0 = arith.constant 0 : i32
    %c0_i32_1 = arith.constant 0 : i32
    return %c0_i32, %c0_i32_0 : i32, i32
  }
  func.func @transform_3(%arg0: i32) -> (i32, i32) {
    %c0_i32 = arith.constant 0 : i32
    %c0_i32_0 = arith.constant 0 : i32
    %c0_i32_1 = arith.constant 0 : i32
    return %c0_i32, %c0_i32_0 : i32, i32
  }
  func.func @transform_4(%arg0: i32) -> (i32, i32) {
    %c0_i32 = arith.constant 0 : i32
    %c0_i32_0 = arith.constant 0 : i32
    %c0_i32_1 = arith.constant 0 : i32
    return %c0_i32, %c0_i32_0 : i32, i32
  }
  func.func @transform_5(%arg0: i32) -> (i32, i32) {
    %c0_i32 = arith.constant 0 : i32
    %c0_i32_0 = arith.constant 0 : i32
    return %arg0, %c0_i32 : i32, i32
  }
}

module attributes {stable_mosaic.version = 11 : i64} {
  func.func @_attn_kernel(%arg0: i32, %arg1: i32, %arg2: memref<32x96xf32, #tpu.memory_space<vmem>>, %arg3: memref<1x8x96xf32, #tpu.memory_space<vmem>>, %arg4: memref<1x24x96xf32, #tpu.memory_space<vmem>>, %arg5: memref<1x4x8x8xf32, #tpu.memory_space<vmem>>, %arg6: memref<1x4x24x8xf32, #tpu.memory_space<vmem>>, %arg7: memref<1x8x32xf32, #tpu.memory_space<vmem>>) attributes {dimension_semantics = [#tpu.dimension_semantics<parallel>, #tpu.dimension_semantics<parallel>], iteration_bounds = array<i64: 2, 3>, scalar_prefetch = 0 : i64, scratch_operands = 0 : i64, tpu.core_type = #tpu.core_type<tc>, window_params = [{pipeline_mode = #tpu.pipeline_mode<synchronous>, transform_indices = @transform_0, window_bounds = array<i64: 32, 96>}, {transform_indices = @transform_1, window_bounds = array<i64: 1, 8, 96>}, {transform_indices = @transform_2, window_bounds = array<i64: 1, 24, 96>}, {transform_indices = @transform_3, window_bounds = array<i64: 1, 4, 8, 8>}, {transform_indices = @transform_4, window_bounds = array<i64: 1, 4, 24, 8>}, {transform_indices = @transform_5, window_bounds = array<i64: 1, 8, 32>}]} {
    %c0 = arith.constant 0 : index
    %c0_0 = arith.constant 0 : index
    %c0_1 = arith.constant 0 : index
    %0 = vector.load %arg3[%c0, %c0_0, %c0_1] : memref<1x8x96xf32, #tpu.memory_space<vmem>>, vector<1x8x8xf32>
    %1 = vector.shape_cast %0 : vector<1x8x8xf32> to vector<8x8xf32>
    %2 = arith.truncf %1 : vector<8x8xf32> to vector<8x8xbf16>
    %c0_2 = arith.constant 0 : index
    %c0_3 = arith.constant 0 : index
    %c32 = arith.constant 32 : index
    %3 = vector.load %arg4[%c0_2, %c0_3, %c32] : memref<1x24x96xf32, #tpu.memory_space<vmem>>, vector<1x24x8xf32>
    %4 = vector.shape_cast %3 : vector<1x24x8xf32> to vector<24x8xf32>
    %5 = arith.truncf %4 : vector<24x8xf32> to vector<24x8xbf16>
    "tpu.trace_start"() <{level = 10 : i32, message = "te,ne->tn"}> : () -> ()
    %cst = arith.constant dense<0.000000e+00> : vector<8x24xf32>
    %6 = tpu.matmul %2, %5, %cst {dimension_numbers = #tpu.dot_dimension_numbers<[1], [1], [0], [0], [0, 0, 1, 0], [], []>} : vector<8x8xbf16>, vector<24x8xbf16>, vector<8x24xf32> -> vector<8x24xf32>
    "tpu.trace_stop"() : () -> ()
    %c0_4 = arith.constant 0 : index
    %c0_5 = arith.constant 0 : index
    %c8 = arith.constant 8 : index
    %7 = vector.load %arg3[%c0_4, %c0_5, %c8] : memref<1x8x96xf32, #tpu.memory_space<vmem>>, vector<1x8x8xf32>
    %8 = vector.shape_cast %7 : vector<1x8x8xf32> to vector<8x8xf32>
    %9 = arith.truncf %8 : vector<8x8xf32> to vector<8x8xbf16>
    %c0_6 = arith.constant 0 : index
    %c0_7 = arith.constant 0 : index
    %c40 = arith.constant 40 : index
    %10 = vector.load %arg4[%c0_6, %c0_7, %c40] : memref<1x24x96xf32, #tpu.memory_space<vmem>>, vector<1x24x8xf32>
    %11 = vector.shape_cast %10 : vector<1x24x8xf32> to vector<24x8xf32>
    %12 = arith.truncf %11 : vector<24x8xf32> to vector<24x8xbf16>
    "tpu.trace_start"() <{level = 10 : i32, message = "te,ne->tn"}> : () -> ()
    %cst_8 = arith.constant dense<0.000000e+00> : vector<8x24xf32>
    %13 = tpu.matmul %9, %12, %cst_8 {dimension_numbers = #tpu.dot_dimension_numbers<[1], [1], [0], [0], [0, 0, 1, 0], [], []>} : vector<8x8xbf16>, vector<24x8xbf16>, vector<8x24xf32> -> vector<8x24xf32>
    "tpu.trace_stop"() : () -> ()
    %c0_9 = arith.constant 0 : index
    %c0_10 = arith.constant 0 : index
    %c16 = arith.constant 16 : index
    %14 = vector.load %arg3[%c0_9, %c0_10, %c16] : memref<1x8x96xf32, #tpu.memory_space<vmem>>, vector<1x8x8xf32>
    %15 = vector.shape_cast %14 : vector<1x8x8xf32> to vector<8x8xf32>
    %16 = arith.truncf %15 : vector<8x8xf32> to vector<8x8xbf16>
    %c0_11 = arith.constant 0 : index
    %c0_12 = arith.constant 0 : index
    %c48 = arith.constant 48 : index
    %17 = vector.load %arg4[%c0_11, %c0_12, %c48] : memref<1x24x96xf32, #tpu.memory_space<vmem>>, vector<1x24x8xf32>
    %18 = vector.shape_cast %17 : vector<1x24x8xf32> to vector<24x8xf32>
    %19 = arith.truncf %18 : vector<24x8xf32> to vector<24x8xbf16>
    "tpu.trace_start"() <{level = 10 : i32, message = "te,ne->tn"}> : () -> ()
    %cst_13 = arith.constant dense<0.000000e+00> : vector<8x24xf32>
    %20 = tpu.matmul %16, %19, %cst_13 {dimension_numbers = #tpu.dot_dimension_numbers<[1], [1], [0], [0], [0, 0, 1, 0], [], []>} : vector<8x8xbf16>, vector<24x8xbf16>, vector<8x24xf32> -> vector<8x24xf32>
    "tpu.trace_stop"() : () -> ()
    %c0_14 = arith.constant 0 : index
    %c0_15 = arith.constant 0 : index
    %c24 = arith.constant 24 : index
    %21 = vector.load %arg3[%c0_14, %c0_15, %c24] : memref<1x8x96xf32, #tpu.memory_space<vmem>>, vector<1x8x8xf32>
    %22 = vector.shape_cast %21 : vector<1x8x8xf32> to vector<8x8xf32>
    %23 = arith.truncf %22 : vector<8x8xf32> to vector<8x8xbf16>
    %c0_16 = arith.constant 0 : index
    %c0_17 = arith.constant 0 : index
    %c56 = arith.constant 56 : index
    %24 = vector.load %arg4[%c0_16, %c0_17, %c56] : memref<1x24x96xf32, #tpu.memory_space<vmem>>, vector<1x24x8xf32>
    %25 = vector.shape_cast %24 : vector<1x24x8xf32> to vector<24x8xf32>
    %26 = arith.truncf %25 : vector<24x8xf32> to vector<24x8xbf16>
    "tpu.trace_start"() <{level = 10 : i32, message = "te,ne->tn"}> : () -> ()
    %cst_18 = arith.constant dense<0.000000e+00> : vector<8x24xf32>
    %27 = tpu.matmul %23, %26, %cst_18 {dimension_numbers = #tpu.dot_dimension_numbers<[1], [1], [0], [0], [0, 0, 1, 0], [], []>} : vector<8x8xbf16>, vector<24x8xbf16>, vector<8x24xf32> -> vector<8x24xf32>
    "tpu.trace_stop"() : () -> ()
    %28 = arith.mulf %6, %6 : vector<8x24xf32>
    %29 = arith.mulf %13, %13 : vector<8x24xf32>
    %30 = arith.mulf %20, %20 : vector<8x24xf32>
    %31 = arith.mulf %27, %27 : vector<8x24xf32>
    %c0_19 = arith.constant 0 : index
    %c0_20 = arith.constant 0 : index
    %c0_21 = arith.constant 0 : index
    %c0_22 = arith.constant 0 : index
    %32 = vector.load %arg5[%c0_19, %c0_20, %c0_21, %c0_22] : memref<1x4x8x8xf32, #tpu.memory_space<vmem>>, vector<1x1x8x8xf32>
    %33 = vector.shape_cast %32 : vector<1x1x8x8xf32> to vector<8x8xf32>
    %34 = arith.truncf %33 : vector<8x8xf32> to vector<8x8xbf16>
    %c0_23 = arith.constant 0 : index
    %c0_24 = arith.constant 0 : index
    %c0_25 = arith.constant 0 : index
    %c0_26 = arith.constant 0 : index
    %35 = vector.load %arg6[%c0_23, %c0_24, %c0_25, %c0_26] : memref<1x4x24x8xf32, #tpu.memory_space<vmem>>, vector<1x1x24x8xf32>
    %36 = vector.shape_cast %35 : vector<1x1x24x8xf32> to vector<24x8xf32>
    %37 = arith.truncf %36 : vector<24x8xf32> to vector<24x8xbf16>
    "tpu.trace_start"() <{level = 10 : i32, message = "te,ne->tn"}> : () -> ()
    %cst_27 = arith.constant dense<0.000000e+00> : vector<8x24xf32>
    %38 = tpu.matmul %34, %37, %cst_27 {dimension_numbers = #tpu.dot_dimension_numbers<[1], [1], [0], [0], [0, 0, 1, 0], [], []>} : vector<8x8xbf16>, vector<24x8xbf16>, vector<8x24xf32> -> vector<8x24xf32>
    "tpu.trace_stop"() : () -> ()
    %39 = arith.mulf %38, %38 : vector<8x24xf32>
    %c0_28 = arith.constant 0 : index
    %c1 = arith.constant 1 : index
    %c0_29 = arith.constant 0 : index
    %c0_30 = arith.constant 0 : index
    %40 = vector.load %arg5[%c0_28, %c1, %c0_29, %c0_30] : memref<1x4x8x8xf32, #tpu.memory_space<vmem>>, vector<1x1x8x8xf32>
    %41 = vector.shape_cast %40 : vector<1x1x8x8xf32> to vector<8x8xf32>
    %42 = arith.truncf %41 : vector<8x8xf32> to vector<8x8xbf16>
    %c0_31 = arith.constant 0 : index
    %c1_32 = arith.constant 1 : index
    %c0_33 = arith.constant 0 : index
    %c0_34 = arith.constant 0 : index
    %43 = vector.load %arg6[%c0_31, %c1_32, %c0_33, %c0_34] : memref<1x4x24x8xf32, #tpu.memory_space<vmem>>, vector<1x1x24x8xf32>
    %44 = vector.shape_cast %43 : vector<1x1x24x8xf32> to vector<24x8xf32>
    %45 = arith.truncf %44 : vector<24x8xf32> to vector<24x8xbf16>
    "tpu.trace_start"() <{level = 10 : i32, message = "te,ne->tn"}> : () -> ()
    %cst_35 = arith.constant dense<0.000000e+00> : vector<8x24xf32>
    %46 = tpu.matmul %42, %45, %cst_35 {dimension_numbers = #tpu.dot_dimension_numbers<[1], [1], [0], [0], [0, 0, 1, 0], [], []>} : vector<8x8xbf16>, vector<24x8xbf16>, vector<8x24xf32> -> vector<8x24xf32>
    "tpu.trace_stop"() : () -> ()
    %47 = arith.mulf %46, %46 : vector<8x24xf32>
    %c0_36 = arith.constant 0 : index
    %c2 = arith.constant 2 : index
    %c0_37 = arith.constant 0 : index
    %c0_38 = arith.constant 0 : index
    %48 = vector.load %arg5[%c0_36, %c2, %c0_37, %c0_38] : memref<1x4x8x8xf32, #tpu.memory_space<vmem>>, vector<1x1x8x8xf32>
    %49 = vector.shape_cast %48 : vector<1x1x8x8xf32> to vector<8x8xf32>
    %50 = arith.truncf %49 : vector<8x8xf32> to vector<8x8xbf16>
    %c0_39 = arith.constant 0 : index
    %c2_40 = arith.constant 2 : index
    %c0_41 = arith.constant 0 : index
    %c0_42 = arith.constant 0 : index
    %51 = vector.load %arg6[%c0_39, %c2_40, %c0_41, %c0_42] : memref<1x4x24x8xf32, #tpu.memory_space<vmem>>, vector<1x1x24x8xf32>
    %52 = vector.shape_cast %51 : vector<1x1x24x8xf32> to vector<24x8xf32>
    %53 = arith.truncf %52 : vector<24x8xf32> to vector<24x8xbf16>
    "tpu.trace_start"() <{level = 10 : i32, message = "te,ne->tn"}> : () -> ()
    %cst_43 = arith.constant dense<0.000000e+00> : vector<8x24xf32>
    %54 = tpu.matmul %50, %53, %cst_43 {dimension_numbers = #tpu.dot_dimension_numbers<[1], [1], [0], [0], [0, 0, 1, 0], [], []>} : vector<8x8xbf16>, vector<24x8xbf16>, vector<8x24xf32> -> vector<8x24xf32>
    "tpu.trace_stop"() : () -> ()
    %55 = arith.mulf %54, %54 : vector<8x24xf32>
    %c0_44 = arith.constant 0 : index
    %c3 = arith.constant 3 : index
    %c0_45 = arith.constant 0 : index
    %c0_46 = arith.constant 0 : index
    %56 = vector.load %arg5[%c0_44, %c3, %c0_45, %c0_46] : memref<1x4x8x8xf32, #tpu.memory_space<vmem>>, vector<1x1x8x8xf32>
    %57 = vector.shape_cast %56 : vector<1x1x8x8xf32> to vector<8x8xf32>
    %58 = arith.truncf %57 : vector<8x8xf32> to vector<8x8xbf16>
    %c0_47 = arith.constant 0 : index
    %c3_48 = arith.constant 3 : index
    %c0_49 = arith.constant 0 : index
    %c0_50 = arith.constant 0 : index
    %59 = vector.load %arg6[%c0_47, %c3_48, %c0_49, %c0_50] : memref<1x4x24x8xf32, #tpu.memory_space<vmem>>, vector<1x1x24x8xf32>
    %60 = vector.shape_cast %59 : vector<1x1x24x8xf32> to vector<24x8xf32>
    %61 = arith.truncf %60 : vector<24x8xf32> to vector<24x8xbf16>
    "tpu.trace_start"() <{level = 10 : i32, message = "te,ne->tn"}> : () -> ()
    %cst_51 = arith.constant dense<0.000000e+00> : vector<8x24xf32>
    %62 = tpu.matmul %58, %61, %cst_51 {dimension_numbers = #tpu.dot_dimension_numbers<[1], [1], [0], [0], [0, 0, 1, 0], [], []>} : vector<8x8xbf16>, vector<24x8xbf16>, vector<8x24xf32> -> vector<8x24xf32>
    "tpu.trace_stop"() : () -> ()
    %63 = arith.mulf %62, %62 : vector<8x24xf32>
    %64 = tpu.concatenate %6, %13, %20, %27, %28, %29, %30, %31, %39, %47, %55, %63 in 0 : vector<8x24xf32>, vector<8x24xf32>, vector<8x24xf32>, vector<8x24xf32>, vector<8x24xf32>, vector<8x24xf32>, vector<8x24xf32>, vector<8x24xf32>, vector<8x24xf32>, vector<8x24xf32>, vector<8x24xf32>, vector<8x24xf32> -> vector<96x24xf32>
    %c0_52 = arith.constant 0 : index
    %c0_53 = arith.constant 0 : index
    %65 = vector.load %arg2[%c0_52, %c0_53] : memref<32x96xf32, #tpu.memory_space<vmem>>, vector<32x96xf32>
    %cst_54 = arith.constant dense<0.000000e+00> : vector<32x24xf32>
    %66 = tpu.matmul %65, %64, %cst_54 {dimension_numbers = #tpu.dot_dimension_numbers<[1], [0], [0], [1], [0, 0, 1, 1], [], []>} : vector<32x96xf32>, vector<96x24xf32>, vector<32x24xf32> -> vector<32x24xf32>
    %cst_55 = arith.constant dense<0xFF800000> : vector<32xf32>
    %67 = vector.multi_reduction <maximumf>, %66, %cst_55 [1] : vector<32x24xf32> to vector<32xf32>
    %68 = vector.shape_cast %67 : vector<32xf32> to vector<32x1xf32>
    %69 = vector.broadcast %68 : vector<32x1xf32> to vector<32x24xf32>
    %70 = arith.subf %66, %69 : vector<32x24xf32>
    %71 = math.exp %70 : vector<32x24xf32>
    %cst_56 = arith.constant dense<0.000000e+00> : vector<32xf32>
    %72 = vector.multi_reduction <add>, %71, %cst_56 [1] : vector<32x24xf32> to vector<32xf32>
    %73 = vector.shape_cast %72 : vector<32xf32> to vector<32x1xf32>
    %74 = tpu.reciprocal %73 {approx = true} : vector<32x1xf32> -> vector<32x1xf32>
    %75 = vector.broadcast %74 : vector<32x1xf32> to vector<32x24xf32>
    %76 = arith.mulf %71, %75 : vector<32x24xf32>
    %77 = arith.truncf %76 : vector<32x24xf32> to vector<32x24xbf16>
    %c0_57 = arith.constant 0 : index
    %c0_58 = arith.constant 0 : index
    %c64 = arith.constant 64 : index
    %78 = vector.load %arg4[%c0_57, %c0_58, %c64] : memref<1x24x96xf32, #tpu.memory_space<vmem>>, vector<1x24x8xf32>
    %79 = vector.shape_cast %78 : vector<1x24x8xf32> to vector<24x8xf32>
    %80 = arith.truncf %79 : vector<24x8xf32> to vector<24x8xbf16>
    %81 = vector.extract_strided_slice %77 {offsets = [0, 0], sizes = [8, 24], strides = [1, 1]} : vector<32x24xbf16> to vector<8x24xbf16>
    %cst_59 = arith.constant dense<0.000000e+00> : vector<8x8xf32>
    %82 = tpu.matmul %81, %80, %cst_59 {dimension_numbers = #tpu.dot_dimension_numbers<[1], [0], [0], [1], [0, 0, 1, 1], [], []>} : vector<8x24xbf16>, vector<24x8xbf16>, vector<8x8xf32> -> vector<8x8xf32>
    %c0_60 = arith.constant 0 : index
    %c0_61 = arith.constant 0 : index
    %c0_62 = arith.constant 0 : index
    %83 = vector.load %arg7[%c0_60, %c0_61, %c0_62] : memref<1x8x32xf32, #tpu.memory_space<vmem>>, vector<1x8x8xf32>
    %84 = vector.shape_cast %83 : vector<1x8x8xf32> to vector<8x8xf32>
    %85 = vector.shape_cast %82 : vector<8x8xf32> to vector<1x8x8xf32>
    tpu.vector_store %arg7[%c0_60, %c0_61, %c0_62], %85 {strides = array<i32>} : memref<1x8x32xf32, #tpu.memory_space<vmem>>, vector<1x8x8xf32>,
    %c0_63 = arith.constant 0 : index
    %c0_64 = arith.constant 0 : index
    %c72 = arith.constant 72 : index
    %86 = vector.load %arg4[%c0_63, %c0_64, %c72] : memref<1x24x96xf32, #tpu.memory_space<vmem>>, vector<1x24x8xf32>
    %87 = vector.shape_cast %86 : vector<1x24x8xf32> to vector<24x8xf32>
    %88 = arith.truncf %87 : vector<24x8xf32> to vector<24x8xbf16>
    %89 = vector.extract_strided_slice %77 {offsets = [8, 0], sizes = [8, 24], strides = [1, 1]} : vector<32x24xbf16> to vector<8x24xbf16>
    %cst_65 = arith.constant dense<0.000000e+00> : vector<8x8xf32>
    %90 = tpu.matmul %89, %88, %cst_65 {dimension_numbers = #tpu.dot_dimension_numbers<[1], [0], [0], [1], [0, 0, 1, 1], [], []>} : vector<8x24xbf16>, vector<24x8xbf16>, vector<8x8xf32> -> vector<8x8xf32>
    %c0_66 = arith.constant 0 : index
    %c0_67 = arith.constant 0 : index
    %c8_68 = arith.constant 8 : index
    %91 = vector.load %arg7[%c0_66, %c0_67, %c8_68] : memref<1x8x32xf32, #tpu.memory_space<vmem>>, vector<1x8x8xf32>
    %92 = vector.shape_cast %91 : vector<1x8x8xf32> to vector<8x8xf32>
    %93 = vector.shape_cast %90 : vector<8x8xf32> to vector<1x8x8xf32>
    tpu.vector_store %arg7[%c0_66, %c0_67, %c8_68], %93 {strides = array<i32>} : memref<1x8x32xf32, #tpu.memory_space<vmem>>, vector<1x8x8xf32>,
    %c0_69 = arith.constant 0 : index
    %c0_70 = arith.constant 0 : index
    %c80 = arith.constant 80 : index
    %94 = vector.load %arg4[%c0_69, %c0_70, %c80] : memref<1x24x96xf32, #tpu.memory_space<vmem>>, vector<1x24x8xf32>
    %95 = vector.shape_cast %94 : vector<1x24x8xf32> to vector<24x8xf32>
    %96 = arith.truncf %95 : vector<24x8xf32> to vector<24x8xbf16>
    %97 = vector.extract_strided_slice %77 {offsets = [16, 0], sizes = [8, 24], strides = [1, 1]} : vector<32x24xbf16> to vector<8x24xbf16>
    %cst_71 = arith.constant dense<0.000000e+00> : vector<8x8xf32>
    %98 = tpu.matmul %97, %96, %cst_71 {dimension_numbers = #tpu.dot_dimension_numbers<[1], [0], [0], [1], [0, 0, 1, 1], [], []>} : vector<8x24xbf16>, vector<24x8xbf16>, vector<8x8xf32> -> vector<8x8xf32>
    %c0_72 = arith.constant 0 : index
    %c0_73 = arith.constant 0 : index
    %c16_74 = arith.constant 16 : index
    %99 = vector.load %arg7[%c0_72, %c0_73, %c16_74] : memref<1x8x32xf32, #tpu.memory_space<vmem>>, vector<1x8x8xf32>
    %100 = vector.shape_cast %99 : vector<1x8x8xf32> to vector<8x8xf32>
    %101 = vector.shape_cast %98 : vector<8x8xf32> to vector<1x8x8xf32>
    tpu.vector_store %arg7[%c0_72, %c0_73, %c16_74], %101 {strides = array<i32>} : memref<1x8x32xf32, #tpu.memory_space<vmem>>, vector<1x8x8xf32>,
    %c0_75 = arith.constant 0 : index
    %c0_76 = arith.constant 0 : index
    %c88 = arith.constant 88 : index
    %102 = vector.load %arg4[%c0_75, %c0_76, %c88] : memref<1x24x96xf32, #tpu.memory_space<vmem>>, vector<1x24x8xf32>
    %103 = vector.shape_cast %102 : vector<1x24x8xf32> to vector<24x8xf32>
    %104 = arith.truncf %103 : vector<24x8xf32> to vector<24x8xbf16>
    %105 = vector.extract_strided_slice %77 {offsets = [24, 0], sizes = [8, 24], strides = [1, 1]} : vector<32x24xbf16> to vector<8x24xbf16>
    %cst_77 = arith.constant dense<0.000000e+00> : vector<8x8xf32>
    %106 = tpu.matmul %105, %104, %cst_77 {dimension_numbers = #tpu.dot_dimension_numbers<[1], [0], [0], [1], [0, 0, 1, 1], [], []>} : vector<8x24xbf16>, vector<24x8xbf16>, vector<8x8xf32> -> vector<8x8xf32>
    %c0_78 = arith.constant 0 : index
    %c0_79 = arith.constant 0 : index
    %c24_80 = arith.constant 24 : index
    %107 = vector.load %arg7[%c0_78, %c0_79, %c24_80] : memref<1x8x32xf32, #tpu.memory_space<vmem>>, vector<1x8x8xf32>
    %108 = vector.shape_cast %107 : vector<1x8x8xf32> to vector<8x8xf32>
    %109 = vector.shape_cast %106 : vector<8x8xf32> to vector<1x8x8xf32>
    tpu.vector_store %arg7[%c0_78, %c0_79, %c24_80], %109 {strides = array<i32>} : memref<1x8x32xf32, #tpu.memory_space<vmem>>, vector<1x8x8xf32>,
    return
  }
  func.func @transform_0(%arg0: i32, %arg1: i32) -> (i32, i32) {
    %c0_i32 = arith.constant 0 : i32
    %c0_i32_0 = arith.constant 0 : i32
    %c0_i32_1 = arith.constant 0 : i32
    return %c0_i32, %c0_i32_0 : i32, i32
  }
  func.func @transform_1(%arg0: i32, %arg1: i32) -> (i32, i32, i32) {
    %c0_i32 = arith.constant 0 : i32
    %c0_i32_0 = arith.constant 0 : i32
    return %arg0, %arg1, %c0_i32 : i32, i32, i32
  }
  func.func @transform_2(%arg0: i32, %arg1: i32) -> (i32, i32, i32) {
    %c0_i32 = arith.constant 0 : i32
    %c0_i32_0 = arith.constant 0 : i32
    %c0_i32_1 = arith.constant 0 : i32
    return %arg0, %c0_i32, %c0_i32_0 : i32, i32, i32
  }
  func.func @transform_3(%arg0: i32, %arg1: i32) -> (i32, i32, i32, i32) {
    %c0_i32 = arith.constant 0 : i32
    %c0_i32_0 = arith.constant 0 : i32
    %c0_i32_1 = arith.constant 0 : i32
    return %arg0, %c0_i32, %arg1, %c0_i32_0 : i32, i32, i32, i32
  }
  func.func @transform_4(%arg0: i32, %arg1: i32) -> (i32, i32, i32, i32) {
    %c0_i32 = arith.constant 0 : i32
    %c0_i32_0 = arith.constant 0 : i32
    %c0_i32_1 = arith.constant 0 : i32
    %c0_i32_2 = arith.constant 0 : i32
    return %arg0, %c0_i32, %c0_i32_0, %c0_i32_1 : i32, i32, i32, i32
  }
  func.func @transform_5(%arg0: i32, %arg1: i32) -> (i32, i32, i32) {
    %c0_i32 = arith.constant 0 : i32
    %c0_i32_0 = arith.constant 0 : i32
    return %arg0, %arg1, %c0_i32 : i32, i32, i32
  }
}

module attributes {stable_mosaic.version = 11 : i64} {
  func.func @_proj_residual_kernel(%arg0: i32, %arg1: memref<16x32xf32, #tpu.memory_space<vmem>>, %arg2: memref<16x32xf32, #tpu.memory_space<vmem>>, %arg3: memref<32x32xbf16, #tpu.memory_space<vmem>>, %arg4: memref<1x32xf32, #tpu.memory_space<vmem>>, %arg5: memref<16x32xf32, #tpu.memory_space<vmem>>) attributes {dimension_semantics = [#tpu.dimension_semantics<parallel>], iteration_bounds = array<i64: 3>, scalar_prefetch = 0 : i64, scratch_operands = 0 : i64, tpu.core_type = #tpu.core_type<tc>, window_params = [{transform_indices = @transform_0, window_bounds = array<i64: 16, 32>}, {transform_indices = @transform_1, window_bounds = array<i64: 16, 32>}, {pipeline_mode = #tpu.pipeline_mode<synchronous>, transform_indices = @transform_2, window_bounds = array<i64: 32, 32>}, {pipeline_mode = #tpu.pipeline_mode<synchronous>, transform_indices = @transform_3, window_bounds = array<i64: 1, 32>}, {transform_indices = @transform_4, window_bounds = array<i64: 16, 32>}]} {
    %c0 = arith.constant 0 : index
    %c0_0 = arith.constant 0 : index
    %0 = vector.load %arg2[%c0, %c0_0] : memref<16x32xf32, #tpu.memory_space<vmem>>, vector<16x32xf32>
    %1 = arith.truncf %0 : vector<16x32xf32> to vector<16x32xbf16>
    %c0_1 = arith.constant 0 : index
    %c0_2 = arith.constant 0 : index
    %2 = vector.load %arg3[%c0_1, %c0_2] : memref<32x32xbf16, #tpu.memory_space<vmem>>, vector<32x32xbf16>
    %cst = arith.constant dense<0.000000e+00> : vector<16x32xf32>
    %3 = tpu.matmul %1, %2, %cst {dimension_numbers = #tpu.dot_dimension_numbers<[1], [0], [0], [1], [0, 0, 1, 1], [], []>} : vector<16x32xbf16>, vector<32x32xbf16>, vector<16x32xf32> -> vector<16x32xf32>
    %c0_3 = arith.constant 0 : index
    %c0_4 = arith.constant 0 : index
    %4 = vector.load %arg4[%c0_3, %c0_4] : memref<1x32xf32, #tpu.memory_space<vmem>>, vector<1x32xf32>
    %5 = vector.broadcast %4 : vector<1x32xf32> to vector<16x32xf32>
    %6 = arith.addf %3, %5 : vector<16x32xf32>
    %c0_5 = arith.constant 0 : index
    %c0_6 = arith.constant 0 : index
    %7 = vector.load %arg1[%c0_5, %c0_6] : memref<16x32xf32, #tpu.memory_space<vmem>>, vector<16x32xf32>
    %8 = arith.addf %7, %6 : vector<16x32xf32>
    %c0_7 = arith.constant 0 : index
    %c0_8 = arith.constant 0 : index
    %9 = vector.load %arg5[%c0_7, %c0_8] : memref<16x32xf32, #tpu.memory_space<vmem>>, vector<16x32xf32>
    tpu.vector_store %arg5[%c0_7, %c0_8], %8 {strides = array<i32>} : memref<16x32xf32, #tpu.memory_space<vmem>>, vector<16x32xf32>,
    return
  }
  func.func @transform_0(%arg0: i32) -> (i32, i32) {
    %c0_i32 = arith.constant 0 : i32
    %c0_i32_0 = arith.constant 0 : i32
    return %arg0, %c0_i32 : i32, i32
  }
  func.func @transform_1(%arg0: i32) -> (i32, i32) {
    %c0_i32 = arith.constant 0 : i32
    %c0_i32_0 = arith.constant 0 : i32
    return %arg0, %c0_i32 : i32, i32
  }
  func.func @transform_2(%arg0: i32) -> (i32, i32) {
    %c0_i32 = arith.constant 0 : i32
    %c0_i32_0 = arith.constant 0 : i32
    %c0_i32_1 = arith.constant 0 : i32
    return %c0_i32, %c0_i32_0 : i32, i32
  }
  func.func @transform_3(%arg0: i32) -> (i32, i32) {
    %c0_i32 = arith.constant 0 : i32
    %c0_i32_0 = arith.constant 0 : i32
    %c0_i32_1 = arith.constant 0 : i32
    return %c0_i32, %c0_i32_0 : i32, i32
  }
  func.func @transform_4(%arg0: i32) -> (i32, i32) {
    %c0_i32 = arith.constant 0 : i32
    %c0_i32_0 = arith.constant 0 : i32
    return %arg0, %c0_i32 : i32, i32
  }
}

module attributes {stable_mosaic.version = 11 : i64} {
  func.func @_mlp_residual_kernel(%arg0: i32, %arg1: memref<16x32xf32, #tpu.memory_space<vmem>>, %arg2: memref<1x32xf32, #tpu.memory_space<vmem>>, %arg3: memref<1x32xf32, #tpu.memory_space<vmem>>, %arg4: memref<32x64xbf16, #tpu.memory_space<vmem>>, %arg5: memref<1x64xf32, #tpu.memory_space<vmem>>, %arg6: memref<64x32xbf16, #tpu.memory_space<vmem>>, %arg7: memref<1x32xf32, #tpu.memory_space<vmem>>, %arg8: memref<16x32xf32, #tpu.memory_space<vmem>>) attributes {dimension_semantics = [#tpu.dimension_semantics<parallel>], iteration_bounds = array<i64: 3>, scalar_prefetch = 0 : i64, scratch_operands = 0 : i64, tpu.core_type = #tpu.core_type<tc>, window_params = [{transform_indices = @transform_0, window_bounds = array<i64: 16, 32>}, {pipeline_mode = #tpu.pipeline_mode<synchronous>, transform_indices = @transform_1, window_bounds = array<i64: 1, 32>}, {pipeline_mode = #tpu.pipeline_mode<synchronous>, transform_indices = @transform_2, window_bounds = array<i64: 1, 32>}, {pipeline_mode = #tpu.pipeline_mode<synchronous>, transform_indices = @transform_3, window_bounds = array<i64: 32, 64>}, {pipeline_mode = #tpu.pipeline_mode<synchronous>, transform_indices = @transform_4, window_bounds = array<i64: 1, 64>}, {pipeline_mode = #tpu.pipeline_mode<synchronous>, transform_indices = @transform_5, window_bounds = array<i64: 64, 32>}, {pipeline_mode = #tpu.pipeline_mode<synchronous>, transform_indices = @transform_6, window_bounds = array<i64: 1, 32>}, {transform_indices = @transform_7, window_bounds = array<i64: 16, 32>}]} {
    %c0 = arith.constant 0 : index
    %c0_0 = arith.constant 0 : index
    %0 = vector.load %arg1[%c0, %c0_0] : memref<16x32xf32, #tpu.memory_space<vmem>>, vector<16x32xf32>
    %cst = arith.constant dense<0.000000e+00> : vector<16xf32>
    %1 = vector.multi_reduction <add>, %0, %cst [1] : vector<16x32xf32> to vector<16xf32>
    %2 = vector.shape_cast %1 : vector<16xf32> to vector<16x1xf32>
    %cst_1 = arith.constant 3.200000e+01 : f32
    %3 = vector.broadcast %cst_1 : f32 to vector<16x1xf32>
    %4 = arith.divf %2, %3 : vector<16x1xf32>
    %5 = vector.broadcast %4 : vector<16x1xf32> to vector<16x32xf32>
    %6 = arith.subf %0, %5 : vector<16x32xf32>
    %7 = arith.mulf %6, %6 : vector<16x32xf32>
    %cst_2 = arith.constant dense<0.000000e+00> : vector<16xf32>
    %8 = vector.multi_reduction <add>, %7, %cst_2 [1] : vector<16x32xf32> to vector<16xf32>
    %9 = vector.shape_cast %8 : vector<16xf32> to vector<16x1xf32>
    %cst_3 = arith.constant 3.200000e+01 : f32
    %10 = vector.broadcast %cst_3 : f32 to vector<16x1xf32>
    %11 = arith.divf %9, %10 : vector<16x1xf32>
    %12 = vector.broadcast %4 : vector<16x1xf32> to vector<16x32xf32>
    %13 = arith.subf %0, %12 : vector<16x32xf32>
    %cst_4 = arith.constant 9.99999997E-7 : f32
    %14 = vector.broadcast %cst_4 : f32 to vector<16x1xf32>
    %15 = arith.addf %11, %14 : vector<16x1xf32>
    %16 = math.rsqrt %15 : vector<16x1xf32>
    %17 = vector.broadcast %16 : vector<16x1xf32> to vector<16x32xf32>
    %18 = arith.mulf %13, %17 : vector<16x32xf32>
    %c0_5 = arith.constant 0 : index
    %c0_6 = arith.constant 0 : index
    %19 = vector.load %arg2[%c0_5, %c0_6] : memref<1x32xf32, #tpu.memory_space<vmem>>, vector<1x32xf32>
    %20 = vector.broadcast %19 : vector<1x32xf32> to vector<16x32xf32>
    %21 = arith.mulf %18, %20 : vector<16x32xf32>
    %c0_7 = arith.constant 0 : index
    %c0_8 = arith.constant 0 : index
    %22 = vector.load %arg3[%c0_7, %c0_8] : memref<1x32xf32, #tpu.memory_space<vmem>>, vector<1x32xf32>
    %23 = vector.broadcast %22 : vector<1x32xf32> to vector<16x32xf32>
    %24 = arith.addf %21, %23 : vector<16x32xf32>
    %25 = arith.truncf %24 : vector<16x32xf32> to vector<16x32xbf16>
    %c0_9 = arith.constant 0 : index
    %c0_10 = arith.constant 0 : index
    %26 = vector.load %arg4[%c0_9, %c0_10] : memref<32x64xbf16, #tpu.memory_space<vmem>>, vector<32x64xbf16>
    %cst_11 = arith.constant dense<0.000000e+00> : vector<16x64xf32>
    %27 = tpu.matmul %25, %26, %cst_11 {dimension_numbers = #tpu.dot_dimension_numbers<[1], [0], [0], [1], [0, 0, 1, 1], [], []>} : vector<16x32xbf16>, vector<32x64xbf16>, vector<16x64xf32> -> vector<16x64xf32>
    %c0_12 = arith.constant 0 : index
    %c0_13 = arith.constant 0 : index
    %28 = vector.load %arg5[%c0_12, %c0_13] : memref<1x64xf32, #tpu.memory_space<vmem>>, vector<1x64xf32>
    %29 = vector.broadcast %28 : vector<1x64xf32> to vector<16x64xf32>
    %30 = arith.addf %27, %29 : vector<16x64xf32>
    %cst_14 = arith.constant 5.000000e-01 : f32
    %31 = vector.broadcast %cst_14 : f32 to vector<16x64xf32>
    %32 = arith.mulf %31, %30 : vector<16x64xf32>
    %cst_15 = arith.constant 0.707106769 : f32
    %33 = vector.broadcast %cst_15 : f32 to vector<16x64xf32>
    %34 = arith.mulf %30, %33 : vector<16x64xf32>
    %35 = math.erf %34 : vector<16x64xf32>
    %cst_16 = arith.constant 1.000000e+00 : f32
    %36 = vector.broadcast %cst_16 : f32 to vector<16x64xf32>
    %37 = arith.addf %36, %35 : vector<16x64xf32>
    %38 = arith.mulf %32, %37 : vector<16x64xf32>
    %39 = arith.truncf %38 : vector<16x64xf32> to vector<16x64xbf16>
    %c0_17 = arith.constant 0 : index
    %c0_18 = arith.constant 0 : index
    %40 = vector.load %arg6[%c0_17, %c0_18] : memref<64x32xbf16, #tpu.memory_space<vmem>>, vector<64x32xbf16>
    %cst_19 = arith.constant dense<0.000000e+00> : vector<16x32xf32>
    %41 = tpu.matmul %39, %40, %cst_19 {dimension_numbers = #tpu.dot_dimension_numbers<[1], [0], [0], [1], [0, 0, 1, 1], [], []>} : vector<16x64xbf16>, vector<64x32xbf16>, vector<16x32xf32> -> vector<16x32xf32>
    %c0_20 = arith.constant 0 : index
    %c0_21 = arith.constant 0 : index
    %42 = vector.load %arg7[%c0_20, %c0_21] : memref<1x32xf32, #tpu.memory_space<vmem>>, vector<1x32xf32>
    %43 = vector.broadcast %42 : vector<1x32xf32> to vector<16x32xf32>
    %44 = arith.addf %41, %43 : vector<16x32xf32>
    %45 = arith.addf %0, %44 : vector<16x32xf32>
    %c0_22 = arith.constant 0 : index
    %c0_23 = arith.constant 0 : index
    %46 = vector.load %arg8[%c0_22, %c0_23] : memref<16x32xf32, #tpu.memory_space<vmem>>, vector<16x32xf32>
    tpu.vector_store %arg8[%c0_22, %c0_23], %45 {strides = array<i32>} : memref<16x32xf32, #tpu.memory_space<vmem>>, vector<16x32xf32>,
    return
  }
  func.func @transform_0(%arg0: i32) -> (i32, i32) {
    %c0_i32 = arith.constant 0 : i32
    %c0_i32_0 = arith.constant 0 : i32
    return %arg0, %c0_i32 : i32, i32
  }
  func.func @transform_1(%arg0: i32) -> (i32, i32) {
    %c0_i32 = arith.constant 0 : i32
    %c0_i32_0 = arith.constant 0 : i32
    %c0_i32_1 = arith.constant 0 : i32
    return %c0_i32, %c0_i32_0 : i32, i32
  }
  func.func @transform_2(%arg0: i32) -> (i32, i32) {
    %c0_i32 = arith.constant 0 : i32
    %c0_i32_0 = arith.constant 0 : i32
    %c0_i32_1 = arith.constant 0 : i32
    return %c0_i32, %c0_i32_0 : i32, i32
  }
  func.func @transform_3(%arg0: i32) -> (i32, i32) {
    %c0_i32 = arith.constant 0 : i32
    %c0_i32_0 = arith.constant 0 : i32
    %c0_i32_1 = arith.constant 0 : i32
    return %c0_i32, %c0_i32_0 : i32, i32
  }
  func.func @transform_4(%arg0: i32) -> (i32, i32) {
    %c0_i32 = arith.constant 0 : i32
    %c0_i32_0 = arith.constant 0 : i32
    %c0_i32_1 = arith.constant 0 : i32
    return %c0_i32, %c0_i32_0 : i32, i32
  }
  func.func @transform_5(%arg0: i32) -> (i32, i32) {
    %c0_i32 = arith.constant 0 : i32
    %c0_i32_0 = arith.constant 0 : i32
    %c0_i32_1 = arith.constant 0 : i32
    return %c0_i32, %c0_i32_0 : i32, i32
  }
  func.func @transform_6(%arg0: i32) -> (i32, i32) {
    %c0_i32 = arith.constant 0 : i32
    %c0_i32_0 = arith.constant 0 : i32
    %c0_i32_1 = arith.constant 0 : i32
    return %c0_i32, %c0_i32_0 : i32, i32
  }
  func.func @transform_7(%arg0: i32) -> (i32, i32) {
    %c0_i32 = arith.constant 0 : i32
    %c0_i32_0 = arith.constant 0 : i32
    return %arg0, %c0_i32 : i32, i32
  }
}

</mosaic_0001>

<llo_original>
// kernel: mul.47
$region0: #{mul.47}
  %s0 = inlined_call_operand.vmem [shape: f32[3,4], index: 0, kind: input, shape index: {}]
  %s1 = inlined_call_operand.vmem [shape: f32[12], index: 1, kind: output, shape index: {}]
  $region1: #{mul.47} parent=0
    #allocation0 [shape = 'u8[4096]{0}', space=vmem, size = 0x1000, scoped, tag = 'scoped mem for output reshape']
    #allocation1 [shape = 'u8[4096]{0}', space=vmem, size = 0x1000, scoped, tag = 'scoped mem for input reshape']
    %s3 = sshll.u32 1, 4
    %s4 = ssub.s32 %s3, 1
    %v5 = vld [vmem:[%s0] sm:%s4]
    %6 = vst [vmem:[#allocation1] sm:%s4] %v5
    %v7 = vld [vmem:[#allocation1] sm:$0x1]
    %vm8 = vcmask 31744
    %9 = vst.msk [vmem:[#allocation0] sm:$0x1] %vm8, %v7
    %s10 = scalar_lea.vmem [#allocation1], 2
    %v11 = vld [vmem:[%s10] sm:$0x1]
    %12 = vrot.lane.b32.xlu0 %v11, 8
    %v13 = vpop.permute.xlu0 %12
    %vm14 = vcmask 97344
    %15 = vst.msk [vmem:[#allocation0] sm:$0x1] %vm14, %v13
    %s16 = scalar_lea.vmem [#allocation1], 1
    %v17 = vld [vmem:[%s16] sm:$0x1]
    %18 = vrot.lane.b32.xlu0 %v17, 4
    %v19 = vpop.permute.xlu0 %18
    %vm20 = vcmask 64544
    %21 = vst.msk [vmem:[#allocation0] sm:$0x1] %vm20, %v19
    %s23 = sshll.u32 1, 1
    %s24 = ssub.s32 %s23, 1
    %v26 = vld [vmem:[#allocation0] sm:%s24]
    %s27 = sshll.u32 1, 1
    %s28 = ssub.s32 %s27, 1
    %29 = vst [vmem:[%s1] sm:%s28] %v26

// kernel: custom-call.12
$region0: #{custom-call.12}
  %s0 = inlined_call_operand.vmem [shape: f32[2,4,24,8], index: 0, kind: input, shape index: {}]
  %s1 = inlined_call_operand.vmem [shape: f32[2,4,24,8], index: 1, kind: output, shape index: {0}]
  %s2 = inlined_call_operand.vmem [shape: f32[2,4,8], index: 2, kind: output, shape index: {1}]
  %3 = xla_tuple %s1, %s2
  $region1: #{custom-call.12} parent=0
    #allocation0 [shape = 'u8[24576]{0}', space=vmem, size = 0x6000, scoped, tag = 'operand span for operand 0']
    #allocation1 [shape = 'u8[24576]{0}', space=vmem, size = 0x6000, scoped, tag = 'operand span for operand 1']
    #allocation2 [shape = 'u8[4096]{0}', space=vmem, size = 0x1000, scoped, tag = 'operand span for operand 2']
    #allocation3 [shape = 'u8[4096]{0}', space=vmem, size = 0x1000, scoped, tag = 'packed  for operand 2']
    loop: start=0, step=1, limit=10
    $region2: #{custom-call.12} parent=1 // loop_pre_header
      _
    $region3: #{custom-call.12} parent=1 // loop_header
      %s5 = sphi 0, %s9
      %p6 = scmp.ge.s32.totalorder %s5, 10
      %s12 = sphi 0, %s38
      %s13 = sphi 0, %s34
      %s14 = sphi 0, %s30
      %s15 = sphi 0, %s26
      %s16 = sphi 0, %s12
      %s17 = sphi 0, %s13
      %s18 = sphi 0, %s14
      %s19 = sphi 0, %s15
      %s20 = sphi 0, %s16
      %s21 = sphi 0, %s17
      %s22 = sphi 0, %s18
      %s23 = sphi 0, %s19
      %s55 = sphi 0, %s57
      %s58 = sphi 0, %s55
      %s59 = sphi 0, %s58
      %s75 = sphi 0, %s59
    $region4: #{custom-call.12} parent=1 // loop_header_branch
      %8 = sbr.rel (%p6) target = $region8
    $region5: #{custom-call.12} parent=1 // loop_body
      %s10 = ssub.s32 %s5, 1
      %s11 = ssub.s32 %s5, 2
      %s24 = sadd.s32 1, %s15
      %p25 = scmp.ge.s32.totalorder %s24, 1
      %s26 = scalar_select %p25, 0, %s24
      %s27 = sadd.s32 1, %s14
      %s28 = scalar_select %p25, %s27, %s14
      %p29 = scmp.ge.s32.totalorder %s28, 1
      %s30 = scalar_select %p29, 0, %s28
      %s31 = sadd.s32 1, %s13
      %s32 = scalar_select %p29, %s31, %s13
      %p33 = scmp.ge.s32.totalorder %s32, 4
      %s34 = scalar_select %p33, 0, %s32
      %s35 = sadd.s32 1, %s12
      %s36 = scalar_select %p33, %s35, %s12
      %p37 = scmp.ge.s32.totalorder %s36, 2
      %s38 = scalar_select %p37, 0, %s36
      %p39 = scmp.lt.s32.totalorder %s13, 0
      %s40 = ssub.s32 0, %s13
      %s41 = scalar_select %p39, %s40, %s13
      %s42 = sshrl.u32 %s41, 3
      %s43 = ssub.s32 0, %s42
      %s44 = scalar_select %p39, %s43, %s42
      %p45 = scmp.lt.s32.totalorder %s34, 0
      %s46 = ssub.s32 0, %s34
      %s47 = scalar_select %p45, %s46, %s34
      %s48 = sshrl.u32 %s47, 3
      %s49 = ssub.s32 0, %s48
      %s50 = scalar_select %p45, %s49, %s48
      %s51 = ssub.s32 %s12, %s38
      %s52 = ssub.s32 %s44, %s50
      %s53 = sor.u32 %s51, %s52
      %p54 = scmp.eq.s32.totalorder %s53, 0
      %s56 = sadd.s32 %s55, 1
      %s57 = scalar_select %p54, %s55, %s56
      %p60 = pneg %p54
      %p61 = scmp.eq.s32.totalorder %s5, 7
      %p62 = por %p60, %p61
      %p63 = scmp.ne.s32.totalorder %s55, %s58
      %p64 = scmp.eq.s32.totalorder %s5, 0
      %p65 = por %p63, %p64
      %p66 = scmp.ne.s32.totalorder %s55, %s58
      %p67 = scmp.eq.s32.totalorder %s10, 7
      %p68 = por %p66, %p67
      %p69 = scmp.ne.s32.totalorder %s58, %s59
      %p70 = scmp.eq.s32.totalorder %s10, 0
      %p71 = por %p69, %p70
      %p72 = scmp.ne.s32.totalorder %s58, %s59
      %p73 = scmp.eq.s32.totalorder %s11, 7
      %p74 = por %p72, %p73
      %p76 = scmp.ne.s32.totalorder %s59, %s75
      %p77 = scmp.eq.s32.totalorder %s11, 0
      %p78 = por %p76, %p77
      %p79 = scmp.le.s32.totalorder 1, %s5
      %p80 = scmp.lt.s32.totalorder %s5, 9
      %p81 = pnand %p79, %p80
      %p82 = pneg %p81
      // Predicated region
      $region9: #{custom-call.12} parent=5 // pred_check
        _
      $region10: #{custom-call.12} parent=5 // pred_check_branch
        %84 = sbr.rel (%p81) target = $region12
      $region11: #{custom-call.12} parent=5 // pred_region
        %s85 = ssub.s32 %s5, 1
      $region12: #{custom-call.12} parent=5 // pred_fallthru
        _
      %p86 = scmp.lt.s32.totalorder %s5, 8
      // Predicated region
      $region13: #{custom-call.12} parent=5 // pred_check
        %p87 = pneg %p86
      $region14: #{custom-call.12} parent=5 // pred_check_branch
        %89 = sbr.rel (%p87) target = $region16
      $region15: #{custom-call.12} parent=5 // pred_region
        %s90 = sand.u32 %s5, 1
        %s91 = sand.u32 %s5, 1
        %s92 = smul.addr %s91, 24
        %s93 = scalar_lea.vmem [#allocation0], %s92
        %s94 = smul.u32 3, %s14
        %s95 = sadd.s32 %s15, %s94
        %s96 = smul.addr %s13, 3
        %s97 = sadd.s32 %s95, %s96
        %s98 = smul.addr %s12, 12
        %s99 = sadd.s32 %s97, %s98
        %s100 = smul.addr %s99, 8
        %s101 = scalar_lea.vmem %s0, %s100
        // Predicated region
        $region17: #{custom-call.12} parent=15 // pred_check
          _
        $region18: #{custom-call.12} parent=15 // pred_check_branch
          %103 = sbr.rel (0) target = $region20
        $region19: #{custom-call.12} parent=15 // pred_region
          // Predicated region
          $region21: #{custom-call.12} parent=19 // pred_check
            _
          $region22: #{custom-call.12} parent=19 // pred_check_branch
            %105 = sbr.rel (0) target = $region24
          $region23: #{custom-call.12} parent=19 // pred_region
            // Predicated region
            $region36: #{custom-call.12} parent=23 // pred_check
              _
            $region37: #{custom-call.12} parent=23 // pred_check_branch
              %125 = sbr.rel (0) target = $region39
            $region38: #{custom-call.12} parent=23 // pred_region
              loop: start=0, step=1, limit=1
              $region40: #{custom-call.12} parent=38 // loop_pre_header
                _
              $region41: #{custom-call.12} parent=38 // loop_header
                %s127 = sphi 0, %s131
                %p128 = scmp.ge.s32.totalorder %s127, 1
                %s132 = sphi %s101, %s101
                %s133 = sphi %s93, %s93
              $region42: #{custom-call.12} parent=38 // loop_header_branch
                %130 = sbr.rel (%p128) target = $region46
              $region43: #{custom-call.12} parent=38 // loop_body
                %v134 = vld [vmem:[%s132] sm:$0xff]
                %135 = vst [vmem:[%s133] sm:$0xff] %v134
                %v136 = vld [vmem:[%s132 + $0x8] sm:$0xff]
                %137 = vst [vmem:[%s133 + $0x8] sm:$0xff] %v136
                %v138 = vld [vmem:[%s132 + $0x10] sm:$0xff]
                %139 = vst [vmem:[%s133 + $0x10] sm:$0xff] %v138
              $region44: #{custom-call.12} parent=38 // loop_footer
                %s131 = sadd.s32 1, %s127
              $region45: #{custom-call.12} parent=38 // loop_footer_branch
                %126 = sbr.rel target = $region41
              $region46: #{custom-call.12} parent=38 // loop_exit
                _
            $region39: #{custom-call.12} parent=23 // pred_fallthru
              _
            // Predicated region
            $region47: #{custom-call.12} parent=23 // pred_check
              _
            $region48: #{custom-call.12} parent=23 // pred_check_branch
              %141 = sbr.rel target = $region50
            $region49: #{custom-call.12} parent=23 // pred_region
              _
            $region50: #{custom-call.12} parent=23 // pred_fallthru
              _
          $region24: #{custom-call.12} parent=19 // pred_fallthru
            _
          // Predicated region
          $region25: #{custom-call.12} parent=19 // pred_check
            _
          $region26: #{custom-call.12} parent=19 // pred_check_branch
            %107 = sbr.rel target = $region28
          $region27: #{custom-call.12} parent=19 // pred_region
            %s109 = ssub.s32 256, 1
            loop: start=0, step=1, limit=1
            $region29: #{custom-call.12} parent=27 // loop_pre_header
              _
            $region30: #{custom-call.12} parent=27 // loop_header
              %s111 = sphi 0, %s115
              %p112 = scmp.ge.s32.totalorder %s111, 1
              %s116 = sphi %s101, %s101
              %s117 = sphi %s93, %s93
            $region31: #{custom-call.12} parent=27 // loop_header_branch
              %114 = sbr.rel (%p112) target = $region35
            $region32: #{custom-call.12} parent=27 // loop_body
              %v118 = vld [vmem:[%s116] sm:%s109]
              %119 = vst [vmem:[%s117] sm:%s109] %v118
              %v120 = vld [vmem:[%s116 + $0x8] sm:%s109]
              %121 = vst [vmem:[%s117 + $0x8] sm:%s109] %v120
              %v122 = vld [vmem:[%s116 + $0x10] sm:%s109]
              %123 = vst [vmem:[%s117 + $0x10] sm:%s109] %v122
            $region33: #{custom-call.12} parent=27 // loop_footer
              %s115 = sadd.s32 1, %s111
            $region34: #{custom-call.12} parent=27 // loop_footer_branch
              %110 = sbr.rel target = $region30
            $region35: #{custom-call.12} parent=27 // loop_exit
              _
          $region28: #{custom-call.12} parent=19 // pred_fallthru
            _
        $region20: #{custom-call.12} parent=15 // pred_fallthru
          _
        %142 = vnop
      $region16: #{custom-call.12} parent=5 // pred_fallthru
        _
      %p143 = scmp.le.s32.totalorder 1, %s5
      %p144 = scmp.lt.s32.totalorder %s5, 9
      %p145 = pnand %p143, %p144
      %p146 = pneg %p145
      // Predicated region
      $region51: #{custom-call.12} parent=5 // pred_check
        _
      $region52: #{custom-call.12} parent=5 // pred_check_branch
        %148 = sbr.rel (%p145) target = $region54
      $region53: #{custom-call.12} parent=5 // pred_region
        #allocation4 [shape = 'f32[24,128]{1,0}', space=vmem, size = 0x3000, scoped, tag = 'scratch for Householder reflectors']
        %s149 = ssub.s32 %s5, 1
        %s150 = sand.u32 %s10, 1
        %s151 = sand.u32 %s10, 1
        %s152 = smul.addr %s151, 24
        %s153 = scalar_lea.vmem [#allocation0], %s152
        %s154 = sand.u32 %s10, 1
        %s155 = sand.u32 %s10, 1
        %s156 = smul.addr %s155, 24
        %s157 = scalar_lea.vmem [#allocation0], %s156
        %s158 = sand.u32 %s10, 1
        %s159 = sand.u32 %s10, 1
        %s160 = smul.addr %s159, 24
        %s161 = scalar_lea.vmem [#allocation1], %s160
        %p162 = pneg %p71
        %p163 = pneg %p68
        %s164 = sand.u32 %s58, 1
        %s165 = sand.u32 %s58, 1
        %s166 = smul.addr %s165, 4
        %s167 = scalar_lea.vmem [#allocation3], %s166
        %s168 = smul.u32 3, %s18
        %s169 = smul.u32 3, %s18
        %p170 = scmp.lt.s32.totalorder %s17, 0
        %s171 = ssub.s32 0, %s17
        %s172 = scalar_select %p170, %s171, %s17
        %s173 = sshrl.u32 %s172, 3
        %s174 = ssub.s32 0, %s173
        %s175 = scalar_select %p170, %s174, %s173
        %s176 = sand.u32 %s17, 7
        %s177 = scalar_lea.vmem [#allocation2], %s176
        %v178 = vld [vmem:[%s153] sm:$0xff]
        %179 = vst [vmem:[%s161] sm:$0xff] %v178
        %s180 = scalar_lea.vmem %s161, 8 [#allocation1]
        %s181 = scalar_lea.vmem %s153, 8 [#allocation0]
        %v182 = vld [vmem:[%s181] sm:$0xff]
        %183 = vst [vmem:[%s180] sm:$0xff] %v182
        %s184 = scalar_lea.vmem %s161, 16 [#allocation1]
        %s185 = scalar_lea.vmem %s153, 16 [#allocation0]
        %v186 = vld [vmem:[%s185] sm:$0xff]
        %187 = vst [vmem:[%s184] sm:$0xff] %v186
        %188 = vst [vmem:[%s177] sm:$0x1] 0.0
        loop: start=0, step=1, limit=8
        $region55: #{custom-call.12} parent=53 // loop_pre_header
          _
        $region56: #{custom-call.12} parent=53 // loop_header
          %s190 = sphi 0, %s194
          %p191 = scmp.ge.s32.totalorder %s190, 8
        $region57: #{custom-call.12} parent=53 // loop_header_branch
          %193 = sbr.rel (%p191) target = $region61
        $region58: #{custom-call.12} parent=53 // loop_body
          %v195 = vld [vmem:[%s161] sm:$0xff]
          %v196 = vlaneseq
          %v197 = vshrl.u32 %v196, 7
          %v199 = vstv %s190
          %vm200 = vcmp.gt.s32.totalorder %v197, %v199
          %v201 = vsel %vm200, %v195, 0.0
          %v202 = vmul.f32 %v201, %v201
          %s203 = scalar_lea.vmem %s161, 8 [#allocation1]
          %v204 = vld [vmem:[%s203] sm:$0xff]
          %v205 = vlaneseq
          %v206 = vshrl.u32 %v205, 7
          %v207 = vadd.s32 %v206, 8
          %v208 = vstv %s190
          %vm209 = vcmp.gt.s32.totalorder %v207, %v208
          %v210 = vsel %vm209, %v204, 0.0
          %v211 = vmul.f32 %v210, %v210
          %v212 = vadd.f32 %v202, %v211
          %s213 = scalar_lea.vmem %s161, 16 [#allocation1]
          %v214 = vld [vmem:[%s213] sm:$0xff]
          %v215 = vlaneseq
          %v216 = vshrl.u32 %v215, 7
          %v217 = vadd.s32 %v216, 16
          %v218 = vstv %s190
          %vm219 = vcmp.gt.s32.totalorder %v217, %v218
          %vm220 = vcmp.lt.s32.totalorder %v217, 24
          %vm221 = vmand %vm219, %vm220
          %v222 = vsel %vm221, %v214, 0.0
          %v223 = vmul.f32 %v222, %v222
          %v224 = vadd.f32 %v212, %v223
          %v225 = vrot.slane %v224, 4
          %v226 = vadd.f32 %v224, %v225
          %v227 = vrot.slane %v226, 2
          %v228 = vadd.f32 %v226, %v227
          %v229 = vrot.slane %v228, 1
          %v230 = vadd.f32 %v228, %v229
          %v231 = vrsqrt.pop %v230
          %v232 = vmul.f32 %v230, %v231
          %vm233 = vcmp.eq.f32.partialorder %v230, inf
          %v234 = vsel %vm233, %v230, %v232
          %vm235 = vcmp.eq.f32.partialorder %v230, 0.0
          %v236 = vand.u32 %v230, 2147483648
          %v237 = vsel %vm235, %v236, %v234
          %vm238 = vcmp.eq.f32.partialorder %v230, 0.0
          %s239 = sshrl.u32 %s190, 3
          %s240 = sand.u32 %s190, 7
          %s241 = smul.addr %s239, 8
          %s242 = sadd.s32 %s240, %s241
          %s243 = scalar_lea.vmem %s161, %s242 [#allocation1]
          %v244 = vld [vmem:[%s243] ss:$0 sm:$0xff]
          %v245 = vand.u32 2147483647, %v244
          %v246 = vmax.f32 %v245, 0.0
          %v247 = vand.u32 2147483647, %v237
          %v248 = vmax.f32 %v246, %v247
          %v249 = vrcp.pop %v248
          %v250 = vmul.f32 %v245, %v249
          %v251 = vmul.f32 %v250, %v250
          %v252 = vrcp.pop %v248
          %v253 = vmul.f32 0.0, %v252
          %v254 = vmul.f32 %v253, %v253
          %v255 = vadd.f32 %v251, %v254
          %v256 = vrcp.pop %v248
          %v257 = vmul.f32 %v247, %v256
          %v258 = vmul.f32 %v257, %v257
          %v259 = vadd.f32 %v255, %v258
          %vm260 = vcmp.eq.f32.partialorder %v248, 0.0
          %v261 = vrsqrt.pop %v259
          %v262 = vmul.f32 %v259, %v261
          %vm263 = vcmp.eq.f32.partialorder %v259, inf
          %v264 = vsel %vm263, %v259, %v262
          %vm265 = vcmp.eq.f32.partialorder %v259, 0.0
          %v266 = vand.u32 %v259, 2147483648
          %v267 = vsel %vm265, %v266, %v264
          %v268 = vmul.f32 %v248, %v267
          %v269 = vsel %vm260, 0.0, %v268
          %vm270 = vcmp.lt.f32.partialorder %v244, 0.0
          %v271 = vxor.u32 %v269, 2147483648
          %v272 = vsel %vm270, %v269, %v271
          %v273 = vsub.f32 %v272, %v244
          %v274 = vrcp.pop %v272
          %v275 = vmul.f32 %v273, %v274
          %v276 = vsel %vm238, %v244, %v272
          %v277 = vsel %vm238, 0.0, %v275
          %v278 = vsub.f32 %v244, %v276
          %s279 = smov %s161
          %v280 = vlaneseq
          %v281 = vshrl.u32 %v280, 7
          %v282 = vmov %v281
          %v283 = vld [vmem:[%s279] sm:$0xff]
          %v285 = vstv %s190
          %vm286 = vcmp.gt.s32.totalorder %v282, %v285
          %v287 = vsel %vm286, %v283, 0.0
          %v288 = vrcp.pop %v278
          %v289 = vmul.f32 %v287, %v288
          %v290 = vsel %vm238, 0.0, %v289
          %v291 = vstv %s190
          %v292 = vlaneseq
          %v293 = vand.u32 %v292, 127
          %vm294 = vcmp.eq.s32.totalorder %v293, %v291
          %v295 = vsel %vm294, %v290, 0.0
          %296 = vadd.xlane.f32.xlu0 %v295
          %v297 = vpop.xlane.xlu0 %296
          %298 = vst [vmem:[#allocation4] sm:$0xff] %v297
          %s299 = scalar_lea.vmem %s279, 8
          %v300 = vld [vmem:[%s299] sm:$0xff]
          %v301 = vadd.s32 %v282, 8
          %v302 = vstv %s190
          %vm303 = vcmp.gt.s32.totalorder %v301, %v302
          %v304 = vsel %vm303, %v300, 0.0
          %v305 = vrcp.pop %v278
          %v306 = vmul.f32 %v304, %v305
          %v307 = vsel %vm238, 0.0, %v306
          %v308 = vstv %s190
          %v309 = vlaneseq
          %v310 = vand.u32 %v309, 127
          %vm311 = vcmp.eq.s32.totalorder %v310, %v308
          %v312 = vsel %vm311, %v307, 0.0
          %313 = vadd.xlane.f32.xlu0 %v312
          %v314 = vpop.xlane.xlu0 %313
          %s315 = scalar_lea.vmem [#allocation4], 8
          %316 = vst [vmem:[%s315] sm:$0xff] %v314
          %s317 = scalar_lea.vmem %s279, 16
          %v318 = vld [vmem:[%s317] sm:$0xff]
          %v319 = vadd.s32 %v282, 16
          %v320 = vstv %s190
          %vm321 = vcmp.gt.s32.totalorder %v319, %v320
          %vm322 = vcmp.lt.s32.totalorder %v319, 24
          %vm323 = vmand %vm321, %vm322
          %v324 = vsel %vm323, %v318, 0.0
          %v325 = vrcp.pop %v278
          %v326 = vmul.f32 %v324, %v325
          %v327 = vsel %vm238, 0.0, %v326
          %v328 = vstv %s190
          %v329 = vlaneseq
          %v330 = vand.u32 %v329, 127
          %vm331 = vcmp.eq.s32.totalorder %v330, %v328
          %v332 = vsel %vm331, %v327, 0.0
          %333 = vadd.xlane.f32.xlu0 %v332
          %v334 = vpop.xlane.xlu0 %333
          %s335 = scalar_lea.vmem [#allocation4], 16
          %336 = vst [vmem:[%s335] sm:$0xff] %v334
          %s337 = scalar_lea.vmem [#allocation4], %s190
          %338 = vst [vmem:[%s337] sm:$0x1] 1.0
          %v339 = vstv %s190
          %v340 = vlaneseq
          %v341 = vand.u32 %v340, 127
          %vm342 = vcmp.eq.s32.totalorder %v341, %v339
          %v343 = vsel %vm342, %v277, 0.0
          %344 = vadd.xlane.f32.xlu0 %v343
          %v345 = vpop.xlane.xlu0 %344
          %v346 = vstv %s190
          %v347 = vlaneseq
          %v348 = vand.u32 %v347, 127
          %vm349 = vcmp.eq.s32.totalorder %v348, %v346
          %v350 = vld [vmem:[%s177] ss:$0 sm:$0xff]
          %v351 = vsel %vm349, %v345, %v350
          %352 = vst [vmem:[%s177] sm:$0x1] %v351
          %s353 = smov %s161
          %s354 = smov [#allocation4]
          %v355 = vlaneseq
          %v356 = vshrl.u32 %v355, 7
          %v357 = vmov %v356
          %v359 = vld [vmem:[%s354] sm:$0xff]
          %v360 = vld [vmem:[%s353] sm:$0xff]
          %v361 = vmul.f32 %v359, %v360
          %v362 = vadd.s32 %v357, 8
          %s363 = scalar_lea.vmem %s354, 8
          %v364 = vld [vmem:[%s363] sm:$0xff]
          %s365 = scalar_lea.vmem %s353, 8
          %v366 = vld [vmem:[%s365] sm:$0xff]
          %v367 = vmul.f32 %v364, %v366
          %v368 = vadd.f32 %v361, %v367
          %v369 = vadd.s32 %v357, 16
          %s370 = scalar_lea.vmem %s354, 16
          %v371 = vld [vmem:[%s370] sm:$0xff]
          %s372 = scalar_lea.vmem %s353, 16
          %v373 = vld [vmem:[%s372] sm:$0xff]
          %v374 = vmul.f32 %v371, %v373
          %vm375 = vcmp.lt.s32.totalorder %v369, 24
          %v376 = vsel %vm375, %v374, 0.0
          %v377 = vadd.f32 %v368, %v376
          %v378 = vrot.slane %v377, 4
          %v379 = vadd.f32 %v377, %v378
          %v380 = vrot.slane %v379, 2
          %v381 = vadd.f32 %v379, %v380
          %v382 = vrot.slane %v381, 1
          %v383 = vadd.f32 %v381, %v382
          %s384 = smov %s353
          %s385 = smov %s354
          %v386 = vlaneseq
          %v387 = vshrl.u32 %v386, 7
          %v388 = vmov %v387
          %v389 = vmul.f32 %v383, %v345
          %v391 = vlaneseq
          %v392 = vand.u32 %v391, 127
          %v393 = vld [vmem:[%s385] sm:$0xff]
          %v394 = vmul.f32 %v393, %v389
          %v395 = vld [vmem:[%s384] sm:$0xff]
          %v396 = vstv %s190
          %vm397 = vcmp.gt.s32.totalorder %v392, %v396
          %v398 = vsub.f32 %v395, %v394
          %v399 = vsel %vm397, %v398, %v395
          %v400 = vstv %s190
          %v401 = vlaneseq
          %v402 = vand.u32 %v401, 127
          %vm403 = vcmp.eq.s32.totalorder %v402, %v400
          %v404 = vstv %s190
          %vm405 = vcmp.ge.s32.totalorder %v388, %v404
          %vm406 = vmand %vm403, %vm405
          %v407 = vsel %vm406, %v393, %v399
          %408 = vst [vmem:[%s384] sm:$0xff] %v407
          %v409 = vadd.s32 %v388, 8
          %v410 = vlaneseq
          %v411 = vand.u32 %v410, 127
          %s412 = scalar_lea.vmem %s385, 8
          %v413 = vld [vmem:[%s412] sm:$0xff]
          %v414 = vmul.f32 %v413, %v389
          %s415 = scalar_lea.vmem %s384, 8
          %v416 = vld [vmem:[%s415] sm:$0xff]
          %v417 = vstv %s190
          %vm418 = vcmp.gt.s32.totalorder %v411, %v417
          %v419 = vsub.f32 %v416, %v414
          %v420 = vsel %vm418, %v419, %v416
          %v421 = vstv %s190
          %v422 = vlaneseq
          %v423 = vand.u32 %v422, 127
          %vm424 = vcmp.eq.s32.totalorder %v423, %v421
          %v425 = vstv %s190
          %vm426 = vcmp.ge.s32.totalorder %v409, %v425
          %vm427 = vmand %vm424, %vm426
          %v428 = vsel %vm427, %v413, %v420
          %429 = vst [vmem:[%s415] sm:$0xff] %v428
          %v430 = vadd.s32 %v388, 16
          %v431 = vlaneseq
          %v432 = vand.u32 %v431, 127
          %s433 = scalar_lea.vmem %s385, 16
          %v434 = vld [vmem:[%s433] sm:$0xff]
          %v435 = vmul.f32 %v434, %v389
          %s436 = scalar_lea.vmem %s384, 16
          %v437 = vld [vmem:[%s436] sm:$0xff]
          %v438 = vstv %s190
          %vm439 = vcmp.gt.s32.totalorder %v432, %v438
          %v440 = vsub.f32 %v437, %v435
          %v441 = vsel %vm439, %v440, %v437
          %v442 = vstv %s190
          %v443 = vlaneseq
          %v444 = vand.u32 %v443, 127
          %vm445 = vcmp.eq.s32.totalorder %v444, %v442
          %v446 = vstv %s190
          %vm447 = vcmp.ge.s32.totalorder %v430, %v446
          %vm448 = vmand %vm445, %vm447
          %v449 = vsel %vm448, %v434, %v441
          %450 = vst [vmem:[%s436] sm:$0xff] %v449
          %s451 = scalar_lea.vmem %s384, %s190
          %v452 = vld [vmem:[%s451] ss:$0 sm:$0xff]
          %v453 = vstv %s190
          %v454 = vlaneseq
          %v455 = vand.u32 %v454, 127
          %vm456 = vcmp.eq.s32.totalorder %v455, %v453
          %v457 = vsel %vm456, %v276, %v452
          %458 = vst [vmem:[%s451] sm:$0x1] %v457
        $region59: #{custom-call.12} parent=53 // loop_footer
          %s194 = sadd.s32 1, %s190
        $region60: #{custom-call.12} parent=53 // loop_footer_branch
          %189 = sbr.rel target = $region56
        $region61: #{custom-call.12} parent=53 // loop_exit
          _
        %s460 = sshll.u32 1, 4
        %s461 = ssub.s32 %s460, 1
        %v463 = vld [vmem:[#allocation2] sm:%s461]
        %s464 = sshll.u32 1, 4
        %s465 = ssub.s32 %s464, 1
        %466 = vst [vmem:[%s167] sm:%s465] %v463
        %s467 = sand.u32 %s10, 1
        %s468 = sand.u32 %s10, 1
        %s469 = smul.addr %s468, 24
        %s470 = scalar_lea.vmem [#allocation1], %s469
        %s471 = sand.u32 %s58, 1
        %s472 = sand.u32 %s58, 1
        %s473 = smul.addr %s472, 4
        %s474 = scalar_lea.vmem [#allocation3], %s473
        %s475 = smul.u32 3, %s18
        %s476 = sadd.s32 %s19, %s475
        %s477 = smul.addr %s17, 3
        %s478 = sadd.s32 %s476, %s477
        %s479 = smul.addr %s16, 12
        %s480 = sadd.s32 %s478, %s479
        %s481 = smul.addr %s480, 8
        %s482 = scalar_lea.vmem %s1, %s481
        // Predicated region
        $region62: #{custom-call.12} parent=53 // pred_check
          _
        $region63: #{custom-call.12} parent=53 // pred_check_branch
          %484 = sbr.rel (0) target = $region65
        $region64: #{custom-call.12} parent=53 // pred_region
          // Predicated region
          $region66: #{custom-call.12} parent=64 // pred_check
            _
          $region67: #{custom-call.12} parent=64 // pred_check_branch
            %486 = sbr.rel (0) target = $region69
          $region68: #{custom-call.12} parent=64 // pred_region
            // Predicated region
            $region81: #{custom-call.12} parent=68 // pred_check
              _
            $region82: #{custom-call.12} parent=68 // pred_check_branch
              %506 = sbr.rel (0) target = $region84
            $region83: #{custom-call.12} parent=68 // pred_region
              loop: start=0, step=1, limit=1
              $region85: #{custom-call.12} parent=83 // loop_pre_header
                _
              $region86: #{custom-call.12} parent=83 // loop_header
                %s508 = sphi 0, %s512
                %p509 = scmp.ge.s32.totalorder %s508, 1
                %s513 = sphi %s470, %s470
                %s514 = sphi %s482, %s482
              $region87: #{custom-call.12} parent=83 // loop_header_branch
                %511 = sbr.rel (%p509) target = $region91
              $region88: #{custom-call.12} parent=83 // loop_body
                %v515 = vld [vmem:[%s513] sm:$0xff]
                %516 = vst [vmem:[%s514] sm:$0xff] %v515
                %v517 = vld [vmem:[%s513 + $0x8] sm:$0xff]
                %518 = vst [vmem:[%s514 + $0x8] sm:$0xff] %v517
                %v519 = vld [vmem:[%s513 + $0x10] sm:$0xff]
                %520 = vst [vmem:[%s514 + $0x10] sm:$0xff] %v519
              $region89: #{custom-call.12} parent=83 // loop_footer
                %s512 = sadd.s32 1, %s508
              $region90: #{custom-call.12} parent=83 // loop_footer_branch
                %507 = sbr.rel target = $region86
              $region91: #{custom-call.12} parent=83 // loop_exit
                _
            $region84: #{custom-call.12} parent=68 // pred_fallthru
              _
            // Predicated region
            $region92: #{custom-call.12} parent=68 // pred_check
              _
            $region93: #{custom-call.12} parent=68 // pred_check_branch
              %522 = sbr.rel target = $region95
            $region94: #{custom-call.12} parent=68 // pred_region
              _
            $region95: #{custom-call.12} parent=68 // pred_fallthru
              _
          $region69: #{custom-call.12} parent=64 // pred_fallthru
            _
          // Predicated region
          $region70: #{custom-call.12} parent=64 // pred_check
            _
          $region71: #{custom-call.12} parent=64 // pred_check_branch
            %488 = sbr.rel target = $region73
          $region72: #{custom-call.12} parent=64 // pred_region
            %s490 = ssub.s32 256, 1
            loop: start=0, step=1, limit=1
            $region74: #{custom-call.12} parent=72 // loop_pre_header
              _
            $region75: #{custom-call.12} parent=72 // loop_header
              %s492 = sphi 0, %s496
              %p493 = scmp.ge.s32.totalorder %s492, 1
              %s497 = sphi %s470, %s470
              %s498 = sphi %s482, %s482
            $region76: #{custom-call.12} parent=72 // loop_header_branch
              %495 = sbr.rel (%p493) target = $region80
            $region77: #{custom-call.12} parent=72 // loop_body
              %v499 = vld [vmem:[%s497] sm:%s490]
              %500 = vst [vmem:[%s498] sm:%s490] %v499
              %v501 = vld [vmem:[%s497 + $0x8] sm:%s490]
              %502 = vst [vmem:[%s498 + $0x8] sm:%s490] %v501
              %v503 = vld [vmem:[%s497 + $0x10] sm:%s490]
              %504 = vst [vmem:[%s498 + $0x10] sm:%s490] %v503
            $region78: #{custom-call.12} parent=72 // loop_footer
              %s496 = sadd.s32 1, %s492
            $region79: #{custom-call.12} parent=72 // loop_footer_branch
              %491 = sbr.rel target = $region75
            $region80: #{custom-call.12} parent=72 // loop_exit
              _
          $region73: #{custom-call.12} parent=64 // pred_fallthru
            _
        $region65: #{custom-call.12} parent=53 // pred_fallthru
          _
        %523 = vnop
        // Predicated region
        $region96: #{custom-call.12} parent=53 // pred_check
          %p524 = pneg %p68
        $region97: #{custom-call.12} parent=53 // pred_check_branch
          %526 = sbr.rel (%p524) target = $region99
        $region98: #{custom-call.12} parent=53 // pred_region
          %p527 = scmp.lt.s32.totalorder %s17, 0
          %s528 = ssub.s32 0, %s17
          %s529 = scalar_select %p527, %s528, %s17
          %s530 = sshrl.u32 %s529, 3
          %s531 = ssub.s32 0, %s530
          %s532 = scalar_select %p527, %s531, %s530
          %s533 = sadd.s32 %s532, %s16
          %s534 = smul.addr %s533, 4
          %s535 = scalar_lea.vmem %s2, %s534
          // Predicated region
          $region100: #{custom-call.12} parent=98 // pred_check
            _
          $region101: #{custom-call.12} parent=98 // pred_check_branch
            %537 = sbr.rel (0) target = $region103
          $region102: #{custom-call.12} parent=98 // pred_region
            // Predicated region
            $region104: #{custom-call.12} parent=102 // pred_check
              _
            $region105: #{custom-call.12} parent=102 // pred_check_branch
              %539 = sbr.rel target = $region107
            $region106: #{custom-call.12} parent=102 // pred_region
              // Predicated region
              $region119: #{custom-call.12} parent=106 // pred_check
                _
              $region120: #{custom-call.12} parent=106 // pred_check_branch
                %555 = sbr.rel (0) target = $region122
              $region121: #{custom-call.12} parent=106 // pred_region
                %s557 = ssub.s32 16, 1
                loop: start=0, step=1, limit=1
                $region123: #{custom-call.12} parent=121 // loop_pre_header
                  _
                $region124: #{custom-call.12} parent=121 // loop_header
                  %s559 = sphi 0, %s563
                  %p560 = scmp.ge.s32.totalorder %s559, 1
                  %s564 = sphi %s474, %s474
                  %s565 = sphi %s535, %s535
                $region125: #{custom-call.12} parent=121 // loop_header_branch
                  %562 = sbr.rel (%p560) target = $region129
                $region126: #{custom-call.12} parent=121 // loop_body
                  %v566 = vld [vmem:[%s564] sm:%s557]
                  %567 = vst [vmem:[%s565] sm:%s557] %v566
                $region127: #{custom-call.12} parent=121 // loop_footer
                  %s563 = sadd.s32 1, %s559
                $region128: #{custom-call.12} parent=121 // loop_footer_branch
                  %558 = sbr.rel target = $region124
                $region129: #{custom-call.12} parent=121 // loop_exit
                  _
              $region122: #{custom-call.12} parent=106 // pred_fallthru
                _
            $region107: #{custom-call.12} parent=102 // pred_fallthru
              _
            // Predicated region
            $region108: #{custom-call.12} parent=102 // pred_check
              _
            $region109: #{custom-call.12} parent=102 // pred_check_branch
              %541 = sbr.rel (0) target = $region111
            $region110: #{custom-call.12} parent=102 // pred_region
              %s543 = ssub.s32 16, 1
              loop: start=0, step=1, limit=1
              $region112: #{custom-call.12} parent=110 // loop_pre_header
                _
              $region113: #{custom-call.12} parent=110 // loop_header
                %s545 = sphi 0, %s549
                %p546 = scmp.ge.s32.totalorder %s545, 1
                %s550 = sphi %s474, %s474
                %s551 = sphi %s535, %s535
              $region114: #{custom-call.12} parent=110 // loop_header_branch
                %548 = sbr.rel (%p546) target = $region118
              $region115: #{custom-call.12} parent=110 // loop_body
                %v552 = vld [vmem:[%s550] sm:%s543]
                %553 = vst [vmem:[%s551] sm:%s543] %v552
              $region116: #{custom-call.12} parent=110 // loop_footer
                %s549 = sadd.s32 1, %s545
              $region117: #{custom-call.12} parent=110 // loop_footer_branch
                %544 = sbr.rel target = $region113
              $region118: #{custom-call.12} parent=110 // loop_exit
                _
            $region111: #{custom-call.12} parent=102 // pred_fallthru
              _
          $region103: #{custom-call.12} parent=98 // pred_fallthru
            _
          %568 = vnop
        $region99: #{custom-call.12} parent=53 // pred_fallthru
          _
      $region54: #{custom-call.12} parent=5 // pred_fallthru
        _
      %p569 = scmp.le.s32.totalorder 2, %s5
      // Predicated region
      $region130: #{custom-call.12} parent=5 // pred_check
        %p570 = pneg %p569
      $region131: #{custom-call.12} parent=5 // pred_check_branch
        %572 = sbr.rel (%p570) target = $region133
      $region132: #{custom-call.12} parent=5 // pred_region
        %s573 = ssub.s32 %s5, 2
        %s574 = sand.u32 %s11, 1
        %s575 = sand.u32 %s11, 1
        %s576 = smul.addr %s575, 24
        %s577 = scalar_lea.vmem [#allocation1], %s576
        // Predicated region
        $region134: #{custom-call.12} parent=132 // pred_check
          %p578 = pneg %p74
        $region135: #{custom-call.12} parent=132 // pred_check_branch
          %580 = sbr.rel (%p578) target = $region137
        $region136: #{custom-call.12} parent=132 // pred_region
          %s581 = sand.u32 %s59, 1
          %s582 = sand.u32 %s59, 1
          %s583 = smul.addr %s582, 4
          %s584 = scalar_lea.vmem [#allocation3], %s583
        $region137: #{custom-call.12} parent=132 // pred_fallthru
          _
      $region133: #{custom-call.12} parent=5 // pred_fallthru
        _
    $region6: #{custom-call.12} parent=1 // loop_footer
      %s9 = sadd.s32 1, %s5
    $region7: #{custom-call.12} parent=1 // loop_footer_branch
      %4 = sbr.rel target = $region3
    $region8: #{custom-call.12} parent=1 // loop_exit
      _

// kernel: custom-call.13
$region0: #{custom-call.13}
  %s0 = inlined_call_operand.vmem [shape: f32[2,4,8,8], index: 0, kind: input, shape index: {}]
  %s1 = inlined_call_operand.vmem [shape: f32[2,4,8,8], index: 1, kind: output, shape index: {}]
  $region1: #{custom-call.13} parent=0
    #allocation0 [shape = 'u8[8192]{0}', space=vmem, size = 0x2000, scoped, tag = 'operand span for operand 0']
    #allocation1 [shape = 'u8[8192]{0}', space=vmem, size = 0x2000, scoped, tag = 'operand span for operand 1']
    loop: start=0, step=1, limit=10
    $region2: #{custom-call.13} parent=1 // loop_pre_header
      _
    $region3: #{custom-call.13} parent=1 // loop_header
      %s3 = sphi 0, %s7
      %p4 = scmp.ge.s32.totalorder %s3, 10
      %s10 = sphi 0, %s22
      %s11 = sphi 0, %s18
      %s12 = sphi 0, %s10
      %s13 = sphi 0, %s11
      %s14 = sphi 0, %s12
      %s15 = sphi 0, %s13
    $region4: #{custom-call.13} parent=1 // loop_header_branch
      %6 = sbr.rel (%p4) target = $region8
    $region5: #{custom-call.13} parent=1 // loop_body
      %s8 = ssub.s32 %s3, 1
      %s9 = ssub.s32 %s3, 2
      %s16 = sadd.s32 1, %s11
      %p17 = scmp.ge.s32.totalorder %s16, 4
      %s18 = scalar_select %p17, 0, %s16
      %s19 = sadd.s32 1, %s10
      %s20 = scalar_select %p17, %s19, %s10
      %p21 = scmp.ge.s32.totalorder %s20, 2
      %s22 = scalar_select %p21, 0, %s20
      %p23 = scmp.le.s32.totalorder 1, %s3
      %p24 = scmp.lt.s32.totalorder %s3, 9
      %p25 = pnand %p23, %p24
      %p26 = pneg %p25
      // Predicated region
      $region9: #{custom-call.13} parent=5 // pred_check
        _
      $region10: #{custom-call.13} parent=5 // pred_check_branch
        %28 = sbr.rel (%p25) target = $region12
      $region11: #{custom-call.13} parent=5 // pred_region
        %s29 = ssub.s32 %s3, 1
      $region12: #{custom-call.13} parent=5 // pred_fallthru
        _
      %p30 = scmp.lt.s32.totalorder %s3, 8
      // Predicated region
      $region13: #{custom-call.13} parent=5 // pred_check
        %p31 = pneg %p30
      $region14: #{custom-call.13} parent=5 // pred_check_branch
        %33 = sbr.rel (%p31) target = $region16
      $region15: #{custom-call.13} parent=5 // pred_region
        %s34 = sand.u32 %s3, 1
        %s35 = sand.u32 %s3, 1
        %s36 = smul.addr %s35, 8
        %s37 = scalar_lea.vmem [#allocation0], %s36
        %s38 = smul.addr %s10, 4
        %s39 = sadd.s32 %s11, %s38
        %s40 = smul.addr %s39, 8
        %s41 = scalar_lea.vmem %s0, %s40
        // Predicated region
        $region17: #{custom-call.13} parent=15 // pred_check
          _
        $region18: #{custom-call.13} parent=15 // pred_check_branch
          %43 = sbr.rel (0) target = $region20
        $region19: #{custom-call.13} parent=15 // pred_region
          // Predicated region
          $region21: #{custom-call.13} parent=19 // pred_check
            _
          $region22: #{custom-call.13} parent=19 // pred_check_branch
            %45 = sbr.rel (0) target = $region24
          $region23: #{custom-call.13} parent=19 // pred_region
            // Predicated region
            $region36: #{custom-call.13} parent=23 // pred_check
              _
            $region37: #{custom-call.13} parent=23 // pred_check_branch
              %61 = sbr.rel (0) target = $region39
            $region38: #{custom-call.13} parent=23 // pred_region
              loop: start=0, step=1, limit=1
              $region40: #{custom-call.13} parent=38 // loop_pre_header
                _
              $region41: #{custom-call.13} parent=38 // loop_header
                %s63 = sphi 0, %s67
                %p64 = scmp.ge.s32.totalorder %s63, 1
                %s68 = sphi %s41, %s41
                %s69 = sphi %s37, %s37
              $region42: #{custom-call.13} parent=38 // loop_header_branch
                %66 = sbr.rel (%p64) target = $region46
              $region43: #{custom-call.13} parent=38 // loop_body
                %v70 = vld [vmem:[%s68] sm:$0xff]
                %71 = vst [vmem:[%s69] sm:$0xff] %v70
              $region44: #{custom-call.13} parent=38 // loop_footer
                %s67 = sadd.s32 1, %s63
              $region45: #{custom-call.13} parent=38 // loop_footer_branch
                %62 = sbr.rel target = $region41
              $region46: #{custom-call.13} parent=38 // loop_exit
                _
            $region39: #{custom-call.13} parent=23 // pred_fallthru
              _
            // Predicated region
            $region47: #{custom-call.13} parent=23 // pred_check
              _
            $region48: #{custom-call.13} parent=23 // pred_check_branch
              %73 = sbr.rel target = $region50
            $region49: #{custom-call.13} parent=23 // pred_region
              _
            $region50: #{custom-call.13} parent=23 // pred_fallthru
              _
          $region24: #{custom-call.13} parent=19 // pred_fallthru
            _
          // Predicated region
          $region25: #{custom-call.13} parent=19 // pred_check
            _
          $region26: #{custom-call.13} parent=19 // pred_check_branch
            %47 = sbr.rel target = $region28
          $region27: #{custom-call.13} parent=19 // pred_region
            %s49 = ssub.s32 256, 1
            loop: start=0, step=1, limit=1
            $region29: #{custom-call.13} parent=27 // loop_pre_header
              _
            $region30: #{custom-call.13} parent=27 // loop_header
              %s51 = sphi 0, %s55
              %p52 = scmp.ge.s32.totalorder %s51, 1
              %s56 = sphi %s41, %s41
              %s57 = sphi %s37, %s37
            $region31: #{custom-call.13} parent=27 // loop_header_branch
              %54 = sbr.rel (%p52) target = $region35
            $region32: #{custom-call.13} parent=27 // loop_body
              %v58 = vld [vmem:[%s56] sm:%s49]
              %59 = vst [vmem:[%s57] sm:%s49] %v58
            $region33: #{custom-call.13} parent=27 // loop_footer
              %s55 = sadd.s32 1, %s51
            $region34: #{custom-call.13} parent=27 // loop_footer_branch
              %50 = sbr.rel target = $region30
            $region35: #{custom-call.13} parent=27 // loop_exit
              _
          $region28: #{custom-call.13} parent=19 // pred_fallthru
            _
        $region20: #{custom-call.13} parent=15 // pred_fallthru
          _
        %74 = vnop
      $region16: #{custom-call.13} parent=5 // pred_fallthru
        _
      %p75 = scmp.le.s32.totalorder 1, %s3
      %p76 = scmp.lt.s32.totalorder %s3, 9
      %p77 = pnand %p75, %p76
      %p78 = pneg %p77
      // Predicated region
      $region51: #{custom-call.13} parent=5 // pred_check
        _
      $region52: #{custom-call.13} parent=5 // pred_check_branch
        %80 = sbr.rel (%p77) target = $region54
      $region53: #{custom-call.13} parent=5 // pred_region
        %s81 = ssub.s32 %s3, 1
        %s82 = sand.u32 %s8, 1
        %s83 = sand.u32 %s8, 1
        %s84 = smul.addr %s83, 8
        %s85 = scalar_lea.vmem [#allocation0], %s84
        %s86 = sand.u32 %s8, 1
        %s87 = sand.u32 %s8, 1
        %s88 = smul.addr %s87, 8
        %s89 = scalar_lea.vmem [#allocation0], %s88
        %s90 = sand.u32 %s8, 1
        %s91 = sand.u32 %s8, 1
        %s92 = smul.addr %s91, 8
        %s93 = scalar_lea.vmem [#allocation1], %s92
        %v94 = vlaneseq
        %v95 = vand.u32 %v94, 127
        %v96 = vlaneseq
        %v97 = vshrl.u32 %v96, 7
        %vm99 = vcmp.eq.s32.totalorder %v95, %v97
        %v100 = vld [vmem:[%s85] sm:$0xff]
        %v101 = vlaneseq
        %v102 = vand.u32 %v101, 127
        %vm103 = vcmp.eq.s32.totalorder %v102, 0
        %v104 = vsel %vm103, %v100, 1.0
        %v105 = vsel %vm99, %v104, 0.0
        %s106 = scalar_lea.vmem %s85, 1 [#allocation0]
        %v107 = vld [vmem:[%s106] ss:$0 sm:$0xff]
        %vm108 = vcmask 64512
        %v109 = vsel %vm108, %v107, 0.0
        %v110 = vlaneseq
        %v111 = vand.u32 %v110, 127
        %vm112 = vcmp.eq.s32.totalorder %v111, 1
        %v113 = vmul.f32 %v109, %v105
        %114 = vadd.xlane.f32.xlu0 %v113
        %v115 = vpop.xlane.xlu0 %114
        %v116 = vsel %vm112, %v115, %v105
        %s117 = scalar_lea.vmem %s85, 2 [#allocation0]
        %v118 = vld [vmem:[%s117] ss:$0 sm:$0xff]
        %vm119 = vcmask 64512
        %v120 = vsel %vm119, %v118, 0.0
        %v121 = vlaneseq
        %v122 = vand.u32 %v121, 127
        %vm123 = vcmp.eq.s32.totalorder %v122, 2
        %v124 = vmul.f32 %v120, %v116
        %125 = vadd.xlane.f32.xlu0 %v124
        %v126 = vpop.xlane.xlu0 %125
        %v127 = vsel %vm123, %v126, %v116
        %s128 = scalar_lea.vmem %s85, 3 [#allocation0]
        %v129 = vld [vmem:[%s128] ss:$0 sm:$0xff]
        %vm130 = vcmask 64512
        %v131 = vsel %vm130, %v129, 0.0
        %v132 = vlaneseq
        %v133 = vand.u32 %v132, 127
        %vm134 = vcmp.eq.s32.totalorder %v133, 3
        %v135 = vmul.f32 %v131, %v127
        %136 = vadd.xlane.f32.xlu0 %v135
        %v137 = vpop.xlane.xlu0 %136
        %v138 = vsel %vm134, %v137, %v127
        %s139 = scalar_lea.vmem %s85, 4 [#allocation0]
        %v140 = vld [vmem:[%s139] ss:$0 sm:$0xff]
        %vm141 = vcmask 64512
        %v142 = vsel %vm141, %v140, 0.0
        %v143 = vlaneseq
        %v144 = vand.u32 %v143, 127
        %vm145 = vcmp.eq.s32.totalorder %v144, 4
        %v146 = vmul.f32 %v142, %v138
        %147 = vadd.xlane.f32.xlu0 %v146
        %v148 = vpop.xlane.xlu0 %147
        %v149 = vsel %vm145, %v148, %v138
        %s150 = scalar_lea.vmem %s85, 5 [#allocation0]
        %v151 = vld [vmem:[%s150] ss:$0 sm:$0xff]
        %vm152 = vcmask 64512
        %v153 = vsel %vm152, %v151, 0.0
        %v154 = vlaneseq
        %v155 = vand.u32 %v154, 127
        %vm156 = vcmp.eq.s32.totalorder %v155, 5
        %v157 = vmul.f32 %v153, %v149
        %158 = vadd.xlane.f32.xlu0 %v157
        %v159 = vpop.xlane.xlu0 %158
        %v160 = vsel %vm156, %v159, %v149
        %s161 = scalar_lea.vmem %s85, 6 [#allocation0]
        %v162 = vld [vmem:[%s161] ss:$0 sm:$0xff]
        %vm163 = vcmask 64512
        %v164 = vsel %vm163, %v162, 0.0
        %v165 = vlaneseq
        %v166 = vand.u32 %v165, 127
        %vm167 = vcmp.eq.s32.totalorder %v166, 6
        %v168 = vmul.f32 %v164, %v160
        %169 = vadd.xlane.f32.xlu0 %v168
        %v170 = vpop.xlane.xlu0 %169
        %v171 = vsel %vm167, %v170, %v160
        %s172 = scalar_lea.vmem %s85, 7 [#allocation0]
        %v173 = vld [vmem:[%s172] ss:$0 sm:$0xff]
        %vm174 = vcmask 64512
        %v175 = vsel %vm174, %v173, 0.0
        %v176 = vlaneseq
        %v177 = vand.u32 %v176, 127
        %vm178 = vcmp.eq.s32.totalorder %v177, 7
        %v179 = vmul.f32 %v175, %v171
        %180 = vadd.xlane.f32.xlu0 %v179
        %v181 = vpop.xlane.xlu0 %180
        %v182 = vsel %vm178, %v181, %v171
        %183 = vst [vmem:[%s93] sm:$0xff] %v182
        %s184 = sand.u32 %s8, 1
        %s185 = sand.u32 %s8, 1
        %s186 = smul.addr %s185, 8
        %s187 = scalar_lea.vmem [#allocation1], %s186
        %s188 = smul.addr %s12, 4
        %s189 = sadd.s32 %s13, %s188
        %s190 = smul.addr %s189, 8
        %s191 = scalar_lea.vmem %s1, %s190
        // Predicated region
        $region55: #{custom-call.13} parent=53 // pred_check
          _
        $region56: #{custom-call.13} parent=53 // pred_check_branch
          %193 = sbr.rel (0) target = $region58
        $region57: #{custom-call.13} parent=53 // pred_region
          // Predicated region
          $region59: #{custom-call.13} parent=57 // pred_check
            _
          $region60: #{custom-call.13} parent=57 // pred_check_branch
            %195 = sbr.rel (0) target = $region62
          $region61: #{custom-call.13} parent=57 // pred_region
            // Predicated region
            $region74: #{custom-call.13} parent=61 // pred_check
              _
            $region75: #{custom-call.13} parent=61 // pred_check_branch
              %211 = sbr.rel (0) target = $region77
            $region76: #{custom-call.13} parent=61 // pred_region
              loop: start=0, step=1, limit=1
              $region78: #{custom-call.13} parent=76 // loop_pre_header
                _
              $region79: #{custom-call.13} parent=76 // loop_header
                %s213 = sphi 0, %s217
                %p214 = scmp.ge.s32.totalorder %s213, 1
                %s218 = sphi %s187, %s187
                %s219 = sphi %s191, %s191
              $region80: #{custom-call.13} parent=76 // loop_header_branch
                %216 = sbr.rel (%p214) target = $region84
              $region81: #{custom-call.13} parent=76 // loop_body
                %v220 = vld [vmem:[%s218] sm:$0xff]
                %221 = vst [vmem:[%s219] sm:$0xff] %v220
              $region82: #{custom-call.13} parent=76 // loop_footer
                %s217 = sadd.s32 1, %s213
              $region83: #{custom-call.13} parent=76 // loop_footer_branch
                %212 = sbr.rel target = $region79
              $region84: #{custom-call.13} parent=76 // loop_exit
                _
            $region77: #{custom-call.13} parent=61 // pred_fallthru
              _
            // Predicated region
            $region85: #{custom-call.13} parent=61 // pred_check
              _
            $region86: #{custom-call.13} parent=61 // pred_check_branch
              %223 = sbr.rel target = $region88
            $region87: #{custom-call.13} parent=61 // pred_region
              _
            $region88: #{custom-call.13} parent=61 // pred_fallthru
              _
          $region62: #{custom-call.13} parent=57 // pred_fallthru
            _
          // Predicated region
          $region63: #{custom-call.13} parent=57 // pred_check
            _
          $region64: #{custom-call.13} parent=57 // pred_check_branch
            %197 = sbr.rel target = $region66
          $region65: #{custom-call.13} parent=57 // pred_region
            %s199 = ssub.s32 256, 1
            loop: start=0, step=1, limit=1
            $region67: #{custom-call.13} parent=65 // loop_pre_header
              _
            $region68: #{custom-call.13} parent=65 // loop_header
              %s201 = sphi 0, %s205
              %p202 = scmp.ge.s32.totalorder %s201, 1
              %s206 = sphi %s187, %s187
              %s207 = sphi %s191, %s191
            $region69: #{custom-call.13} parent=65 // loop_header_branch
              %204 = sbr.rel (%p202) target = $region73
            $region70: #{custom-call.13} parent=65 // loop_body
              %v208 = vld [vmem:[%s206] sm:%s199]
              %209 = vst [vmem:[%s207] sm:%s199] %v208
            $region71: #{custom-call.13} parent=65 // loop_footer
              %s205 = sadd.s32 1, %s201
            $region72: #{custom-call.13} parent=65 // loop_footer_branch
              %200 = sbr.rel target = $region68
            $region73: #{custom-call.13} parent=65 // loop_exit
              _
          $region66: #{custom-call.13} parent=57 // pred_fallthru
            _
        $region58: #{custom-call.13} parent=53 // pred_fallthru
          _
        %224 = vnop
      $region54: #{custom-call.13} parent=5 // pred_fallthru
        _
      %p225 = scmp.le.s32.totalorder 2, %s3
      // Predicated region
      $region89: #{custom-call.13} parent=5 // pred_check
        %p226 = pneg %p225
      $region90: #{custom-call.13} parent=5 // pred_check_branch
        %228 = sbr.rel (%p226) target = $region92
      $region91: #{custom-call.13} parent=5 // pred_region
        %s229 = ssub.s32 %s3, 2
        %s230 = sand.u32 %s9, 1
        %s231 = sand.u32 %s9, 1
        %s232 = smul.addr %s231, 8
        %s233 = scalar_lea.vmem [#allocation1], %s232
      $region92: #{custom-call.13} parent=5 // pred_fallthru
        _
    $region6: #{custom-call.13} parent=1 // loop_footer
      %s7 = sadd.s32 1, %s3
    $region7: #{custom-call.13} parent=1 // loop_footer_branch
      %2 = sbr.rel target = $region3
    $region8: #{custom-call.13} parent=1 // loop_exit
      _

// kernel: transformer_forward.8
$region0: #{transformer_forward.8}
  #allocation0 [shape = 'u32[]', space=smem, size = 0x4, offset = 0x4, fixed_abs, tag = 'smem constant byte address 0x4 - core index']
  #allocation1 [shape = 'u32[144,128]{1,0:T(1,128)}', space=vmem, size = 0x12000, scoped, tag = 'internal scratch']
  %s0 = inlined_call_operand.vmem [shape: f32[48,32], index: 0, kind: input, shape index: {}]
  %s1 = inlined_call_operand.vmem [shape: f32[1,32], index: 1, kind: input, shape index: {}]
  %s2 = inlined_call_operand.vmem [shape: f32[1,32], index: 2, kind: input, shape index: {}]
  %s3 = inlined_call_operand.vmem [shape: bf16[32,96], index: 3, kind: input, shape index: {}]
  %s4 = inlined_call_operand.vmem [shape: f32[1,96], index: 4, kind: input, shape index: {}]
  %s5 = inlined_call_operand.vmem [shape: f32[48,96], index: 5, kind: output, shape index: {}]
  %s6 = sld [smem:[#allocation0]]
  $region53: #{transformer_forward.8} parent=0
    _
  %s8 = ssub.s32 1, %s6
  %s9 = scalar_select 0, %s8, %s6
  loop: start=0, step=1, limit=5
  $region2: #{transformer_forward.8} parent=0 // loop_pre_header
    _
  $region3: #{transformer_forward.8} parent=0 // loop_header
    %s11 = sphi 0, %s15
    %p12 = scmp.ge.s32.totalorder %s11, 5
    %s21 = sphi 0, %s23
    %s24 = sphi 0, %s21
    %s25 = sphi 0, %s24
    %s41 = sphi 0, %s25
    %s45 = sphi 0, %s45
    %s47 = sphi 0, %s45
    %s48 = sphi 0, %s47
    %s62 = sphi 0, %s48
    %s66 = sphi 0, %s66
    %s68 = sphi 0, %s66
    %s69 = sphi 0, %s68
    %s83 = sphi 0, %s69
    %s87 = sphi 0, %s87
    %s89 = sphi 0, %s87
    %s90 = sphi 0, %s89
    %s104 = sphi 0, %s90
    %s108 = sphi 0, %s108
    %s110 = sphi 0, %s108
    %s111 = sphi 0, %s110
    %s125 = sphi 0, %s111
    %s131 = sphi 0, %s133
    %s134 = sphi 0, %s131
    %s135 = sphi 0, %s134
    %s151 = sphi 0, %s135
  $region4: #{transformer_forward.8} parent=0 // loop_header_branch
    %14 = sbr.rel (%p12) target = $region8
  $region5: #{transformer_forward.8} parent=0 // loop_body
    %s16 = ssub.s32 %s11, 1
    %s17 = ssub.s32 %s11, 2
    %s18 = sadd.s32 %s11, 1
    %s19 = ssub.s32 %s11, %s18
    %p20 = scmp.eq.s32.totalorder %s19, 0
    %s22 = sadd.s32 %s21, 1
    %s23 = scalar_select %p20, %s21, %s22
    %p26 = pneg %p20
    %p27 = scmp.eq.s32.totalorder %s11, 2
    %p28 = por %p26, %p27
    %p29 = scmp.ne.s32.totalorder %s21, %s24
    %p30 = scmp.eq.s32.totalorder %s11, 0
    %p31 = por %p29, %p30
    %p32 = scmp.ne.s32.totalorder %s21, %s24
    %p33 = scmp.eq.s32.totalorder %s16, 2
    %p34 = por %p32, %p33
    %p35 = scmp.ne.s32.totalorder %s24, %s25
    %p36 = scmp.eq.s32.totalorder %s16, 0
    %p37 = por %p35, %p36
    %p38 = scmp.ne.s32.totalorder %s24, %s25
    %p39 = scmp.eq.s32.totalorder %s17, 2
    %p40 = por %p38, %p39
    %p42 = scmp.ne.s32.totalorder %s25, %s41
    %p43 = scmp.eq.s32.totalorder %s17, 0
    %p44 = por %p42, %p43
    %s46 = sadd.s32 %s45, 1
    %p49 = scmp.eq.s32.totalorder %s11, 2
    %p50 = scmp.ne.s32.totalorder %s45, %s47
    %p51 = scmp.eq.s32.totalorder %s11, 0
    %p52 = por %p50, %p51
    %p53 = scmp.ne.s32.totalorder %s45, %s47
    %p54 = scmp.eq.s32.totalorder %s16, 2
    %p55 = por %p53, %p54
    %p56 = scmp.ne.s32.totalorder %s47, %s48
    %p57 = scmp.eq.s32.totalorder %s16, 0
    %p58 = por %p56, %p57
    %p59 = scmp.ne.s32.totalorder %s47, %s48
    %p60 = scmp.eq.s32.totalorder %s17, 2
    %p61 = por %p59, %p60
    %p63 = scmp.ne.s32.totalorder %s48, %s62
    %p64 = scmp.eq.s32.totalorder %s17, 0
    %p65 = por %p63, %p64
    %s67 = sadd.s32 %s66, 1
    %p70 = scmp.eq.s32.totalorder %s11, 2
    %p71 = scmp.ne.s32.totalorder %s66, %s68
    %p72 = scmp.eq.s32.totalorder %s11, 0
    %p73 = por %p71, %p72
    %p74 = scmp.ne.s32.totalorder %s66, %s68
    %p75 = scmp.eq.s32.totalorder %s16, 2
    %p76 = por %p74, %p75
    %p77 = scmp.ne.s32.totalorder %s68, %s69
    %p78 = scmp.eq.s32.totalorder %s16, 0
    %p79 = por %p77, %p78
    %p80 = scmp.ne.s32.totalorder %s68, %s69
    %p81 = scmp.eq.s32.totalorder %s17, 2
    %p82 = por %p80, %p81
    %p84 = scmp.ne.s32.totalorder %s69, %s83
    %p85 = scmp.eq.s32.totalorder %s17, 0
    %p86 = por %p84, %p85
    %s88 = sadd.s32 %s87, 1
    %p91 = scmp.eq.s32.totalorder %s11, 2
    %p92 = scmp.ne.s32.totalorder %s87, %s89
    %p93 = scmp.eq.s32.totalorder %s11, 0
    %p94 = por %p92, %p93
    %p95 = scmp.ne.s32.totalorder %s87, %s89
    %p96 = scmp.eq.s32.totalorder %s16, 2
    %p97 = por %p95, %p96
    %p98 = scmp.ne.s32.totalorder %s89, %s90
    %p99 = scmp.eq.s32.totalorder %s16, 0
    %p100 = por %p98, %p99
    %p101 = scmp.ne.s32.totalorder %s89, %s90
    %p102 = scmp.eq.s32.totalorder %s17, 2
    %p103 = por %p101, %p102
    %p105 = scmp.ne.s32.totalorder %s90, %s104
    %p106 = scmp.eq.s32.totalorder %s17, 0
    %p107 = por %p105, %p106
    %s109 = sadd.s32 %s108, 1
    %p112 = scmp.eq.s32.totalorder %s11, 2
    %p113 = scmp.ne.s32.totalorder %s108, %s110
    %p114 = scmp.eq.s32.totalorder %s11, 0
    %p115 = por %p113, %p114
    %p116 = scmp.ne.s32.totalorder %s108, %s110
    %p117 = scmp.eq.s32.totalorder %s16, 2
    %p118 = por %p116, %p117
    %p119 = scmp.ne.s32.totalorder %s110, %s111
    %p120 = scmp.eq.s32.totalorder %s16, 0
    %p121 = por %p119, %p120
    %p122 = scmp.ne.s32.totalorder %s110, %s111
    %p123 = scmp.eq.s32.totalorder %s17, 2
    %p124 = por %p122, %p123
    %p126 = scmp.ne.s32.totalorder %s111, %s125
    %p127 = scmp.eq.s32.totalorder %s17, 0
    %p128 = por %p126, %p127
    %s129 = ssub.s32 %s11, %s18
    %p130 = scmp.eq.s32.totalorder %s129, 0
    %s132 = sadd.s32 %s131, 1
    %s133 = scalar_select %p130, %s131, %s132
    %p136 = pneg %p130
    %p137 = scmp.eq.s32.totalorder %s11, 2
    %p138 = por %p136, %p137
    %p139 = scmp.ne.s32.totalorder %s131, %s134
    %p140 = scmp.eq.s32.totalorder %s11, 0
    %p141 = por %p139, %p140
    %p142 = scmp.ne.s32.totalorder %s131, %s134
    %p143 = scmp.eq.s32.totalorder %s16, 2
    %p144 = por %p142, %p143
    %p145 = scmp.ne.s32.totalorder %s134, %s135
    %p146 = scmp.eq.s32.totalorder %s16, 0
    %p147 = por %p145, %p146
    %p148 = scmp.ne.s32.totalorder %s134, %s135
    %p149 = scmp.eq.s32.totalorder %s17, 2
    %p150 = por %p148, %p149
    %p152 = scmp.ne.s32.totalorder %s135, %s151
    %p153 = scmp.eq.s32.totalorder %s17, 0
    %p154 = por %p152, %p153
    %p155 = scmp.le.s32.totalorder 1, %s11
    %p156 = scmp.lt.s32.totalorder %s11, 4
    %p157 = pnand %p155, %p156
    %p158 = pneg %p157
    // Predicated region
    $region9: #{transformer_forward.8} parent=5 // pred_check
      _
    $region10: #{transformer_forward.8} parent=5 // pred_check_branch
      %160 = sbr.rel (%p157) target = $region12
    $region11: #{transformer_forward.8} parent=5 // pred_region
      %s161 = ssub.s32 %s11, 1
      // Predicated region
      $region13: #{transformer_forward.8} parent=11 // pred_check
        %p162 = pneg %p58
      $region14: #{transformer_forward.8} parent=11 // pred_check_branch
        %164 = sbr.rel (%p162) target = $region16
      $region15: #{transformer_forward.8} parent=11 // pred_region
        _
      $region16: #{transformer_forward.8} parent=11 // pred_fallthru
        _
      // Predicated region
      $region17: #{transformer_forward.8} parent=11 // pred_check
        %p165 = pneg %p79
      $region18: #{transformer_forward.8} parent=11 // pred_check_branch
        %167 = sbr.rel (%p165) target = $region20
      $region19: #{transformer_forward.8} parent=11 // pred_region
        _
      $region20: #{transformer_forward.8} parent=11 // pred_fallthru
        _
      // Predicated region
      $region21: #{transformer_forward.8} parent=11 // pred_check
        %p168 = pneg %p100
      $region22: #{transformer_forward.8} parent=11 // pred_check_branch
        %170 = sbr.rel (%p168) target = $region24
      $region23: #{transformer_forward.8} parent=11 // pred_region
        _
      $region24: #{transformer_forward.8} parent=11 // pred_fallthru
        _
      // Predicated region
      $region25: #{transformer_forward.8} parent=11 // pred_check
        %p171 = pneg %p121
      $region26: #{transformer_forward.8} parent=11 // pred_check_branch
        %173 = sbr.rel (%p171) target = $region28
      $region27: #{transformer_forward.8} parent=11 // pred_region
        _
      $region28: #{transformer_forward.8} parent=11 // pred_fallthru
        _
    $region12: #{transformer_forward.8} parent=5 // pred_fallthru
      _
    %p174 = scmp.lt.s32.totalorder %s11, 3
    // Predicated region
    $region29: #{transformer_forward.8} parent=5 // pred_check
      %p175 = pneg %p174
    $region30: #{transformer_forward.8} parent=5 // pred_check_branch
      %177 = sbr.rel (%p175) target = $region32
    $region31: #{transformer_forward.8} parent=5 // pred_region
      // Predicated region
      $region33: #{transformer_forward.8} parent=31 // pred_check
        %p178 = pneg %p31
      $region34: #{transformer_forward.8} parent=31 // pred_check_branch
        %180 = sbr.rel (%p178) target = $region36
      $region35: #{transformer_forward.8} parent=31 // pred_region
        %s181 = smul.u32 2, %s11
        %p182 = scmp.lt.s32.totalorder %s181, 5
        %s183 = scalar_select %p182, %s181, 5
        %s184 = smul.addr %s183, 8
        %s185 = scalar_lea.vmem %s0, %s184
        %s186 = smul.u32 2, %s11
      $region36: #{transformer_forward.8} parent=31 // pred_fallthru
        _
    $region32: #{transformer_forward.8} parent=5 // pred_fallthru
      _
    %p187 = scmp.le.s32.totalorder 1, %s11
    %p188 = scmp.lt.s32.totalorder %s11, 4
    %p189 = pnand %p187, %p188
    %p190 = pneg %p189
    // Predicated region
    $region37: #{transformer_forward.8} parent=5 // pred_check
      _
    $region38: #{transformer_forward.8} parent=5 // pred_check_branch
      %192 = sbr.rel (%p189) target = $region40
    $region39: #{transformer_forward.8} parent=5 // pred_region
      %s193 = ssub.s32 %s11, 1
      %s194 = smul.u32 2, %s16
      %p195 = scmp.lt.s32.totalorder %s194, 5
      %s196 = scalar_select %p195, %s194, 5
      %s197 = smul.addr %s196, 8
      %s198 = scalar_lea.vmem %s0, %s197
      %p199 = pneg %p37
      %p200 = pneg %p34
      %p201 = pneg %p58
      %p202 = pneg %p55
      %p203 = pneg %p79
      %p204 = pneg %p76
      %p205 = pneg %p100
      %p206 = pneg %p97
      %p207 = pneg %p121
      %p208 = pneg %p118
      %p209 = pneg %p147
      %p210 = pneg %p144
      %s211 = smul.u32 2, %s16
      %p212 = scmp.lt.s32.totalorder %s211, 5
      %s213 = scalar_select %p212, %s211, 5
      %s214 = smul.addr %s213, 8
      %s215 = scalar_lea.vmem %s5, %s214
      %s216 = smul.u32 2, %s16
      %p217 = scmp.lt.s32.totalorder %s216, 5
      %s218 = scalar_select %p217, %s216, 5
      %s219 = smul.addr %s218, 8
      %s220 = scalar_lea.vmem %s0, %s219
      %s221 = smul.u32 2, %s16
      %s222 = smul.u32 2, %s16
      %p223 = scmp.lt.s32.totalorder %s222, 5
      %s224 = scalar_select %p223, %s222, 5
      %s225 = smul.addr %s224, 8
      %s226 = scalar_lea.vmem %s5, %s225
      %s227 = smul.u32 2, %s16
      %v229 = vld [vmem:[%s220] sm:$0xff]
      %v230 = vld [vmem:[%s220 + $0x8] sm:$0xff]
      %vm231 = vcmask 261120
      %v232 = vsel %vm231, %v229, 0.0
      %233 = vadd.xlane.f32.xlu0 %v232
      %v234 = vpop.xlane.xlu0 %233
      %v235 = vsel %vm231, %v230, 0.0
      %236 = vadd.xlane.f32.xlu0 %v235
      %v237 = vpop.xlane.xlu0 %236
      %v238 = vrcp.pop 32.0
      %v239 = vmul.f32 %v234, %v238
      %v240 = vmul.f32 %v237, %v238
      %v241 = vsub.f32 %v229, %v239
      %v242 = vsub.f32 %v230, %v240
      %v243 = vmul.f32 %v241, %v241
      %v244 = vmul.f32 %v242, %v242
      %v245 = vsel %vm231, %v243, 0.0
      %246 = vadd.xlane.f32.xlu0 %v245
      %v247 = vpop.xlane.xlu0 %246
      %v248 = vsel %vm231, %v244, 0.0
      %249 = vadd.xlane.f32.xlu0 %v248
      %v250 = vpop.xlane.xlu0 %249
      %v251 = vmul.f32 %v247, %v238
      %v252 = vmul.f32 %v250, %v238
      %v253 = vadd.f32 %v251, 1e-06
      %v254 = vadd.f32 %v252, 1e-06
      %v255 = vrsqrt.pop %v253
      %v256 = vrsqrt.pop %v254
      %v257 = vmul.f32 %v241, %v255
      %v258 = vmul.f32 %v242, %v256
      %v259 = vld [vmem:[%s1] sm:$0x1]
      %v261 = vlaneseq
      %v262 = vshrl.u32 %v261, 7
      %v263 = vsub.s32 0, %v262
      %v264 = vrot.slane %v259, %v263
      %v266 = vmul.f32 %v257, %v264
      %v267 = vmul.f32 %v258, %v264
      %v268 = vld [vmem:[%s2] sm:$0x1]
      %v270 = vlaneseq
      %v271 = vshrl.u32 %v270, 7
      %v272 = vsub.s32 0, %v271
      %v273 = vrot.slane %v268, %v272
      %v275 = vadd.f32 %v266, %v273
      %v276 = vadd.f32 %v267, %v273
      %v277 = vpack.c.bf16 %v276, %v275
      %v278 = vld [vmem:[%s3] sm:$0xf]
      %v279 = vld [vmem:[%s3 + $0x4] sm:$0xf]
      %v280 = vld [vmem:[%s3 + $0x8] sm:$0xf]
      %v281 = vld [vmem:[%s3 + $0xc] sm:$0xf]
      %v282 = vld [vmem:[%s4] sm:$0x1]
      %v284 = vlaneseq
      %v285 = vshrl.u32 %v284, 7
      %v286 = vsub.s32 0, %v285
      %v287 = vrot.slane %v282, %v286
      %v293 = vunpack.c.l.b16 %v278
      %v294 = vunpack.c.l.b16 %v279
      %v295 = vunpack.c.l.b16 %v280
      %v296 = vunpack.c.l.b16 %v281
      %v297 = vpack.c.b16 %v294, %v293
      %v298 = vpack.c.b16 %v296, %v295
      %v302 = vsel %vm231, %v277, 0
      %304 = vmatprep.subr.bf16.mxu0 0
      %305 = vmatpush1.bf16.msra.mxu0 0
      %306 = vmatprep.subr.bf16.mxu0 0
      %307 = vmatpush1.bf16.msra.mxu0 0
      %308 = vmatprep.subr.bf16.mxu0 0
      %309 = vmatpush1.bf16.msra.mxu0 0
      %310 = vmatprep.subr.bf16.mxu0 0
      %311 = vmatpush1.bf16.msra.mxu0 0
      %312 = vmatprep.subr.bf16.mxu0 0
      %313 = vmatpush1.bf16.msra.mxu0 0
      %314 = vmatprep.subr.bf16.mxu0 0
      %315 = vmatpush1.bf16.msra.mxu0 0
      %316 = vmatprep.subr.bf16.mxu0 0
      %317 = vmatpush1.bf16.msra.mxu0 %v298
      %318 = vmatprep.subr.bf16.mxu0 0
      %319 = vmatpush1.bf16.msra.mxu0 %v297
      %320 = vmatprep.subr.bf16.mxu0 0
      %321 = vmatpush2.bf16.msra.mxu0 0
      %322 = vmatprep.subr.bf16.mxu0 0
      %323 = vmatpush2.bf16.msra.mxu0 0
      %324 = vmatprep.subr.bf16.mxu0 0
      %325 = vmatpush2.bf16.msra.mxu0 0
      %326 = vmatprep.subr.bf16.mxu0 0
      %327 = vmatpush2.bf16.msra.mxu0 0
      %328 = vmatprep.subr.bf16.mxu0 0
      %329 = vmatpush2.bf16.msra.mxu0 0
      %330 = vmatprep.subr.bf16.mxu0 0
      %331 = vmatpush2.bf16.msra.mxu0 0
      %332 = vmatprep.subr.bf16.mxu0 0
      %333 = vmatpush2.bf16.msra.mxu0 0
      %334 = vmatprep.subr.bf16.mxu0 0
      %335 = vmatpush2.bf16.msra.mxu0 0
      %336 = vmatprep.mubr.bf16.mxu0 0
      %337 = vmatmul.mubr.bf16.gmra.mxu0 %v302
      %v338 = vpop.f32.mrf.mxu0
      %v339 = vadd.f32 %v287, %v338
      %v340 = vpop.f32.mrf.mxu0
      %v341 = vpop.f32.mrf.mxu0
      %v342 = vadd.f32 %v287, %v341
      %v343 = vpop.f32.mrf.mxu0
      %344 = vdwg.mxu0
      %vm345 = vcmask 785408
      %346 = vst.msk [vmem:[%s226] sm:$0xff] %vm345, %v339
      %347 = vst.msk [vmem:[%s226 + $0x8] sm:$0xff] %vm345, %v342
      %s348 = smul.u32 2, %s16
      %p349 = scmp.lt.s32.totalorder %s348, 5
      %s350 = scalar_select %p349, %s348, 5
      %s351 = smul.addr %s350, 8
      %s352 = scalar_lea.vmem %s5, %s351
      // Predicated region
      $region41: #{transformer_forward.8} parent=39 // pred_check
        %p353 = pneg %p144
      $region42: #{transformer_forward.8} parent=39 // pred_check_branch
        %355 = sbr.rel (%p353) target = $region44
      $region43: #{transformer_forward.8} parent=39 // pred_region
        %s356 = smul.u32 2, %s16
      $region44: #{transformer_forward.8} parent=39 // pred_fallthru
        _
    $region40: #{transformer_forward.8} parent=5 // pred_fallthru
      _
    %p357 = scmp.le.s32.totalorder 2, %s11
    // Predicated region
    $region45: #{transformer_forward.8} parent=5 // pred_check
      %p358 = pneg %p357
    $region46: #{transformer_forward.8} parent=5 // pred_check_branch
      %360 = sbr.rel (%p358) target = $region48
    $region47: #{transformer_forward.8} parent=5 // pred_region
      %s361 = ssub.s32 %s11, 2
      // Predicated region
      $region49: #{transformer_forward.8} parent=47 // pred_check
        %p362 = pneg %p150
      $region50: #{transformer_forward.8} parent=47 // pred_check_branch
        %364 = sbr.rel (%p362) target = $region52
      $region51: #{transformer_forward.8} parent=47 // pred_region
        %s365 = smul.u32 2, %s17
        %p366 = scmp.lt.s32.totalorder %s365, 5
        %s367 = scalar_select %p366, %s365, 5
        %s368 = smul.addr %s367, 8
        %s369 = scalar_lea.vmem %s5, %s368
      $region52: #{transformer_forward.8} parent=47 // pred_fallthru
        _
    $region48: #{transformer_forward.8} parent=5 // pred_fallthru
      _
  $region6: #{transformer_forward.8} parent=0 // loop_footer
    %s15 = sadd.s32 1, %s11
  $region7: #{transformer_forward.8} parent=0 // loop_footer_branch
    %10 = sbr.rel target = $region3
  $region8: #{transformer_forward.8} parent=0 // loop_exit
    _

// kernel: transformer_forward.10
$region0: #{transformer_forward.10}
  #allocation0 [shape = 'u32[]', space=smem, size = 0x4, offset = 0x4, fixed_abs, tag = 'smem constant byte address 0x4 - core index']
  #allocation1 [shape = 'u32[144,128]{1,0:T(1,128)}', space=vmem, size = 0x12000, scoped, tag = 'internal scratch']
  %s0 = inlined_call_operand.vmem [shape: f32[48,32], index: 0, kind: input, shape index: {}]
  %s1 = inlined_call_operand.vmem [shape: f32[48,32], index: 1, kind: input, shape index: {}]
  %s2 = inlined_call_operand.vmem [shape: bf16[32,32], index: 2, kind: input, shape index: {}]
  %s3 = inlined_call_operand.vmem [shape: f32[1,32], index: 3, kind: input, shape index: {}]
  %s4 = inlined_call_operand.vmem [shape: f32[48,32], index: 4, kind: output, shape index: {}]
  %s5 = sld [smem:[#allocation0]]
  $region49: #{transformer_forward.10} parent=0
    _
  %s7 = ssub.s32 1, %s5
  %s8 = scalar_select 0, %s7, %s5
  loop: start=0, step=1, limit=5
  $region2: #{transformer_forward.10} parent=0 // loop_pre_header
    _
  $region3: #{transformer_forward.10} parent=0 // loop_header
    %s10 = sphi 0, %s14
    %p11 = scmp.ge.s32.totalorder %s10, 5
    %s20 = sphi 0, %s22
    %s23 = sphi 0, %s20
    %s24 = sphi 0, %s23
    %s40 = sphi 0, %s24
    %s46 = sphi 0, %s48
    %s49 = sphi 0, %s46
    %s50 = sphi 0, %s49
    %s66 = sphi 0, %s50
    %s70 = sphi 0, %s70
    %s72 = sphi 0, %s70
    %s73 = sphi 0, %s72
    %s87 = sphi 0, %s73
    %s91 = sphi 0, %s91
    %s93 = sphi 0, %s91
    %s94 = sphi 0, %s93
    %s108 = sphi 0, %s94
    %s114 = sphi 0, %s116
    %s117 = sphi 0, %s114
    %s118 = sphi 0, %s117
    %s134 = sphi 0, %s118
  $region4: #{transformer_forward.10} parent=0 // loop_header_branch
    %13 = sbr.rel (%p11) target = $region8
  $region5: #{transformer_forward.10} parent=0 // loop_body
    %s15 = ssub.s32 %s10, 1
    %s16 = ssub.s32 %s10, 2
    %s17 = sadd.s32 %s10, 1
    %s18 = ssub.s32 %s10, %s17
    %p19 = scmp.eq.s32.totalorder %s18, 0
    %s21 = sadd.s32 %s20, 1
    %s22 = scalar_select %p19, %s20, %s21
    %p25 = pneg %p19
    %p26 = scmp.eq.s32.totalorder %s10, 2
    %p27 = por %p25, %p26
    %p28 = scmp.ne.s32.totalorder %s20, %s23
    %p29 = scmp.eq.s32.totalorder %s10, 0
    %p30 = por %p28, %p29
    %p31 = scmp.ne.s32.totalorder %s20, %s23
    %p32 = scmp.eq.s32.totalorder %s15, 2
    %p33 = por %p31, %p32
    %p34 = scmp.ne.s32.totalorder %s23, %s24
    %p35 = scmp.eq.s32.totalorder %s15, 0
    %p36 = por %p34, %p35
    %p37 = scmp.ne.s32.totalorder %s23, %s24
    %p38 = scmp.eq.s32.totalorder %s16, 2
    %p39 = por %p37, %p38
    %p41 = scmp.ne.s32.totalorder %s24, %s40
    %p42 = scmp.eq.s32.totalorder %s16, 0
    %p43 = por %p41, %p42
    %s44 = ssub.s32 %s10, %s17
    %p45 = scmp.eq.s32.totalorder %s44, 0
    %s47 = sadd.s32 %s46, 1
    %s48 = scalar_select %p45, %s46, %s47
    %p51 = pneg %p45
    %p52 = scmp.eq.s32.totalorder %s10, 2
    %p53 = por %p51, %p52
    %p54 = scmp.ne.s32.totalorder %s46, %s49
    %p55 = scmp.eq.s32.totalorder %s10, 0
    %p56 = por %p54, %p55
    %p57 = scmp.ne.s32.totalorder %s46, %s49
    %p58 = scmp.eq.s32.totalorder %s15, 2
    %p59 = por %p57, %p58
    %p60 = scmp.ne.s32.totalorder %s49, %s50
    %p61 = scmp.eq.s32.totalorder %s15, 0
    %p62 = por %p60, %p61
    %p63 = scmp.ne.s32.totalorder %s49, %s50
    %p64 = scmp.eq.s32.totalorder %s16, 2
    %p65 = por %p63, %p64
    %p67 = scmp.ne.s32.totalorder %s50, %s66
    %p68 = scmp.eq.s32.totalorder %s16, 0
    %p69 = por %p67, %p68
    %s71 = sadd.s32 %s70, 1
    %p74 = scmp.eq.s32.totalorder %s10, 2
    %p75 = scmp.ne.s32.totalorder %s70, %s72
    %p76 = scmp.eq.s32.totalorder %s10, 0
    %p77 = por %p75, %p76
    %p78 = scmp.ne.s32.totalorder %s70, %s72
    %p79 = scmp.eq.s32.totalorder %s15, 2
    %p80 = por %p78, %p79
    %p81 = scmp.ne.s32.totalorder %s72, %s73
    %p82 = scmp.eq.s32.totalorder %s15, 0
    %p83 = por %p81, %p82
    %p84 = scmp.ne.s32.totalorder %s72, %s73
    %p85 = scmp.eq.s32.totalorder %s16, 2
    %p86 = por %p84, %p85
    %p88 = scmp.ne.s32.totalorder %s73, %s87
    %p89 = scmp.eq.s32.totalorder %s16, 0
    %p90 = por %p88, %p89
    %s92 = sadd.s32 %s91, 1
    %p95 = scmp.eq.s32.totalorder %s10, 2
    %p96 = scmp.ne.s32.totalorder %s91, %s93
    %p97 = scmp.eq.s32.totalorder %s10, 0
    %p98 = por %p96, %p97
    %p99 = scmp.ne.s32.totalorder %s91, %s93
    %p100 = scmp.eq.s32.totalorder %s15, 2
    %p101 = por %p99, %p100
    %p102 = scmp.ne.s32.totalorder %s93, %s94
    %p103 = scmp.eq.s32.totalorder %s15, 0
    %p104 = por %p102, %p103
    %p105 = scmp.ne.s32.totalorder %s93, %s94
    %p106 = scmp.eq.s32.totalorder %s16, 2
    %p107 = por %p105, %p106
    %p109 = scmp.ne.s32.totalorder %s94, %s108
    %p110 = scmp.eq.s32.totalorder %s16, 0
    %p111 = por %p109, %p110
    %s112 = ssub.s32 %s10, %s17
    %p113 = scmp.eq.s32.totalorder %s112, 0
    %s115 = sadd.s32 %s114, 1
    %s116 = scalar_select %p113, %s114, %s115
    %p119 = pneg %p113
    %p120 = scmp.eq.s32.totalorder %s10, 2
    %p121 = por %p119, %p120
    %p122 = scmp.ne.s32.totalorder %s114, %s117
    %p123 = scmp.eq.s32.totalorder %s10, 0
    %p124 = por %p122, %p123
    %p125 = scmp.ne.s32.totalorder %s114, %s117
    %p126 = scmp.eq.s32.totalorder %s15, 2
    %p127 = por %p125, %p126
    %p128 = scmp.ne.s32.totalorder %s117, %s118
    %p129 = scmp.eq.s32.totalorder %s15, 0
    %p130 = por %p128, %p129
    %p131 = scmp.ne.s32.totalorder %s117, %s118
    %p132 = scmp.eq.s32.totalorder %s16, 2
    %p133 = por %p131, %p132
    %p135 = scmp.ne.s32.totalorder %s118, %s134
    %p136 = scmp.eq.s32.totalorder %s16, 0
    %p137 = por %p135, %p136
    %p138 = scmp.le.s32.totalorder 1, %s10
    %p139 = scmp.lt.s32.totalorder %s10, 4
    %p140 = pnand %p138, %p139
    %p141 = pneg %p140
    // Predicated region
    $region9: #{transformer_forward.10} parent=5 // pred_check
      _
    $region10: #{transformer_forward.10} parent=5 // pred_check_branch
      %143 = sbr.rel (%p140) target = $region12
    $region11: #{transformer_forward.10} parent=5 // pred_region
      %s144 = ssub.s32 %s10, 1
      // Predicated region
      $region13: #{transformer_forward.10} parent=11 // pred_check
        %p145 = pneg %p83
      $region14: #{transformer_forward.10} parent=11 // pred_check_branch
        %147 = sbr.rel (%p145) target = $region16
      $region15: #{transformer_forward.10} parent=11 // pred_region
        _
      $region16: #{transformer_forward.10} parent=11 // pred_fallthru
        _
      // Predicated region
      $region17: #{transformer_forward.10} parent=11 // pred_check
        %p148 = pneg %p104
      $region18: #{transformer_forward.10} parent=11 // pred_check_branch
        %150 = sbr.rel (%p148) target = $region20
      $region19: #{transformer_forward.10} parent=11 // pred_region
        _
      $region20: #{transformer_forward.10} parent=11 // pred_fallthru
        _
    $region12: #{transformer_forward.10} parent=5 // pred_fallthru
      _
    %p151 = scmp.lt.s32.totalorder %s10, 3
    // Predicated region
    $region21: #{transformer_forward.10} parent=5 // pred_check
      %p152 = pneg %p151
    $region22: #{transformer_forward.10} parent=5 // pred_check_branch
      %154 = sbr.rel (%p152) target = $region24
    $region23: #{transformer_forward.10} parent=5 // pred_region
      // Predicated region
      $region25: #{transformer_forward.10} parent=23 // pred_check
        %p155 = pneg %p30
      $region26: #{transformer_forward.10} parent=23 // pred_check_branch
        %157 = sbr.rel (%p155) target = $region28
      $region27: #{transformer_forward.10} parent=23 // pred_region
        %s158 = smul.u32 2, %s10
        %p159 = scmp.lt.s32.totalorder %s158, 5
        %s160 = scalar_select %p159, %s158, 5
        %s161 = smul.addr %s160, 8
        %s162 = scalar_lea.vmem %s0, %s161
        %s163 = smul.u32 2, %s10
      $region28: #{transformer_forward.10} parent=23 // pred_fallthru
        _
      // Predicated region
      $region29: #{transformer_forward.10} parent=23 // pred_check
        %p164 = pneg %p56
      $region30: #{transformer_forward.10} parent=23 // pred_check_branch
        %166 = sbr.rel (%p164) target = $region32
      $region31: #{transformer_forward.10} parent=23 // pred_region
        %s167 = smul.u32 2, %s10
        %p168 = scmp.lt.s32.totalorder %s167, 5
        %s169 = scalar_select %p168, %s167, 5
        %s170 = smul.addr %s169, 8
        %s171 = scalar_lea.vmem %s1, %s170
        %s172 = smul.u32 2, %s10
      $region32: #{transformer_forward.10} parent=23 // pred_fallthru
        _
    $region24: #{transformer_forward.10} parent=5 // pred_fallthru
      _
    %p173 = scmp.le.s32.totalorder 1, %s10
    %p174 = scmp.lt.s32.totalorder %s10, 4
    %p175 = pnand %p173, %p174
    %p176 = pneg %p175
    // Predicated region
    $region33: #{transformer_forward.10} parent=5 // pred_check
      _
    $region34: #{transformer_forward.10} parent=5 // pred_check_branch
      %178 = sbr.rel (%p175) target = $region36
    $region35: #{transformer_forward.10} parent=5 // pred_region
      %s179 = ssub.s32 %s10, 1
      %s180 = smul.u32 2, %s15
      %p181 = scmp.lt.s32.totalorder %s180, 5
      %s182 = scalar_select %p181, %s180, 5
      %s183 = smul.addr %s182, 8
      %s184 = scalar_lea.vmem %s0, %s183
      %p185 = pneg %p36
      %p186 = pneg %p33
      %s187 = smul.u32 2, %s15
      %p188 = scmp.lt.s32.totalorder %s187, 5
      %s189 = scalar_select %p188, %s187, 5
      %s190 = smul.addr %s189, 8
      %s191 = scalar_lea.vmem %s1, %s190
      %p192 = pneg %p62
      %p193 = pneg %p59
      %p194 = pneg %p83
      %p195 = pneg %p80
      %p196 = pneg %p104
      %p197 = pneg %p101
      %p198 = pneg %p130
      %p199 = pneg %p127
      %s200 = smul.u32 2, %s15
      %p201 = scmp.lt.s32.totalorder %s200, 5
      %s202 = scalar_select %p201, %s200, 5
      %s203 = smul.addr %s202, 8
      %s204 = scalar_lea.vmem %s4, %s203
      %s205 = smul.u32 2, %s15
      %p206 = scmp.lt.s32.totalorder %s205, 5
      %s207 = scalar_select %p206, %s205, 5
      %s208 = smul.addr %s207, 8
      %s209 = scalar_lea.vmem %s0, %s208
      %s210 = smul.u32 2, %s15
      %s211 = smul.u32 2, %s15
      %p212 = scmp.lt.s32.totalorder %s211, 5
      %s213 = scalar_select %p212, %s211, 5
      %s214 = smul.addr %s213, 8
      %s215 = scalar_lea.vmem %s1, %s214
      %s216 = smul.u32 2, %s15
      %s217 = smul.u32 2, %s15
      %p218 = scmp.lt.s32.totalorder %s217, 5
      %s219 = scalar_select %p218, %s217, 5
      %s220 = smul.addr %s219, 8
      %s221 = scalar_lea.vmem %s4, %s220
      %s222 = smul.u32 2, %s15
      %v224 = vld [vmem:[%s215] sm:$0xff]
      %v225 = vld [vmem:[%s215 + $0x8] sm:$0xff]
      %v226 = vpack.c.bf16 %v225, %v224
      %v227 = vld [vmem:[%s2] sm:$0xf]
      %v228 = vld [vmem:[%s2 + $0x4] sm:$0xf]
      %v229 = vld [vmem:[%s2 + $0x8] sm:$0xf]
      %v230 = vld [vmem:[%s2 + $0xc] sm:$0xf]
      %v231 = vld [vmem:[%s3] sm:$0x1]
      %v233 = vlaneseq
      %v234 = vshrl.u32 %v233, 7
      %v235 = vsub.s32 0, %v234
      %v236 = vrot.slane %v231, %v235
      %v242 = vunpack.c.l.b16 %v227
      %v243 = vunpack.c.l.b16 %v228
      %v244 = vunpack.c.l.b16 %v229
      %v245 = vunpack.c.l.b16 %v230
      %v246 = vpack.c.b16 %v243, %v242
      %v247 = vpack.c.b16 %v245, %v244
      %vm250 = vcmask 261120
      %v252 = vsel %vm250, %v226, 0
      %254 = vmatprep.subr.bf16.mxu0 0
      %255 = vmatpush1.bf16.msra.mxu0 0
      %256 = vmatprep.subr.bf16.mxu0 0
      %257 = vmatpush1.bf16.msra.mxu0 0
      %258 = vmatprep.subr.bf16.mxu0 0
      %259 = vmatpush1.bf16.msra.mxu0 0
      %260 = vmatprep.subr.bf16.mxu0 0
      %261 = vmatpush1.bf16.msra.mxu0 0
      %262 = vmatprep.subr.bf16.mxu0 0
      %263 = vmatpush1.bf16.msra.mxu0 0
      %264 = vmatprep.subr.bf16.mxu0 0
      %265 = vmatpush1.bf16.msra.mxu0 0
      %266 = vmatprep.subr.bf16.mxu0 0
      %267 = vmatpush1.bf16.msra.mxu0 %v247
      %268 = vmatprep.subr.bf16.mxu0 0
      %269 = vmatpush1.bf16.msra.mxu0 %v246
      %270 = vmatprep.subr.bf16.mxu0 0
      %271 = vmatpush2.bf16.msra.mxu0 0
      %272 = vmatprep.subr.bf16.mxu0 0
      %273 = vmatpush2.bf16.msra.mxu0 0
      %274 = vmatprep.subr.bf16.mxu0 0
      %275 = vmatpush2.bf16.msra.mxu0 0
      %276 = vmatprep.subr.bf16.mxu0 0
      %277 = vmatpush2.bf16.msra.mxu0 0
      %278 = vmatprep.subr.bf16.mxu0 0
      %279 = vmatpush2.bf16.msra.mxu0 0
      %280 = vmatprep.subr.bf16.mxu0 0
      %281 = vmatpush2.bf16.msra.mxu0 0
      %282 = vmatprep.subr.bf16.mxu0 0
      %283 = vmatpush2.bf16.msra.mxu0 0
      %284 = vmatprep.subr.bf16.mxu0 0
      %285 = vmatpush2.bf16.msra.mxu0 0
      %286 = vmatprep.mubr.bf16.mxu0 0
      %287 = vmatmul.mubr.bf16.gmra.mxu0 %v252
      %v288 = vpop.f32.mrf.mxu0
      %v289 = vadd.f32 %v236, %v288
      %v290 = vpop.f32.mrf.mxu0
      %v291 = vpop.f32.mrf.mxu0
      %v292 = vadd.f32 %v236, %v291
      %v293 = vpop.f32.mrf.mxu0
      %294 = vdwg.mxu0
      %v295 = vld [vmem:[%s209] sm:$0xff]
      %v296 = vld [vmem:[%s209 + $0x8] sm:$0xff]
      %v297 = vadd.f32 %v295, %v289
      %v298 = vadd.f32 %v296, %v292
      %299 = vst.msk [vmem:[%s221] sm:$0xff] %vm250, %v297
      %300 = vst.msk [vmem:[%s221 + $0x8] sm:$0xff] %vm250, %v298
      %s301 = smul.u32 2, %s15
      %p302 = scmp.lt.s32.totalorder %s301, 5
      %s303 = scalar_select %p302, %s301, 5
      %s304 = smul.addr %s303, 8
      %s305 = scalar_lea.vmem %s4, %s304
      // Predicated region
      $region37: #{transformer_forward.10} parent=35 // pred_check
        %p306 = pneg %p127
      $region38: #{transformer_forward.10} parent=35 // pred_check_branch
        %308 = sbr.rel (%p306) target = $region40
      $region39: #{transformer_forward.10} parent=35 // pred_region
        %s309 = smul.u32 2, %s15
      $region40: #{transformer_forward.10} parent=35 // pred_fallthru
        _
    $region36: #{transformer_forward.10} parent=5 // pred_fallthru
      _
    %p310 = scmp.le.s32.totalorder 2, %s10
    // Predicated region
    $region41: #{transformer_forward.10} parent=5 // pred_check
      %p311 = pneg %p310
    $region42: #{transformer_forward.10} parent=5 // pred_check_branch
      %313 = sbr.rel (%p311) target = $region44
    $region43: #{transformer_forward.10} parent=5 // pred_region
      %s314 = ssub.s32 %s10, 2
      // Predicated region
      $region45: #{transformer_forward.10} parent=43 // pred_check
        %p315 = pneg %p133
      $region46: #{transformer_forward.10} parent=43 // pred_check_branch
        %317 = sbr.rel (%p315) target = $region48
      $region47: #{transformer_forward.10} parent=43 // pred_region
        %s318 = smul.u32 2, %s16
        %p319 = scmp.lt.s32.totalorder %s318, 5
        %s320 = scalar_select %p319, %s318, 5
        %s321 = smul.addr %s320, 8
        %s322 = scalar_lea.vmem %s4, %s321
      $region48: #{transformer_forward.10} parent=43 // pred_fallthru
        _
    $region44: #{transformer_forward.10} parent=5 // pred_fallthru
      _
  $region6: #{transformer_forward.10} parent=0 // loop_footer
    %s14 = sadd.s32 1, %s10
  $region7: #{transformer_forward.10} parent=0 // loop_footer_branch
    %9 = sbr.rel target = $region3
  $region8: #{transformer_forward.10} parent=0 // loop_exit
    _

// kernel: transformer_forward.9
$region0: #{transformer_forward.9}
  #allocation0 [shape = 'u32[]', space=smem, size = 0x4, offset = 0x4, fixed_abs, tag = 'smem constant byte address 0x4 - core index']
  #allocation1 [shape = 'u32[144,128]{1,0:T(1,128)}', space=vmem, size = 0x12000, scoped, tag = 'internal scratch']
  %s0 = inlined_call_operand.vmem [shape: f32[32,96], index: 0, kind: input, shape index: {}]
  %s1 = inlined_call_operand.vmem [shape: f32[2,24,96], index: 1, kind: input, shape index: {}, may-alias: {1,2}]
  %s2 = inlined_call_operand.vmem [shape: f32[2,24,96], index: 2, kind: input, shape index: {}, may-alias: {1,2}]
  %s3 = inlined_call_operand.vmem [shape: f32[2,4,24,8], index: 3, kind: input, shape index: {}]
  %s4 = inlined_call_operand.vmem [shape: f32[2,4,24,8], index: 4, kind: input, shape index: {}]
  %s5 = inlined_call_operand.vmem [shape: f32[2,24,32], index: 5, kind: output, shape index: {}]
  %s6 = sld [smem:[#allocation0]]
  $region91: #{transformer_forward.9} parent=0
    _
  %s8 = ssub.s32 1, %s6
  %s9 = scalar_select 0, %s8, %s6
  $region1: #{transformer_forward.9} parent=0
    #allocation2 [shape = 'u8[32768]{0}', space=vmem, size = 0x8000, scoped, tag = 'input window, operand 3']
    loop: start=0, step=1, limit=8
    $region2: #{transformer_forward.9} parent=1 // loop_pre_header
      _
    $region3: #{transformer_forward.9} parent=1 // loop_header
      %s11 = sphi 0, %s15
      %p12 = scmp.ge.s32.totalorder %s11, 8
      %s18 = sphi 0, %s30
      %s19 = sphi 0, %s26
      %s20 = sphi 0, %s18
      %s21 = sphi 0, %s19
      %s22 = sphi 0, %s20
      %s23 = sphi 0, %s21
      %s31 = sphi 0, %s31
      %s33 = sphi 0, %s31
      %s34 = sphi 0, %s33
      %s48 = sphi 0, %s34
      %s56 = sphi 0, %s58
      %s59 = sphi 0, %s56
      %s60 = sphi 0, %s59
      %s76 = sphi 0, %s60
      %s82 = sphi 0, %s84
      %s85 = sphi 0, %s82
      %s86 = sphi 0, %s85
      %s102 = sphi 0, %s86
      %s110 = sphi 0, %s112
      %s113 = sphi 0, %s110
      %s114 = sphi 0, %s113
      %s130 = sphi 0, %s114
      %s136 = sphi 0, %s138
      %s139 = sphi 0, %s136
      %s140 = sphi 0, %s139
      %s156 = sphi 0, %s140
      %s164 = sphi 0, %s166
      %s167 = sphi 0, %s164
      %s168 = sphi 0, %s167
      %s184 = sphi 0, %s168
    $region4: #{transformer_forward.9} parent=1 // loop_header_branch
      %14 = sbr.rel (%p12) target = $region8
    $region5: #{transformer_forward.9} parent=1 // loop_body
      %s16 = ssub.s32 %s11, 1
      %s17 = ssub.s32 %s11, 2
      %s24 = sadd.s32 1, %s19
      %p25 = scmp.ge.s32.totalorder %s24, 3
      %s26 = scalar_select %p25, 0, %s24
      %s27 = sadd.s32 1, %s18
      %s28 = scalar_select %p25, %s27, %s18
      %p29 = scmp.ge.s32.totalorder %s28, 2
      %s30 = scalar_select %p29, 0, %s28
      %s32 = sadd.s32 %s31, 1
      %p35 = scmp.eq.s32.totalorder %s11, 5
      %p36 = scmp.ne.s32.totalorder %s31, %s33
      %p37 = scmp.eq.s32.totalorder %s11, 0
      %p38 = por %p36, %p37
      %p39 = scmp.ne.s32.totalorder %s31, %s33
      %p40 = scmp.eq.s32.totalorder %s16, 5
      %p41 = por %p39, %p40
      %p42 = scmp.ne.s32.totalorder %s33, %s34
      %p43 = scmp.eq.s32.totalorder %s16, 0
      %p44 = por %p42, %p43
      %p45 = scmp.ne.s32.totalorder %s33, %s34
      %p46 = scmp.eq.s32.totalorder %s17, 5
      %p47 = por %p45, %p46
      %p49 = scmp.ne.s32.totalorder %s34, %s48
      %p50 = scmp.eq.s32.totalorder %s17, 0
      %p51 = por %p49, %p50
      %s52 = ssub.s32 %s18, %s30
      %s53 = ssub.s32 %s19, %s26
      %s54 = sor.u32 %s52, %s53
      %p55 = scmp.eq.s32.totalorder %s54, 0
      %s57 = sadd.s32 %s56, 1
      %s58 = scalar_select %p55, %s56, %s57
      %p61 = pneg %p55
      %p62 = scmp.eq.s32.totalorder %s11, 5
      %p63 = por %p61, %p62
      %p64 = scmp.ne.s32.totalorder %s56, %s59
      %p65 = scmp.eq.s32.totalorder %s11, 0
      %p66 = por %p64, %p65
      %p67 = scmp.ne.s32.totalorder %s56, %s59
      %p68 = scmp.eq.s32.totalorder %s16, 5
      %p69 = por %p67, %p68
      %p70 = scmp.ne.s32.totalorder %s59, %s60
      %p71 = scmp.eq.s32.totalorder %s16, 0
      %p72 = por %p70, %p71
      %p73 = scmp.ne.s32.totalorder %s59, %s60
      %p74 = scmp.eq.s32.totalorder %s17, 5
      %p75 = por %p73, %p74
      %p77 = scmp.ne.s32.totalorder %s60, %s76
      %p78 = scmp.eq.s32.totalorder %s17, 0
      %p79 = por %p77, %p78
      %s80 = ssub.s32 %s18, %s30
      %p81 = scmp.eq.s32.totalorder %s80, 0
      %s83 = sadd.s32 %s82, 1
      %s84 = scalar_select %p81, %s82, %s83
      %p87 = pneg %p81
      %p88 = scmp.eq.s32.totalorder %s11, 5
      %p89 = por %p87, %p88
      %p90 = scmp.ne.s32.totalorder %s82, %s85
      %p91 = scmp.eq.s32.totalorder %s11, 0
      %p92 = por %p90, %p91
      %p93 = scmp.ne.s32.totalorder %s82, %s85
      %p94 = scmp.eq.s32.totalorder %s16, 5
      %p95 = por %p93, %p94
      %p96 = scmp.ne.s32.totalorder %s85, %s86
      %p97 = scmp.eq.s32.totalorder %s16, 0
      %p98 = por %p96, %p97
      %p99 = scmp.ne.s32.totalorder %s85, %s86
      %p100 = scmp.eq.s32.totalorder %s17, 5
      %p101 = por %p99, %p100
      %p103 = scmp.ne.s32.totalorder %s86, %s102
      %p104 = scmp.eq.s32.totalorder %s17, 0
      %p105 = por %p103, %p104
      %s106 = ssub.s32 %s18, %s30
      %s107 = ssub.s32 %s19, %s26
      %s108 = sor.u32 %s106, %s107
      %p109 = scmp.eq.s32.totalorder %s108, 0
      %s111 = sadd.s32 %s110, 1
      %s112 = scalar_select %p109, %s110, %s111
      %p115 = pneg %p109
      %p116 = scmp.eq.s32.totalorder %s11, 5
      %p117 = por %p115, %p116
      %p118 = scmp.ne.s32.totalorder %s110, %s113
      %p119 = scmp.eq.s32.totalorder %s11, 0
      %p120 = por %p118, %p119
      %p121 = scmp.ne.s32.totalorder %s110, %s113
      %p122 = scmp.eq.s32.totalorder %s16, 5
      %p123 = por %p121, %p122
      %p124 = scmp.ne.s32.totalorder %s113, %s114
      %p125 = scmp.eq.s32.totalorder %s16, 0
      %p126 = por %p124, %p125
      %p127 = scmp.ne.s32.totalorder %s113, %s114
      %p128 = scmp.eq.s32.totalorder %s17, 5
      %p129 = por %p127, %p128
      %p131 = scmp.ne.s32.totalorder %s114, %s130
      %p132 = scmp.eq.s32.totalorder %s17, 0
      %p133 = por %p131, %p132
      %s134 = ssub.s32 %s18, %s30
      %p135 = scmp.eq.s32.totalorder %s134, 0
      %s137 = sadd.s32 %s136, 1
      %s138 = scalar_select %p135, %s136, %s137
      %p141 = pneg %p135
      %p142 = scmp.eq.s32.totalorder %s11, 5
      %p143 = por %p141, %p142
      %p144 = scmp.ne.s32.totalorder %s136, %s139
      %p145 = scmp.eq.s32.totalorder %s11, 0
      %p146 = por %p144, %p145
      %p147 = scmp.ne.s32.totalorder %s136, %s139
      %p148 = scmp.eq.s32.totalorder %s16, 5
      %p149 = por %p147, %p148
      %p150 = scmp.ne.s32.totalorder %s139, %s140
      %p151 = scmp.eq.s32.totalorder %s16, 0
      %p152 = por %p150, %p151
      %p153 = scmp.ne.s32.totalorder %s139, %s140
      %p154 = scmp.eq.s32.totalorder %s17, 5
      %p155 = por %p153, %p154
      %p157 = scmp.ne.s32.totalorder %s140, %s156
      %p158 = scmp.eq.s32.totalorder %s17, 0
      %p159 = por %p157, %p158
      %s160 = ssub.s32 %s18, %s30
      %s161 = ssub.s32 %s19, %s26
      %s162 = sor.u32 %s160, %s161
      %p163 = scmp.eq.s32.totalorder %s162, 0
      %s165 = sadd.s32 %s164, 1
      %s166 = scalar_select %p163, %s164, %s165
      %p169 = pneg %p163
      %p170 = scmp.eq.s32.totalorder %s11, 5
      %p171 = por %p169, %p170
      %p172 = scmp.ne.s32.totalorder %s164, %s167
      %p173 = scmp.eq.s32.totalorder %s11, 0
      %p174 = por %p172, %p173
      %p175 = scmp.ne.s32.totalorder %s164, %s167
      %p176 = scmp.eq.s32.totalorder %s16, 5
      %p177 = por %p175, %p176
      %p178 = scmp.ne.s32.totalorder %s167, %s168
      %p179 = scmp.eq.s32.totalorder %s16, 0
      %p180 = por %p178, %p179
      %p181 = scmp.ne.s32.totalorder %s167, %s168
      %p182 = scmp.eq.s32.totalorder %s17, 5
      %p183 = por %p181, %p182
      %p185 = scmp.ne.s32.totalorder %s168, %s184
      %p186 = scmp.eq.s32.totalorder %s17, 0
      %p187 = por %p185, %p186
      %p188 = scmp.le.s32.totalorder 1, %s11
      %p189 = scmp.lt.s32.totalorder %s11, 7
      %p190 = pnand %p188, %p189
      %p191 = pneg %p190
      // Predicated region
      $region9: #{transformer_forward.9} parent=5 // pred_check
        _
      $region10: #{transformer_forward.9} parent=5 // pred_check_branch
        %193 = sbr.rel (%p190) target = $region12
      $region11: #{transformer_forward.9} parent=5 // pred_region
        %s194 = ssub.s32 %s11, 1
        // Predicated region
        $region13: #{transformer_forward.9} parent=11 // pred_check
          %p195 = pneg %p44
        $region14: #{transformer_forward.9} parent=11 // pred_check_branch
          %197 = sbr.rel (%p195) target = $region16
        $region15: #{transformer_forward.9} parent=11 // pred_region
          _
        $region16: #{transformer_forward.9} parent=11 // pred_fallthru
          _
      $region12: #{transformer_forward.9} parent=5 // pred_fallthru
        _
      %p198 = scmp.lt.s32.totalorder %s11, 6
      // Predicated region
      $region17: #{transformer_forward.9} parent=5 // pred_check
        %p199 = pneg %p198
      $region18: #{transformer_forward.9} parent=5 // pred_check_branch
        %201 = sbr.rel (%p199) target = $region20
      $region19: #{transformer_forward.9} parent=5 // pred_region
        // Predicated region
        $region21: #{transformer_forward.9} parent=19 // pred_check
          %p202 = pneg %p66
        $region22: #{transformer_forward.9} parent=19 // pred_check_branch
          %204 = sbr.rel (%p202) target = $region24
        $region23: #{transformer_forward.9} parent=19 // pred_region
          %p205 = scmp.lt.s32.totalorder %s18, 1
          %s206 = scalar_select %p205, %s18, 1
          %p207 = scmp.lt.s32.totalorder %s19, 2
          %s208 = scalar_select %p207, %s19, 2
          %s209 = smul.addr %s206, 3
          %s210 = sadd.s32 %s208, %s209
          %s211 = smul.addr %s210, 8
          %s212 = scalar_lea.vmem %s1, %s211
        $region24: #{transformer_forward.9} parent=19 // pred_fallthru
          _
        // Predicated region
        $region25: #{transformer_forward.9} parent=19 // pred_check
          %p213 = pneg %p92
        $region26: #{transformer_forward.9} parent=19 // pred_check_branch
          %215 = sbr.rel (%p213) target = $region28
        $region27: #{transformer_forward.9} parent=19 // pred_region
          %p216 = scmp.lt.s32.totalorder %s18, 1
          %s217 = scalar_select %p216, %s18, 1
          %s218 = smul.addr %s217, 3
          %s219 = smul.addr %s218, 8
          %s220 = scalar_lea.vmem %s2, %s219
        $region28: #{transformer_forward.9} parent=19 // pred_fallthru
          _
        // Predicated region
        $region29: #{transformer_forward.9} parent=19 // pred_check
          %p221 = pneg %p120
        $region30: #{transformer_forward.9} parent=19 // pred_check_branch
          %223 = sbr.rel (%p221) target = $region32
        $region31: #{transformer_forward.9} parent=19 // pred_region
          %s224 = sand.u32 %s110, 1
          %s225 = sand.u32 %s110, 1
          %s226 = smul.addr %s225, 32
          %s227 = scalar_lea.vmem [#allocation2], %s226
          %s228 = smul.addr %s18, 12
          %s229 = sadd.s32 %s19, %s228
          %s230 = smul.addr %s229, 8
          %s231 = scalar_lea.vmem %s3, %s230
          // Predicated region
          $region33: #{transformer_forward.9} parent=31 // pred_check
            _
          $region34: #{transformer_forward.9} parent=31 // pred_check_branch
            %233 = sbr.rel (0) target = $region36
          $region35: #{transformer_forward.9} parent=31 // pred_region
            // Predicated region
            $region37: #{transformer_forward.9} parent=35 // pred_check
              _
            $region38: #{transformer_forward.9} parent=35 // pred_check_branch
              %235 = sbr.rel (0) target = $region40
            $region39: #{transformer_forward.9} parent=35 // pred_region
              // Predicated region
              $region52: #{transformer_forward.9} parent=39 // pred_check
                _
              $region53: #{transformer_forward.9} parent=39 // pred_check_branch
                %257 = sbr.rel (0) target = $region55
              $region54: #{transformer_forward.9} parent=39 // pred_region
                loop: start=0, step=1, limit=1
                $region56: #{transformer_forward.9} parent=54 // loop_pre_header
                  _
                $region57: #{transformer_forward.9} parent=54 // loop_header
                  %s259 = sphi 0, %s263
                  %p260 = scmp.ge.s32.totalorder %s259, 1
                  %s264 = sphi %s231, %s231
                  %s265 = sphi %s227, %s227
                $region58: #{transformer_forward.9} parent=54 // loop_header_branch
                  %262 = sbr.rel (%p260) target = $region62
                $region59: #{transformer_forward.9} parent=54 // loop_body
                  %v266 = vld [vmem:[%s264] sm:$0xff]
                  %267 = vst [vmem:[%s265] sm:$0xff] %v266
                  %v268 = vld [vmem:[%s264 + $0x18] sm:$0xff]
                  %269 = vst [vmem:[%s265 + $0x8] sm:$0xff] %v268
                  %v270 = vld [vmem:[%s264 + $0x30] sm:$0xff]
                  %271 = vst [vmem:[%s265 + $0x10] sm:$0xff] %v270
                  %v272 = vld [vmem:[%s264 + $0x48] sm:$0xff]
                  %273 = vst [vmem:[%s265 + $0x18] sm:$0xff] %v272
                $region60: #{transformer_forward.9} parent=54 // loop_footer
                  %s263 = sadd.s32 1, %s259
                $region61: #{transformer_forward.9} parent=54 // loop_footer_branch
                  %258 = sbr.rel target = $region57
                $region62: #{transformer_forward.9} parent=54 // loop_exit
                  _
              $region55: #{transformer_forward.9} parent=39 // pred_fallthru
                _
              // Predicated region
              $region63: #{transformer_forward.9} parent=39 // pred_check
                _
              $region64: #{transformer_forward.9} parent=39 // pred_check_branch
                %275 = sbr.rel target = $region66
              $region65: #{transformer_forward.9} parent=39 // pred_region
                _
              $region66: #{transformer_forward.9} parent=39 // pred_fallthru
                _
            $region40: #{transformer_forward.9} parent=35 // pred_fallthru
              _
            // Predicated region
            $region41: #{transformer_forward.9} parent=35 // pred_check
              _
            $region42: #{transformer_forward.9} parent=35 // pred_check_branch
              %237 = sbr.rel target = $region44
            $region43: #{transformer_forward.9} parent=35 // pred_region
              %s239 = ssub.s32 256, 1
              loop: start=0, step=1, limit=1
              $region45: #{transformer_forward.9} parent=43 // loop_pre_header
                _
              $region46: #{transformer_forward.9} parent=43 // loop_header
                %s241 = sphi 0, %s245
                %p242 = scmp.ge.s32.totalorder %s241, 1
                %s246 = sphi %s231, %s231
                %s247 = sphi %s227, %s227
              $region47: #{transformer_forward.9} parent=43 // loop_header_branch
                %244 = sbr.rel (%p242) target = $region51
              $region48: #{transformer_forward.9} parent=43 // loop_body
                %v248 = vld [vmem:[%s246] sm:%s239]
                %249 = vst [vmem:[%s247] sm:%s239] %v248
                %v250 = vld [vmem:[%s246 + $0x18] sm:%s239]
                %251 = vst [vmem:[%s247 + $0x8] sm:%s239] %v250
                %v252 = vld [vmem:[%s246 + $0x30] sm:%s239]
                %253 = vst [vmem:[%s247 + $0x10] sm:%s239] %v252
                %v254 = vld [vmem:[%s246 + $0x48] sm:%s239]
                %255 = vst [vmem:[%s247 + $0x18] sm:%s239] %v254
              $region49: #{transformer_forward.9} parent=43 // loop_footer
                %s245 = sadd.s32 1, %s241
              $region50: #{transformer_forward.9} parent=43 // loop_footer_branch
                %240 = sbr.rel target = $region46
              $region51: #{transformer_forward.9} parent=43 // loop_exit
                _
            $region44: #{transformer_forward.9} parent=35 // pred_fallthru
              _
          $region36: #{transformer_forward.9} parent=31 // pred_fallthru
            _
          %276 = vnop
        $region32: #{transformer_forward.9} parent=19 // pred_fallthru
          _
        // Predicated region
        $region67: #{transformer_forward.9} parent=19 // pred_check
          %p277 = pneg %p146
        $region68: #{transformer_forward.9} parent=19 // pred_check_branch
          %279 = sbr.rel (%p277) target = $region70
        $region69: #{transformer_forward.9} parent=19 // pred_region
          %p280 = scmp.lt.s32.totalorder %s18, 1
          %s281 = scalar_select %p280, %s18, 1
          %s282 = smul.addr %s281, 12
          %s283 = smul.addr %s282, 8
          %s284 = scalar_lea.vmem %s4, %s283
        $region70: #{transformer_forward.9} parent=19 // pred_fallthru
          _
      $region20: #{transformer_forward.9} parent=5 // pred_fallthru
        _
      %p285 = scmp.le.s32.totalorder 1, %s11
      %p286 = scmp.lt.s32.totalorder %s11, 7
      %p287 = pnand %p285, %p286
      %p288 = pneg %p287
      // Predicated region
      $region71: #{transformer_forward.9} parent=5 // pred_check
        _
      $region72: #{transformer_forward.9} parent=5 // pred_check_branch
        %290 = sbr.rel (%p287) target = $region74
      $region73: #{transformer_forward.9} parent=5 // pred_region
        %s291 = ssub.s32 %s11, 1
        %s292 = sand.u32 %s113, 1
        %s293 = sand.u32 %s113, 1
        %s294 = smul.addr %s293, 32
        %s295 = scalar_lea.vmem [#allocation2], %s294
        // Predicated region
        $region75: #{transformer_forward.9} parent=73 // pred_check
          %p296 = pneg %p126
        $region76: #{transformer_forward.9} parent=73 // pred_check_branch
          %298 = sbr.rel (%p296) target = $region78
        $region77: #{transformer_forward.9} parent=73 // pred_region
          _
        $region78: #{transformer_forward.9} parent=73 // pred_fallthru
          _
        %p299 = pneg %p44
        %p300 = pneg %p41
        %p301 = scmp.lt.s32.totalorder %s20, 1
        %s302 = scalar_select %p301, %s20, 1
        %p303 = scmp.lt.s32.totalorder %s21, 2
        %s304 = scalar_select %p303, %s21, 2
        %s305 = smul.addr %s302, 3
        %s306 = sadd.s32 %s304, %s305
        %s307 = smul.addr %s306, 8
        %s308 = scalar_lea.vmem %s1, %s307
        %p309 = pneg %p72
        %p310 = pneg %p69
        %p311 = scmp.lt.s32.totalorder %s20, 1
        %s312 = scalar_select %p311, %s20, 1
        %s313 = smul.addr %s312, 3
        %s314 = smul.addr %s313, 8
        %s315 = scalar_lea.vmem %s2, %s314
        %p316 = pneg %p98
        %p317 = pneg %p95
        %s318 = sand.u32 %s113, 1
        %s319 = sand.u32 %s113, 1
        %s320 = smul.addr %s319, 32
        %s321 = scalar_lea.vmem [#allocation2], %s320
        %p322 = pneg %p126
        %p323 = pneg %p123
        %p324 = scmp.lt.s32.totalorder %s20, 1
        %s325 = scalar_select %p324, %s20, 1
        %s326 = smul.addr %s325, 12
        %s327 = smul.addr %s326, 8
        %s328 = scalar_lea.vmem %s4, %s327
        %p329 = pneg %p152
        %p330 = pneg %p149
        %p331 = pneg %p180
        %p332 = pneg %p177
        %p333 = scmp.lt.s32.totalorder %s20, 1
        %s334 = scalar_select %p333, %s20, 1
        %p335 = scmp.lt.s32.totalorder %s21, 2
        %s336 = scalar_select %p335, %s21, 2
        %s337 = smul.addr %s334, 3
        %s338 = sadd.s32 %s336, %s337
        %s339 = smul.addr %s338, 8
        %s340 = scalar_lea.vmem %s5, %s339
        %p341 = scmp.lt.s32.totalorder %s20, 1
        %s342 = scalar_select %p341, %s20, 1
        %p343 = scmp.lt.s32.totalorder %s21, 2
        %s344 = scalar_select %p343, %s21, 2
        %s345 = smul.addr %s342, 3
        %s346 = sadd.s32 %s344, %s345
        %s347 = smul.addr %s346, 8
        %s348 = scalar_lea.vmem %s1, %s347
        %p349 = scmp.lt.s32.totalorder %s20, 1
        %s350 = scalar_select %p349, %s20, 1
        %s351 = smul.addr %s350, 3
        %s352 = smul.addr %s351, 8
        %s353 = scalar_lea.vmem %s2, %s352
        %p354 = scmp.lt.s32.totalorder %s20, 1
        %s355 = scalar_select %p354, %s20, 1
        %s356 = smul.addr %s355, 12
        %s357 = smul.addr %s356, 8
        %s358 = scalar_lea.vmem %s4, %s357
        %p359 = scmp.lt.s32.totalorder %s20, 1
        %s360 = scalar_select %p359, %s20, 1
        %p361 = scmp.lt.s32.totalorder %s21, 2
        %s362 = scalar_select %p361, %s21, 2
        %s363 = smul.addr %s360, 3
        %s364 = sadd.s32 %s362, %s363
        %s365 = smul.addr %s364, 8
        %s366 = scalar_lea.vmem %s5, %s365
        %v368 = vld [vmem:[%s348] sm:$0xff]
        %v369 = vpack.c.bf16 %v368, %v368
        %v370 = vld [vmem:[%s353] sm:$0xff]
        %v371 = vld [vmem:[%s353 + $0x8] sm:$0xff]
        %v372 = vld [vmem:[%s353 + $0x10] sm:$0xff]
        %v373 = vpack.c.bf16 %v371, %v370
        %v374 = vpack.c.bf16 %v372, %v372
        %377 = vrot.lane.b32.xlu0 %v373, 96
        %v378 = vpop.permute.xlu0 %377
        %379 = vrot.lane.b32.xlu0 %v374, 96
        %v380 = vpop.permute.xlu0 %379
        %vm381 = vcmask 64512
        %v383 = vsel %vm381, %v369, 0
        %v386 = vsel %vm381, %v378, 0
        %v389 = vsel %vm381, %v380, 0
        %391 = vmatprep.subr.bf16.mxu0 0
        %392 = vmatpush1.bf16.xpose.msra.mxu0 0
        %393 = vmatprep.subr.bf16.mxu0 0
        %394 = vmatpush1.bf16.xpose.msra.mxu0 0
        %395 = vmatprep.subr.bf16.mxu0 0
        %396 = vmatpush1.bf16.xpose.msra.mxu0 0
        %397 = vmatprep.subr.bf16.mxu0 0
        %398 = vmatpush1.bf16.xpose.msra.mxu0 0
        %399 = vmatprep.subr.bf16.mxu0 0
        %400 = vmatpush1.bf16.xpose.msra.mxu0 0
        %401 = vmatprep.subr.bf16.mxu0 0
        %402 = vmatpush1.bf16.xpose.msra.mxu0 0
        %403 = vmatprep.subr.bf16.mxu0 0
        %404 = vmatpush1.bf16.xpose.msra.mxu0 %v389
        %405 = vmatprep.subr.bf16.mxu0 0
        %406 = vmatpush1.bf16.xpose.msra.mxu0 %v386
        %407 = vmatprep.subr.bf16.mxu0 0
        %408 = vmatpush2.bf16.xpose.msra.mxu0 0
        %409 = vmatprep.subr.bf16.mxu0 0
        %410 = vmatpush2.bf16.xpose.msra.mxu0 0
        %411 = vmatprep.subr.bf16.mxu0 0
        %412 = vmatpush2.bf16.xpose.msra.mxu0 0
        %413 = vmatprep.subr.bf16.mxu0 0
        %414 = vmatpush2.bf16.xpose.msra.mxu0 0
        %415 = vmatprep.subr.bf16.mxu0 0
        %416 = vmatpush2.bf16.xpose.msra.mxu0 0
        %417 = vmatprep.subr.bf16.mxu0 0
        %418 = vmatpush2.bf16.xpose.msra.mxu0 0
        %419 = vmatprep.subr.bf16.mxu0 0
        %420 = vmatpush2.bf16.xpose.msra.mxu0 0
        %421 = vmatprep.subr.bf16.mxu0 0
        %422 = vmatpush2.bf16.xpose.msra.mxu0 0
        %423 = vmatprep.mubr.bf16.mxu0 0
        %424 = vmatmul.mubr.bf16.gmra.mxu0 %v383
        %v425 = vpop.f32.mrf.mxu0
        %v426 = vadd.f32 0.0, %v425
        %v427 = vpop.f32.mrf.mxu0
        %v428 = vpop.f32.mrf.mxu0
        %v429 = vpop.f32.mrf.mxu0
        %430 = vdwg.mxu0
        %v431 = vld [vmem:[%s348] sm:$0xff]
        %v432 = vpack.c.bf16 %v431, %v431
        %v433 = vld [vmem:[%s353] sm:$0xff]
        %v434 = vld [vmem:[%s353 + $0x8] sm:$0xff]
        %v435 = vld [vmem:[%s353 + $0x10] sm:$0xff]
        %v436 = vpack.c.bf16 %v434, %v433
        %v437 = vpack.c.bf16 %v435, %v435
        %439 = vrot.lane.b32.xlu0 %v432, 120
        %v440 = vpop.permute.xlu0 %439
        %443 = vrot.lane.b32.xlu0 %v436, 88
        %v444 = vpop.permute.xlu0 %443
        %445 = vrot.lane.b32.xlu0 %v437, 88
        %v446 = vpop.permute.xlu0 %445
        %v448 = vsel %vm381, %v440, 0
        %v451 = vsel %vm381, %v444, 0
        %v454 = vsel %vm381, %v446, 0
        %456 = vmatprep.subr.bf16.mxu0 0
        %457 = vmatpush1.bf16.xpose.msra.mxu0 0
        %458 = vmatprep.subr.bf16.mxu0 0
        %459 = vmatpush1.bf16.xpose.msra.mxu0 0
        %460 = vmatprep.subr.bf16.mxu0 0
        %461 = vmatpush1.bf16.xpose.msra.mxu0 0
        %462 = vmatprep.subr.bf16.mxu0 0
        %463 = vmatpush1.bf16.xpose.msra.mxu0 0
        %464 = vmatprep.subr.bf16.mxu0 0
        %465 = vmatpush1.bf16.xpose.msra.mxu0 0
        %466 = vmatprep.subr.bf16.mxu0 0
        %467 = vmatpush1.bf16.xpose.msra.mxu0 0
        %468 = vmatprep.subr.bf16.mxu0 0
        %469 = vmatpush1.bf16.xpose.msra.mxu0 %v454
        %470 = vmatprep.subr.bf16.mxu0 0
        %471 = vmatpush1.bf16.xpose.msra.mxu0 %v451
        %472 = vmatprep.subr.bf16.mxu0 0
        %473 = vmatpush2.bf16.xpose.msra.mxu0 0
        %474 = vmatprep.subr.bf16.mxu0 0
        %475 = vmatpush2.bf16.xpose.msra.mxu0 0
        %476 = vmatprep.subr.bf16.mxu0 0
        %477 = vmatpush2.bf16.xpose.msra.mxu0 0
        %478 = vmatprep.subr.bf16.mxu0 0
        %479 = vmatpush2.bf16.xpose.msra.mxu0 0
        %480 = vmatprep.subr.bf16.mxu0 0
        %481 = vmatpush2.bf16.xpose.msra.mxu0 0
        %482 = vmatprep.subr.bf16.mxu0 0
        %483 = vmatpush2.bf16.xpose.msra.mxu0 0
        %484 = vmatprep.subr.bf16.mxu0 0
        %485 = vmatpush2.bf16.xpose.msra.mxu0 0
        %486 = vmatprep.subr.bf16.mxu0 0
        %487 = vmatpush2.bf16.xpose.msra.mxu0 0
        %488 = vmatprep.mubr.bf16.mxu0 0
        %489 = vmatmul.mubr.bf16.gmra.mxu0 %v448
        %v490 = vpop.f32.mrf.mxu0
        %v491 = vadd.f32 0.0, %v490
        %v492 = vpop.f32.mrf.mxu0
        %v493 = vpop.f32.mrf.mxu0
        %v494 = vpop.f32.mrf.mxu0
        %495 = vdwg.mxu0
        %v496 = vld [vmem:[%s348] sm:$0xff]
        %v497 = vpack.c.bf16 %v496, %v496
        %v498 = vld [vmem:[%s353] sm:$0xff]
        %v499 = vld [vmem:[%s353 + $0x8] sm:$0xff]
        %v500 = vld [vmem:[%s353 + $0x10] sm:$0xff]
        %v501 = vpack.c.bf16 %v499, %v498
        %v502 = vpack.c.bf16 %v500, %v500
        %504 = vrot.lane.b32.xlu0 %v497, 112
        %v505 = vpop.permute.xlu0 %504
        %508 = vrot.lane.b32.xlu0 %v501, 80
        %v509 = vpop.permute.xlu0 %508
        %510 = vrot.lane.b32.xlu0 %v502, 80
        %v511 = vpop.permute.xlu0 %510
        %v513 = vsel %vm381, %v505, 0
        %v516 = vsel %vm381, %v509, 0
        %v519 = vsel %vm381, %v511, 0
        %521 = vmatprep.subr.bf16.mxu0 0
        %522 = vmatpush1.bf16.xpose.msra.mxu0 0
        %523 = vmatprep.subr.bf16.mxu0 0
        %524 = vmatpush1.bf16.xpose.msra.mxu0 0
        %525 = vmatprep.subr.bf16.mxu0 0
        %526 = vmatpush1.bf16.xpose.msra.mxu0 0
        %527 = vmatprep.subr.bf16.mxu0 0
        %528 = vmatpush1.bf16.xpose.msra.mxu0 0
        %529 = vmatprep.subr.bf16.mxu0 0
        %530 = vmatpush1.bf16.xpose.msra.mxu0 0
        %531 = vmatprep.subr.bf16.mxu0 0
        %532 = vmatpush1.bf16.xpose.msra.mxu0 0
        %533 = vmatprep.subr.bf16.mxu0 0
        %534 = vmatpush1.bf16.xpose.msra.mxu0 %v519
        %535 = vmatprep.subr.bf16.mxu0 0
        %536 = vmatpush1.bf16.xpose.msra.mxu0 %v516
        %537 = vmatprep.subr.bf16.mxu0 0
        %538 = vmatpush2.bf16.xpose.msra.mxu0 0
        %539 = vmatprep.subr.bf16.mxu0 0
        %540 = vmatpush2.bf16.xpose.msra.mxu0 0
        %541 = vmatprep.subr.bf16.mxu0 0
        %542 = vmatpush2.bf16.xpose.msra.mxu0 0
        %543 = vmatprep.subr.bf16.mxu0 0
        %544 = vmatpush2.bf16.xpose.msra.mxu0 0
        %545 = vmatprep.subr.bf16.mxu0 0
        %546 = vmatpush2.bf16.xpose.msra.mxu0 0
        %547 = vmatprep.subr.bf16.mxu0 0
        %548 = vmatpush2.bf16.xpose.msra.mxu0 0
        %549 = vmatprep.subr.bf16.mxu0 0
        %550 = vmatpush2.bf16.xpose.msra.mxu0 0
        %551 = vmatprep.subr.bf16.mxu0 0
        %552 = vmatpush2.bf16.xpose.msra.mxu0 0
        %553 = vmatprep.mubr.bf16.mxu0 0
        %554 = vmatmul.mubr.bf16.gmra.mxu0 %v513
        %v555 = vpop.f32.mrf.mxu0
        %v556 = vadd.f32 0.0, %v555
        %v557 = vpop.f32.mrf.mxu0
        %v558 = vpop.f32.mrf.mxu0
        %v559 = vpop.f32.mrf.mxu0
        %560 = vdwg.mxu0
        %v561 = vld [vmem:[%s348] sm:$0xff]
        %v562 = vpack.c.bf16 %v561, %v561
        %v563 = vld [vmem:[%s353] sm:$0xff]
        %v564 = vld [vmem:[%s353 + $0x8] sm:$0xff]
        %v565 = vld [vmem:[%s353 + $0x10] sm:$0xff]
        %v566 = vpack.c.bf16 %v564, %v563
        %v567 = vpack.c.bf16 %v565, %v565
        %569 = vrot.lane.b32.xlu0 %v562, 104
        %v570 = vpop.permute.xlu0 %569
        %573 = vrot.lane.b32.xlu0 %v566, 72
        %v574 = vpop.permute.xlu0 %573
        %575 = vrot.lane.b32.xlu0 %v567, 72
        %v576 = vpop.permute.xlu0 %575
        %v578 = vsel %vm381, %v570, 0
        %v581 = vsel %vm381, %v574, 0
        %v584 = vsel %vm381, %v576, 0
        %586 = vmatprep.subr.bf16.mxu0 0
        %587 = vmatpush1.bf16.xpose.msra.mxu0 0
        %588 = vmatprep.subr.bf16.mxu0 0
        %589 = vmatpush1.bf16.xpose.msra.mxu0 0
        %590 = vmatprep.subr.bf16.mxu0 0
        %591 = vmatpush1.bf16.xpose.msra.mxu0 0
        %592 = vmatprep.subr.bf16.mxu0 0
        %593 = vmatpush1.bf16.xpose.msra.mxu0 0
        %594 = vmatprep.subr.bf16.mxu0 0
        %595 = vmatpush1.bf16.xpose.msra.mxu0 0
        %596 = vmatprep.subr.bf16.mxu0 0
        %597 = vmatpush1.bf16.xpose.msra.mxu0 0
        %598 = vmatprep.subr.bf16.mxu0 0
        %599 = vmatpush1.bf16.xpose.msra.mxu0 %v584
        %600 = vmatprep.subr.bf16.mxu0 0
        %601 = vmatpush1.bf16.xpose.msra.mxu0 %v581
        %602 = vmatprep.subr.bf16.mxu0 0
        %603 = vmatpush2.bf16.xpose.msra.mxu0 0
        %604 = vmatprep.subr.bf16.mxu0 0
        %605 = vmatpush2.bf16.xpose.msra.mxu0 0
        %606 = vmatprep.subr.bf16.mxu0 0
        %607 = vmatpush2.bf16.xpose.msra.mxu0 0
        %608 = vmatprep.subr.bf16.mxu0 0
        %609 = vmatpush2.bf16.xpose.msra.mxu0 0
        %610 = vmatprep.subr.bf16.mxu0 0
        %611 = vmatpush2.bf16.xpose.msra.mxu0 0
        %612 = vmatprep.subr.bf16.mxu0 0
        %613 = vmatpush2.bf16.xpose.msra.mxu0 0
        %614 = vmatprep.subr.bf16.mxu0 0
        %615 = vmatpush2.bf16.xpose.msra.mxu0 0
        %616 = vmatprep.subr.bf16.mxu0 0
        %617 = vmatpush2.bf16.xpose.msra.mxu0 0
        %618 = vmatprep.mubr.bf16.mxu0 0
        %619 = vmatmul.mubr.bf16.gmra.mxu0 %v578
        %v620 = vpop.f32.mrf.mxu0
        %v621 = vadd.f32 0.0, %v620
        %v622 = vpop.f32.mrf.mxu0
        %v623 = vpop.f32.mrf.mxu0
        %v624 = vpop.f32.mrf.mxu0
        %625 = vdwg.mxu0
        %v626 = vmul.f32 %v426, %v426
        %v627 = vmul.f32 %v491, %v491
        %v628 = vmul.f32 %v556, %v556
        %v629 = vmul.f32 %v621, %v621
        %v630 = vld [vmem:[%s295] sm:$0xff]
        %v631 = vpack.c.bf16 %v630, %v630
        %v632 = vld [vmem:[%s358] sm:$0xff]
        %v633 = vld [vmem:[%s358 + $0x8] sm:$0xff]
        %v634 = vld [vmem:[%s358 + $0x10] sm:$0xff]
        %v635 = vpack.c.bf16 %v633, %v632
        %v636 = vpack.c.bf16 %v634, %v634
        %v638 = vsel %vm381, %v631, 0
        %v641 = vsel %vm381, %v635, 0
        %v644 = vsel %vm381, %v636, 0
        %646 = vmatprep.subr.bf16.mxu0 0
        %647 = vmatpush1.bf16.xpose.msra.mxu0 0
        %648 = vmatprep.subr.bf16.mxu0 0
        %649 = vmatpush1.bf16.xpose.msra.mxu0 0
        %650 = vmatprep.subr.bf16.mxu0 0
        %651 = vmatpush1.bf16.xpose.msra.mxu0 0
        %652 = vmatprep.subr.bf16.mxu0 0
        %653 = vmatpush1.bf16.xpose.msra.mxu0 0
        %654 = vmatprep.subr.bf16.mxu0 0
        %655 = vmatpush1.bf16.xpose.msra.mxu0 0
        %656 = vmatprep.subr.bf16.mxu0 0
        %657 = vmatpush1.bf16.xpose.msra.mxu0 0
        %658 = vmatprep.subr.bf16.mxu0 0
        %659 = vmatpush1.bf16.xpose.msra.mxu0 %v644
        %660 = vmatprep.subr.bf16.mxu0 0
        %661 = vmatpush1.bf16.xpose.msra.mxu0 %v641
        %662 = vmatprep.subr.bf16.mxu0 0
        %663 = vmatpush2.bf16.xpose.msra.mxu0 0
        %664 = vmatprep.subr.bf16.mxu0 0
        %665 = vmatpush2.bf16.xpose.msra.mxu0 0
        %666 = vmatprep.subr.bf16.mxu0 0
        %667 = vmatpush2.bf16.xpose.msra.mxu0 0
        %668 = vmatprep.subr.bf16.mxu0 0
        %669 = vmatpush2.bf16.xpose.msra.mxu0 0
        %670 = vmatprep.subr.bf16.mxu0 0
        %671 = vmatpush2.bf16.xpose.msra.mxu0 0
        %672 = vmatprep.subr.bf16.mxu0 0
        %673 = vmatpush2.bf16.xpose.msra.mxu0 0
        %674 = vmatprep.subr.bf16.mxu0 0
        %675 = vmatpush2.bf16.xpose.msra.mxu0 0
        %676 = vmatprep.subr.bf16.mxu0 0
        %677 = vmatpush2.bf16.xpose.msra.mxu0 0
        %678 = vmatprep.mubr.bf16.mxu0 0
        %679 = vmatmul.mubr.bf16.gmra.mxu0 %v638
        %v680 = vpop.f32.mrf.mxu0
        %v681 = vadd.f32 0.0, %v680
        %v682 = vpop.f32.mrf.mxu0
        %v683 = vpop.f32.mrf.mxu0
        %v684 = vpop.f32.mrf.mxu0
        %685 = vdwg.mxu0
        %v686 = vmul.f32 %v681, %v681
        %s687 = scalar_lea.vmem %s295, 8 [#allocation2]
        %v688 = vld [vmem:[%s687] sm:$0xff]
        %v689 = vpack.c.bf16 %v688, %v688
        %s690 = scalar_lea.vmem %s358, 24
        %v691 = vld [vmem:[%s690] sm:$0xff]
        %v692 = vld [vmem:[%s690 + $0x8] sm:$0xff]
        %v693 = vld [vmem:[%s690 + $0x10] sm:$0xff]
        %v694 = vpack.c.bf16 %v692, %v691
        %v695 = vpack.c.bf16 %v693, %v693
        %v697 = vsel %vm381, %v689, 0
        %v700 = vsel %vm381, %v694, 0
        %v703 = vsel %vm381, %v695, 0
        %705 = vmatprep.subr.bf16.mxu0 0
        %706 = vmatpush1.bf16.xpose.msra.mxu0 0
        %707 = vmatprep.subr.bf16.mxu0 0
        %708 = vmatpush1.bf16.xpose.msra.mxu0 0
        %709 = vmatprep.subr.bf16.mxu0 0
        %710 = vmatpush1.bf16.xpose.msra.mxu0 0
        %711 = vmatprep.subr.bf16.mxu0 0
        %712 = vmatpush1.bf16.xpose.msra.mxu0 0
        %713 = vmatprep.subr.bf16.mxu0 0
        %714 = vmatpush1.bf16.xpose.msra.mxu0 0
        %715 = vmatprep.subr.bf16.mxu0 0
        %716 = vmatpush1.bf16.xpose.msra.mxu0 0
        %717 = vmatprep.subr.bf16.mxu0 0
        %718 = vmatpush1.bf16.xpose.msra.mxu0 %v703
        %719 = vmatprep.subr.bf16.mxu0 0
        %720 = vmatpush1.bf16.xpose.msra.mxu0 %v700
        %721 = vmatprep.subr.bf16.mxu0 0
        %722 = vmatpush2.bf16.xpose.msra.mxu0 0
        %723 = vmatprep.subr.bf16.mxu0 0
        %724 = vmatpush2.bf16.xpose.msra.mxu0 0
        %725 = vmatprep.subr.bf16.mxu0 0
        %726 = vmatpush2.bf16.xpose.msra.mxu0 0
        %727 = vmatprep.subr.bf16.mxu0 0
        %728 = vmatpush2.bf16.xpose.msra.mxu0 0
        %729 = vmatprep.subr.bf16.mxu0 0
        %730 = vmatpush2.bf16.xpose.msra.mxu0 0
        %731 = vmatprep.subr.bf16.mxu0 0
        %732 = vmatpush2.bf16.xpose.msra.mxu0 0
        %733 = vmatprep.subr.bf16.mxu0 0
        %734 = vmatpush2.bf16.xpose.msra.mxu0 0
        %735 = vmatprep.subr.bf16.mxu0 0
        %736 = vmatpush2.bf16.xpose.msra.mxu0 0
        %737 = vmatprep.mubr.bf16.mxu0 0
        %738 = vmatmul.mubr.bf16.gmra.mxu0 %v697
        %v739 = vpop.f32.mrf.mxu0
        %v740 = vadd.f32 0.0, %v739
        %v741 = vpop.f32.mrf.mxu0
        %v742 = vpop.f32.mrf.mxu0
        %v743 = vpop.f32.mrf.mxu0
        %744 = vdwg.mxu0
        %v745 = vmul.f32 %v740, %v740
        %s746 = scalar_lea.vmem %s295, 16 [#allocation2]
        %v747 = vld [vmem:[%s746] sm:$0xff]
        %v748 = vpack.c.bf16 %v747, %v747
        %s749 = scalar_lea.vmem %s358, 48
        %v750 = vld [vmem:[%s749] sm:$0xff]
        %v751 = vld [vmem:[%s749 + $0x8] sm:$0xff]
        %v752 = vld [vmem:[%s749 + $0x10] sm:$0xff]
        %v753 = vpack.c.bf16 %v751, %v750
        %v754 = vpack.c.bf16 %v752, %v752
        %v756 = vsel %vm381, %v748, 0
        %v759 = vsel %vm381, %v753, 0
        %v762 = vsel %vm381, %v754, 0
        %764 = vmatprep.subr.bf16.mxu0 0
        %765 = vmatpush1.bf16.xpose.msra.mxu0 0
        %766 = vmatprep.subr.bf16.mxu0 0
        %767 = vmatpush1.bf16.xpose.msra.mxu0 0
        %768 = vmatprep.subr.bf16.mxu0 0
        %769 = vmatpush1.bf16.xpose.msra.mxu0 0
        %770 = vmatprep.subr.bf16.mxu0 0
        %771 = vmatpush1.bf16.xpose.msra.mxu0 0
        %772 = vmatprep.subr.bf16.mxu0 0
        %773 = vmatpush1.bf16.xpose.msra.mxu0 0
        %774 = vmatprep.subr.bf16.mxu0 0
        %775 = vmatpush1.bf16.xpose.msra.mxu0 0
        %776 = vmatprep.subr.bf16.mxu0 0
        %777 = vmatpush1.bf16.xpose.msra.mxu0 %v762
        %778 = vmatprep.subr.bf16.mxu0 0
        %779 = vmatpush1.bf16.xpose.msra.mxu0 %v759
        %780 = vmatprep.subr.bf16.mxu0 0
        %781 = vmatpush2.bf16.xpose.msra.mxu0 0
        %782 = vmatprep.subr.bf16.mxu0 0
        %783 = vmatpush2.bf16.xpose.msra.mxu0 0
        %784 = vmatprep.subr.bf16.mxu0 0
        %785 = vmatpush2.bf16.xpose.msra.mxu0 0
        %786 = vmatprep.subr.bf16.mxu0 0
        %787 = vmatpush2.bf16.xpose.msra.mxu0 0
        %788 = vmatprep.subr.bf16.mxu0 0
        %789 = vmatpush2.bf16.xpose.msra.mxu0 0
        %790 = vmatprep.subr.bf16.mxu0 0
        %791 = vmatpush2.bf16.xpose.msra.mxu0 0
        %792 = vmatprep.subr.bf16.mxu0 0
        %793 = vmatpush2.bf16.xpose.msra.mxu0 0
        %794 = vmatprep.subr.bf16.mxu0 0
        %795 = vmatpush2.bf16.xpose.msra.mxu0 0
        %796 = vmatprep.mubr.bf16.mxu0 0
        %797 = vmatmul.mubr.bf16.gmra.mxu0 %v756
        %v798 = vpop.f32.mrf.mxu0
        %v799 = vadd.f32 0.0, %v798
        %v800 = vpop.f32.mrf.mxu0
        %v801 = vpop.f32.mrf.mxu0
        %v802 = vpop.f32.mrf.mxu0
        %803 = vdwg.mxu0
        %v804 = vmul.f32 %v799, %v799
        %s805 = scalar_lea.vmem %s295, 24 [#allocation2]
        %v806 = vld [vmem:[%s805] sm:$0xff]
        %v807 = vpack.c.bf16 %v806, %v806
        %s808 = scalar_lea.vmem %s358, 72
        %v809 = vld [vmem:[%s808] sm:$0xff]
        %v810 = vld [vmem:[%s808 + $0x8] sm:$0xff]
        %v811 = vld [vmem:[%s808 + $0x10] sm:$0xff]
        %v812 = vpack.c.bf16 %v810, %v809
        %v813 = vpack.c.bf16 %v811, %v811
        %v815 = vsel %vm381, %v807, 0
        %v818 = vsel %vm381, %v812, 0
        %v821 = vsel %vm381, %v813, 0
        %823 = vmatprep.subr.bf16.mxu0 0
        %824 = vmatpush1.bf16.xpose.msra.mxu0 0
        %825 = vmatprep.subr.bf16.mxu0 0
        %826 = vmatpush1.bf16.xpose.msra.mxu0 0
        %827 = vmatprep.subr.bf16.mxu0 0
        %828 = vmatpush1.bf16.xpose.msra.mxu0 0
        %829 = vmatprep.subr.bf16.mxu0 0
        %830 = vmatpush1.bf16.xpose.msra.mxu0 0
        %831 = vmatprep.subr.bf16.mxu0 0
        %832 = vmatpush1.bf16.xpose.msra.mxu0 0
        %833 = vmatprep.subr.bf16.mxu0 0
        %834 = vmatpush1.bf16.xpose.msra.mxu0 0
        %835 = vmatprep.subr.bf16.mxu0 0
        %836 = vmatpush1.bf16.xpose.msra.mxu0 %v821
        %837 = vmatprep.subr.bf16.mxu0 0
        %838 = vmatpush1.bf16.xpose.msra.mxu0 %v818
        %839 = vmatprep.subr.bf16.mxu0 0
        %840 = vmatpush2.bf16.xpose.msra.mxu0 0
        %841 = vmatprep.subr.bf16.mxu0 0
        %842 = vmatpush2.bf16.xpose.msra.mxu0 0
        %843 = vmatprep.subr.bf16.mxu0 0
        %844 = vmatpush2.bf16.xpose.msra.mxu0 0
        %845 = vmatprep.subr.bf16.mxu0 0
        %846 = vmatpush2.bf16.xpose.msra.mxu0 0
        %847 = vmatprep.subr.bf16.mxu0 0
        %848 = vmatpush2.bf16.xpose.msra.mxu0 0
        %849 = vmatprep.subr.bf16.mxu0 0
        %850 = vmatpush2.bf16.xpose.msra.mxu0 0
        %851 = vmatprep.subr.bf16.mxu0 0
        %852 = vmatpush2.bf16.xpose.msra.mxu0 0
        %853 = vmatprep.subr.bf16.mxu0 0
        %854 = vmatpush2.bf16.xpose.msra.mxu0 0
        %855 = vmatprep.mubr.bf16.mxu0 0
        %856 = vmatmul.mubr.bf16.gmra.mxu0 %v815
        %v857 = vpop.f32.mrf.mxu0
        %v858 = vadd.f32 0.0, %v857
        %v859 = vpop.f32.mrf.mxu0
        %v860 = vpop.f32.mrf.mxu0
        %v861 = vpop.f32.mrf.mxu0
        %862 = vdwg.mxu0
        %v863 = vmul.f32 %v858, %v858
        %v864 = vld [vmem:[%s0] sm:$0xff]
        %v865 = vld [vmem:[%s0 + $0x8] sm:$0xff]
        %v866 = vld [vmem:[%s0 + $0x10] sm:$0xff]
        %v867 = vld [vmem:[%s0 + $0x18] sm:$0xff]
        %vm868 = vcmask 785408
        %v870 = vsel %vm868, %v864, 0
        %v873 = vsel %vm868, %v865, 0
        %v876 = vsel %vm868, %v866, 0
        %v879 = vsel %vm868, %v867, 0
        %881 = vmatprep.subr.mxu0 0.0
        %882 = vmatpush1.msra.mxu0 0.0
        %883 = vmatprep.subr.mxu0 0.0
        %884 = vmatpush1.msra.mxu0 0.0
        %885 = vmatprep.subr.mxu0 0.0
        %886 = vmatpush1.msra.mxu0 0.0
        %887 = vmatprep.subr.mxu0 0.0
        %888 = vmatpush1.msra.mxu0 0.0
        %889 = vmatprep.subr.mxu0 0.0
        %890 = vmatpush1.msra.mxu0 %v863
        %891 = vmatprep.subr.mxu0 0.0
        %892 = vmatpush1.msra.mxu0 %v804
        %893 = vmatprep.subr.mxu0 0.0
        %894 = vmatpush1.msra.mxu0 %v745
        %895 = vmatprep.subr.mxu0 0.0
        %896 = vmatpush1.msra.mxu0 %v686
        %897 = vmatprep.subr.mxu0 0.0
        %898 = vmatpush1.msra.mxu0 %v629
        %899 = vmatprep.subr.mxu0 0.0
        %900 = vmatpush1.msra.mxu0 %v628
        %901 = vmatprep.subr.mxu0 0.0
        %902 = vmatpush1.msra.mxu0 %v627
        %903 = vmatprep.subr.mxu0 0.0
        %904 = vmatpush1.msra.mxu0 %v626
        %905 = vmatprep.subr.mxu0 0.0
        %906 = vmatpush1.msra.mxu0 %v621
        %907 = vmatprep.subr.mxu0 0.0
        %908 = vmatpush1.msra.mxu0 %v556
        %909 = vmatprep.subr.mxu0 0.0
        %910 = vmatpush1.msra.mxu0 %v491
        %911 = vmatprep.subr.mxu0 0.0
        %912 = vmatpush1.msra.mxu0 %v426
        %913 = vmatprep.subr.mxu0 0.0
        %914 = vmatpush2.msra.mxu0 0.0
        %915 = vmatprep.subr.mxu0 0.0
        %916 = vmatpush2.msra.mxu0 0.0
        %917 = vmatprep.subr.mxu0 0.0
        %918 = vmatpush2.msra.mxu0 0.0
        %919 = vmatprep.subr.mxu0 0.0
        %920 = vmatpush2.msra.mxu0 0.0
        %921 = vmatprep.subr.mxu0 0.0
        %922 = vmatpush2.msra.mxu0 0.0
        %923 = vmatprep.subr.mxu0 0.0
        %924 = vmatpush2.msra.mxu0 0.0
        %925 = vmatprep.subr.mxu0 0.0
        %926 = vmatpush2.msra.mxu0 0.0
        %927 = vmatprep.subr.mxu0 0.0
        %928 = vmatpush2.msra.mxu0 0.0
        %929 = vmatprep.subr.mxu0 0.0
        %930 = vmatpush2.msra.mxu0 0.0
        %931 = vmatprep.subr.mxu0 0.0
        %932 = vmatpush2.msra.mxu0 0.0
        %933 = vmatprep.subr.mxu0 0.0
        %934 = vmatpush2.msra.mxu0 0.0
        %935 = vmatprep.subr.mxu0 0.0
        %936 = vmatpush2.msra.mxu0 0.0
        %937 = vmatprep.subr.mxu0 0.0
        %938 = vmatpush2.msra.mxu0 0.0
        %939 = vmatprep.subr.mxu0 0.0
        %940 = vmatpush2.msra.mxu0 0.0
        %941 = vmatprep.subr.mxu0 0.0
        %942 = vmatpush2.msra.mxu0 0.0
        %943 = vmatprep.subr.mxu0 0.0
        %944 = vmatpush2.msra.mxu0 0.0
        %945 = vmatprep.mubr.f32.mxu0 0.0
        %946 = vmatmul.mubr.f32.gmra.mxu0 %v870
        %v947 = vpop.f32.mrf.mxu0
        %v948 = vadd.f32 0.0, %v947
        %v949 = vpop.f32.mrf.mxu0
        %950 = vmatprep.mubr.f32.mxu0 0.0
        %951 = vmatmul.mubr.f32.gmra.mxu0 %v873
        %v952 = vpop.f32.mrf.mxu0
        %v953 = vadd.f32 0.0, %v952
        %v954 = vpop.f32.mrf.mxu0
        %955 = vmatprep.mubr.f32.mxu0 0.0
        %956 = vmatmul.mubr.f32.gmra.mxu0 %v876
        %v957 = vpop.f32.mrf.mxu0
        %v958 = vadd.f32 0.0, %v957
        %v959 = vpop.f32.mrf.mxu0
        %960 = vmatprep.mubr.f32.mxu0 0.0
        %961 = vmatmul.mubr.f32.gmra.mxu0 %v879
        %v962 = vpop.f32.mrf.mxu0
        %v963 = vadd.f32 0.0, %v962
        %v964 = vpop.f32.mrf.mxu0
        %965 = vdwg.mxu0
        %vm966 = vcmask 195584
        %v967 = vsel %vm966, %v948, -inf
        %968 = vmax.xlane.f32.xlu0 %v967
        %v969 = vpop.xlane.xlu0 %968
        %v970 = vsel %vm966, %v953, -inf
        %971 = vmax.xlane.f32.xlu0 %v970
        %v972 = vpop.xlane.xlu0 %971
        %v973 = vsel %vm966, %v958, -inf
        %974 = vmax.xlane.f32.xlu0 %v973
        %v975 = vpop.xlane.xlu0 %974
        %v976 = vsel %vm966, %v963, -inf
        %977 = vmax.xlane.f32.xlu0 %v976
        %v978 = vpop.xlane.xlu0 %977
        %v979 = vsub.f32 %v948, %v969
        %v980 = vsub.f32 %v953, %v972
        %v981 = vsub.f32 %v958, %v975
        %v982 = vsub.f32 %v963, %v978
        %v983 = vmul.f32 %v979, 1.442695
        %v984 = vpow.pop %v983
        %v985 = vmul.f32 %v980, 1.442695
        %v986 = vpow.pop %v985
        %v987 = vmul.f32 %v981, 1.442695
        %v988 = vpow.pop %v987
        %v989 = vmul.f32 %v982, 1.442695
        %v990 = vpow.pop %v989
        %v991 = vsel %vm966, %v984, 0.0
        %992 = vadd.xlane.f32.xlu0 %v991
        %v993 = vpop.xlane.xlu0 %992
        %v994 = vsel %vm966, %v986, 0.0
        %995 = vadd.xlane.f32.xlu0 %v994
        %v996 = vpop.xlane.xlu0 %995
        %v997 = vsel %vm966, %v988, 0.0
        %998 = vadd.xlane.f32.xlu0 %v997
        %v999 = vpop.xlane.xlu0 %998
        %v1000 = vsel %vm966, %v990, 0.0
        %1001 = vadd.xlane.f32.xlu0 %v1000
        %v1002 = vpop.xlane.xlu0 %1001
        %v1003 = vrcp.pop %v993
        %v1004 = vrcp.pop %v996
        %v1005 = vrcp.pop %v999
        %v1006 = vrcp.pop %v1002
        %v1007 = vmul.f32 %v984, %v1003
        %v1008 = vmul.f32 %v986, %v1004
        %v1009 = vmul.f32 %v988, %v1005
        %v1010 = vmul.f32 %v990, %v1006
        %v1011 = vpack.c.bf16 %v1008, %v1007
        %v1012 = vpack.c.bf16 %v1010, %v1009
        %v1013 = vld [vmem:[%s353] sm:$0xff]
        %v1014 = vld [vmem:[%s353 + $0x8] sm:$0xff]
        %v1015 = vld [vmem:[%s353 + $0x10] sm:$0xff]
        %v1016 = vpack.c.bf16 %v1014, %v1013
        %v1017 = vpack.c.bf16 %v1015, %v1015
        %1020 = vrot.lane.b32.xlu0 %v1016, 64
        %v1021 = vpop.permute.xlu0 %1020
        %1022 = vrot.lane.b32.xlu0 %v1017, 64
        %v1023 = vpop.permute.xlu0 %1022
        %v1026 = vsel %vm966, %v1011, 0
        %vm1028 = vcmask 1043456
        %v1030 = vsel %vm1028, %v1023, 0
        %1032 = vmatprep.subr.bf16.mxu0 0
        %1033 = vmatpush1.bf16.msra.mxu0 0
        %1034 = vmatprep.subr.bf16.mxu0 0
        %1035 = vmatpush1.bf16.msra.mxu0 0
        %1036 = vmatprep.subr.bf16.mxu0 0
        %1037 = vmatpush1.bf16.msra.mxu0 0
        %1038 = vmatprep.subr.bf16.mxu0 0
        %1039 = vmatpush1.bf16.msra.mxu0 0
        %1040 = vmatprep.subr.bf16.mxu0 0
        %1041 = vmatpush1.bf16.msra.mxu0 0
        %1042 = vmatprep.subr.bf16.mxu0 0
        %1043 = vmatpush1.bf16.msra.mxu0 0
        %1044 = vmatprep.subr.bf16.mxu0 0
        %1045 = vmatpush1.bf16.msra.mxu0 %v1030
        %1046 = vmatprep.subr.bf16.mxu0 0
        %1047 = vmatpush1.bf16.msra.mxu0 %v1021
        %1048 = vmatprep.subr.bf16.mxu0 0
        %1049 = vmatpush2.bf16.msra.mxu0 0
        %1050 = vmatprep.subr.bf16.mxu0 0
        %1051 = vmatpush2.bf16.msra.mxu0 0
        %1052 = vmatprep.subr.bf16.mxu0 0
        %1053 = vmatpush2.bf16.msra.mxu0 0
        %1054 = vmatprep.subr.bf16.mxu0 0
        %1055 = vmatpush2.bf16.msra.mxu0 0
        %1056 = vmatprep.subr.bf16.mxu0 0
        %1057 = vmatpush2.bf16.msra.mxu0 0
        %1058 = vmatprep.subr.bf16.mxu0 0
        %1059 = vmatpush2.bf16.msra.mxu0 0
        %1060 = vmatprep.subr.bf16.mxu0 0
        %1061 = vmatpush2.bf16.msra.mxu0 0
        %1062 = vmatprep.subr.bf16.mxu0 0
        %1063 = vmatpush2.bf16.msra.mxu0 0
        %1064 = vmatprep.mubr.bf16.mxu0 0
        %1065 = vmatmul.mubr.bf16.gmra.mxu0 %v1026
        %v1066 = vpop.f32.mrf.mxu0
        %v1067 = vadd.f32 0.0, %v1066
        %v1068 = vpop.f32.mrf.mxu0
        %v1069 = vpop.f32.mrf.mxu0
        %v1070 = vpop.f32.mrf.mxu0
        %1071 = vdwg.mxu0
        %1072 = vst.msk [vmem:[%s366] sm:$0xff] %vm381, %v1067
        %v1073 = vld [vmem:[%s353] sm:$0xff]
        %v1074 = vld [vmem:[%s353 + $0x8] sm:$0xff]
        %v1075 = vld [vmem:[%s353 + $0x10] sm:$0xff]
        %v1076 = vpack.c.bf16 %v1074, %v1073
        %v1077 = vpack.c.bf16 %v1075, %v1075
        %v1079 = vrot.slane %v1011, 4
        %1082 = vrot.lane.b32.xlu0 %v1076, 56
        %v1083 = vpop.permute.xlu0 %1082
        %1084 = vrot.lane.b32.xlu0 %v1077, 56
        %v1085 = vpop.permute.xlu0 %1084
        %v1088 = vsel %vm966, %v1079, 0
        %v1091 = vsel %vm1028, %v1085, 0
        %1093 = vmatprep.subr.bf16.mxu0 0
        %1094 = vmatpush1.bf16.msra.mxu0 0
        %1095 = vmatprep.subr.bf16.mxu0 0
        %1096 = vmatpush1.bf16.msra.mxu0 0
        %1097 = vmatprep.subr.bf16.mxu0 0
        %1098 = vmatpush1.bf16.msra.mxu0 0
        %1099 = vmatprep.subr.bf16.mxu0 0
        %1100 = vmatpush1.bf16.msra.mxu0 0
        %1101 = vmatprep.subr.bf16.mxu0 0
        %1102 = vmatpush1.bf16.msra.mxu0 0
        %1103 = vmatprep.subr.bf16.mxu0 0
        %1104 = vmatpush1.bf16.msra.mxu0 0
        %1105 = vmatprep.subr.bf16.mxu0 0
        %1106 = vmatpush1.bf16.msra.mxu0 %v1091
        %1107 = vmatprep.subr.bf16.mxu0 0
        %1108 = vmatpush1.bf16.msra.mxu0 %v1083
        %1109 = vmatprep.subr.bf16.mxu0 0
        %1110 = vmatpush2.bf16.msra.mxu0 0
        %1111 = vmatprep.subr.bf16.mxu0 0
        %1112 = vmatpush2.bf16.msra.mxu0 0
        %1113 = vmatprep.subr.bf16.mxu0 0
        %1114 = vmatpush2.bf16.msra.mxu0 0
        %1115 = vmatprep.subr.bf16.mxu0 0
        %1116 = vmatpush2.bf16.msra.mxu0 0
        %1117 = vmatprep.subr.bf16.mxu0 0
        %1118 = vmatpush2.bf16.msra.mxu0 0
        %1119 = vmatprep.subr.bf16.mxu0 0
        %1120 = vmatpush2.bf16.msra.mxu0 0
        %1121 = vmatprep.subr.bf16.mxu0 0
        %1122 = vmatpush2.bf16.msra.mxu0 0
        %1123 = vmatprep.subr.bf16.mxu0 0
        %1124 = vmatpush2.bf16.msra.mxu0 0
        %1125 = vmatprep.mubr.bf16.mxu0 0
        %1126 = vmatmul.mubr.bf16.gmra.mxu0 %v1088
        %v1127 = vpop.f32.mrf.mxu0
        %v1128 = vadd.f32 0.0, %v1127
        %v1129 = vpop.f32.mrf.mxu0
        %v1130 = vpop.f32.mrf.mxu0
        %v1131 = vpop.f32.mrf.mxu0
        %1132 = vdwg.mxu0
        %1134 = vrot.lane.b32.xlu0 %v1128, 8
        %v1135 = vpop.permute.xlu0 %1134
        %vm1137 = vcmask 130112
        %1138 = vst.msk [vmem:[%s366] sm:$0xff] %vm1137, %v1135
        %v1139 = vld [vmem:[%s353] sm:$0xff]
        %v1140 = vld [vmem:[%s353 + $0x8] sm:$0xff]
        %v1141 = vld [vmem:[%s353 + $0x10] sm:$0xff]
        %v1142 = vpack.c.bf16 %v1140, %v1139
        %v1143 = vpack.c.bf16 %v1141, %v1141
        %1146 = vrot.lane.b32.xlu0 %v1142, 48
        %v1147 = vpop.permute.xlu0 %1146
        %1148 = vrot.lane.b32.xlu0 %v1143, 48
        %v1149 = vpop.permute.xlu0 %1148
        %v1152 = vsel %vm966, %v1012, 0
        %v1155 = vsel %vm1028, %v1149, 0
        %1157 = vmatprep.subr.bf16.mxu0 0
        %1158 = vmatpush1.bf16.msra.mxu0 0
        %1159 = vmatprep.subr.bf16.mxu0 0
        %1160 = vmatpush1.bf16.msra.mxu0 0
        %1161 = vmatprep.subr.bf16.mxu0 0
        %1162 = vmatpush1.bf16.msra.mxu0 0
        %1163 = vmatprep.subr.bf16.mxu0 0
        %1164 = vmatpush1.bf16.msra.mxu0 0
        %1165 = vmatprep.subr.bf16.mxu0 0
        %1166 = vmatpush1.bf16.msra.mxu0 0
        %1167 = vmatprep.subr.bf16.mxu0 0
        %1168 = vmatpush1.bf16.msra.mxu0 0
        %1169 = vmatprep.subr.bf16.mxu0 0
        %1170 = vmatpush1.bf16.msra.mxu0 %v1155
        %1171 = vmatprep.subr.bf16.mxu0 0
        %1172 = vmatpush1.bf16.msra.mxu0 %v1147
        %1173 = vmatprep.subr.bf16.mxu0 0
        %1174 = vmatpush2.bf16.msra.mxu0 0
        %1175 = vmatprep.subr.bf16.mxu0 0
        %1176 = vmatpush2.bf16.msra.mxu0 0
        %1177 = vmatprep.subr.bf16.mxu0 0
        %1178 = vmatpush2.bf16.msra.mxu0 0
        %1179 = vmatprep.subr.bf16.mxu0 0
        %1180 = vmatpush2.bf16.msra.mxu0 0
        %1181 = vmatprep.subr.bf16.mxu0 0
        %1182 = vmatpush2.bf16.msra.mxu0 0
        %1183 = vmatprep.subr.bf16.mxu0 0
        %1184 = vmatpush2.bf16.msra.mxu0 0
        %1185 = vmatprep.subr.bf16.mxu0 0
        %1186 = vmatpush2.bf16.msra.mxu0 0
        %1187 = vmatprep.subr.bf16.mxu0 0
        %1188 = vmatpush2.bf16.msra.mxu0 0
        %1189 = vmatprep.mubr.bf16.mxu0 0
        %1190 = vmatmul.mubr.bf16.gmra.mxu0 %v1152
        %v1191 = vpop.f32.mrf.mxu0
        %v1192 = vadd.f32 0.0, %v1191
        %v1193 = vpop.f32.mrf.mxu0
        %v1194 = vpop.f32.mrf.mxu0
        %v1195 = vpop.f32.mrf.mxu0
        %1196 = vdwg.mxu0
        %1198 = vrot.lane.b32.xlu0 %v1192, 16
        %v1199 = vpop.permute.xlu0 %1198
        %vm1201 = vcmask 195712
        %1202 = vst.msk [vmem:[%s366] sm:$0xff] %vm1201, %v1199
        %v1203 = vld [vmem:[%s353] sm:$0xff]
        %v1204 = vld [vmem:[%s353 + $0x8] sm:$0xff]
        %v1205 = vld [vmem:[%s353 + $0x10] sm:$0xff]
        %v1206 = vpack.c.bf16 %v1204, %v1203
        %v1207 = vpack.c.bf16 %v1205, %v1205
        %v1209 = vrot.slane %v1012, 4
        %1212 = vrot.lane.b32.xlu0 %v1206, 40
        %v1213 = vpop.permute.xlu0 %1212
        %1214 = vrot.lane.b32.xlu0 %v1207, 40
        %v1215 = vpop.permute.xlu0 %1214
        %v1218 = vsel %vm966, %v1209, 0
        %v1221 = vsel %vm1028, %v1215, 0
        %1223 = vmatprep.subr.bf16.mxu0 0
        %1224 = vmatpush1.bf16.msra.mxu0 0
        %1225 = vmatprep.subr.bf16.mxu0 0
        %1226 = vmatpush1.bf16.msra.mxu0 0
        %1227 = vmatprep.subr.bf16.mxu0 0
        %1228 = vmatpush1.bf16.msra.mxu0 0
        %1229 = vmatprep.subr.bf16.mxu0 0
        %1230 = vmatpush1.bf16.msra.mxu0 0
        %1231 = vmatprep.subr.bf16.mxu0 0
        %1232 = vmatpush1.bf16.msra.mxu0 0
        %1233 = vmatprep.subr.bf16.mxu0 0
        %1234 = vmatpush1.bf16.msra.mxu0 0
        %1235 = vmatprep.subr.bf16.mxu0 0
        %1236 = vmatpush1.bf16.msra.mxu0 %v1221
        %1237 = vmatprep.subr.bf16.mxu0 0
        %1238 = vmatpush1.bf16.msra.mxu0 %v1213
        %1239 = vmatprep.subr.bf16.mxu0 0
        %1240 = vmatpush2.bf16.msra.mxu0 0
        %1241 = vmatprep.subr.bf16.mxu0 0
        %1242 = vmatpush2.bf16.msra.mxu0 0
        %1243 = vmatprep.subr.bf16.mxu0 0
        %1244 = vmatpush2.bf16.msra.mxu0 0
        %1245 = vmatprep.subr.bf16.mxu0 0
        %1246 = vmatpush2.bf16.msra.mxu0 0
        %1247 = vmatprep.subr.bf16.mxu0 0
        %1248 = vmatpush2.bf16.msra.mxu0 0
        %1249 = vmatprep.subr.bf16.mxu0 0
        %1250 = vmatpush2.bf16.msra.mxu0 0
        %1251 = vmatprep.subr.bf16.mxu0 0
        %1252 = vmatpush2.bf16.msra.mxu0 0
        %1253 = vmatprep.subr.bf16.mxu0 0
        %1254 = vmatpush2.bf16.msra.mxu0 0
        %1255 = vmatprep.mubr.bf16.mxu0 0
        %1256 = vmatmul.mubr.bf16.gmra.mxu0 %v1218
        %v1257 = vpop.f32.mrf.mxu0
        %v1258 = vadd.f32 0.0, %v1257
        %v1259 = vpop.f32.mrf.mxu0
        %v1260 = vpop.f32.mrf.mxu0
        %v1261 = vpop.f32.mrf.mxu0
        %1262 = vdwg.mxu0
        %1264 = vrot.lane.b32.xlu0 %v1258, 24
        %v1265 = vpop.permute.xlu0 %1264
        %vm1267 = vcmask 261312
        %1268 = vst.msk [vmem:[%s366] sm:$0xff] %vm1267, %v1265
        %p1269 = scmp.lt.s32.totalorder %s20, 1
        %s1270 = scalar_select %p1269, %s20, 1
        %p1271 = scmp.lt.s32.totalorder %s21, 2
        %s1272 = scalar_select %p1271, %s21, 2
        %s1273 = smul.addr %s1270, 3
        %s1274 = sadd.s32 %s1272, %s1273
        %s1275 = smul.addr %s1274, 8
        %s1276 = scalar_lea.vmem %s5, %s1275
        // Predicated region
        $region79: #{transformer_forward.9} parent=73 // pred_check
          %p1277 = pneg %p177
        $region80: #{transformer_forward.9} parent=73 // pred_check_branch
          %1279 = sbr.rel (%p1277) target = $region82
        $region81: #{transformer_forward.9} parent=73 // pred_region
          _
        $region82: #{transformer_forward.9} parent=73 // pred_fallthru
          _
      $region74: #{transformer_forward.9} parent=5 // pred_fallthru
        _
      %p1280 = scmp.le.s32.totalorder 2, %s11
      // Predicated region
      $region83: #{transformer_forward.9} parent=5 // pred_check
        %p1281 = pneg %p1280
      $region84: #{transformer_forward.9} parent=5 // pred_check_branch
        %1283 = sbr.rel (%p1281) target = $region86
      $region85: #{transformer_forward.9} parent=5 // pred_region
        %s1284 = ssub.s32 %s11, 2
        // Predicated region
        $region87: #{transformer_forward.9} parent=85 // pred_check
          %p1285 = pneg %p183
        $region88: #{transformer_forward.9} parent=85 // pred_check_branch
          %1287 = sbr.rel (%p1285) target = $region90
        $region89: #{transformer_forward.9} parent=85 // pred_region
          %p1288 = scmp.lt.s32.totalorder %s22, 1
          %s1289 = scalar_select %p1288, %s22, 1
          %p1290 = scmp.lt.s32.totalorder %s23, 2
          %s1291 = scalar_select %p1290, %s23, 2
          %s1292 = smul.addr %s1289, 3
          %s1293 = sadd.s32 %s1291, %s1292
          %s1294 = smul.addr %s1293, 8
          %s1295 = scalar_lea.vmem %s5, %s1294
        $region90: #{transformer_forward.9} parent=85 // pred_fallthru
          _
      $region86: #{transformer_forward.9} parent=5 // pred_fallthru
        _
    $region6: #{transformer_forward.9} parent=1 // loop_footer
      %s15 = sadd.s32 1, %s11
    $region7: #{transformer_forward.9} parent=1 // loop_footer_branch
      %10 = sbr.rel target = $region3
    $region8: #{transformer_forward.9} parent=1 // loop_exit
      _

// kernel: transformer_forward.11
$region0: #{transformer_forward.11}
  #allocation0 [shape = 'u32[]', space=smem, size = 0x4, offset = 0x4, fixed_abs, tag = 'smem constant byte address 0x4 - core index']
  #allocation1 [shape = 'u32[144,128]{1,0:T(1,128)}', space=vmem, size = 0x12000, scoped, tag = 'internal scratch']
  %s0 = inlined_call_operand.vmem [shape: f32[48,32], index: 0, kind: input, shape index: {}]
  %s1 = inlined_call_operand.vmem [shape: f32[1,32], index: 1, kind: input, shape index: {}]
  %s2 = inlined_call_operand.vmem [shape: f32[1,32], index: 2, kind: input, shape index: {}]
  %s3 = inlined_call_operand.vmem [shape: bf16[32,64], index: 3, kind: input, shape index: {}]
  %s4 = inlined_call_operand.vmem [shape: f32[1,64], index: 4, kind: input, shape index: {}]
  %s5 = inlined_call_operand.vmem [shape: bf16[64,32], index: 5, kind: input, shape index: {}]
  %s6 = inlined_call_operand.vmem [shape: f32[1,32], index: 6, kind: input, shape index: {}]
  %s7 = inlined_call_operand.vmem [shape: f32[48,32], index: 7, kind: output, shape index: {}]
  %s8 = sld [smem:[#allocation0]]
  $region61: #{transformer_forward.11} parent=0
    _
  %s10 = ssub.s32 1, %s8
  %s11 = scalar_select 0, %s10, %s8
  loop: start=0, step=1, limit=5
  $region2: #{transformer_forward.11} parent=0 // loop_pre_header
    _
  $region3: #{transformer_forward.11} parent=0 // loop_header
    %s13 = sphi 0, %s17
    %p14 = scmp.ge.s32.totalorder %s13, 5
    %s23 = sphi 0, %s25
    %s26 = sphi 0, %s23
    %s27 = sphi 0, %s26
    %s43 = sphi 0, %s27
    %s47 = sphi 0, %s47
    %s49 = sphi 0, %s47
    %s50 = sphi 0, %s49
    %s64 = sphi 0, %s50
    %s68 = sphi 0, %s68
    %s70 = sphi 0, %s68
    %s71 = sphi 0, %s70
    %s85 = sphi 0, %s71
    %s89 = sphi 0, %s89
    %s91 = sphi 0, %s89
    %s92 = sphi 0, %s91
    %s106 = sphi 0, %s92
    %s110 = sphi 0, %s110
    %s112 = sphi 0, %s110
    %s113 = sphi 0, %s112
    %s127 = sphi 0, %s113
    %s131 = sphi 0, %s131
    %s133 = sphi 0, %s131
    %s134 = sphi 0, %s133
    %s148 = sphi 0, %s134
    %s152 = sphi 0, %s152
    %s154 = sphi 0, %s152
    %s155 = sphi 0, %s154
    %s169 = sphi 0, %s155
    %s175 = sphi 0, %s177
    %s178 = sphi 0, %s175
    %s179 = sphi 0, %s178
    %s195 = sphi 0, %s179
  $region4: #{transformer_forward.11} parent=0 // loop_header_branch
    %16 = sbr.rel (%p14) target = $region8
  $region5: #{transformer_forward.11} parent=0 // loop_body
    %s18 = ssub.s32 %s13, 1
    %s19 = ssub.s32 %s13, 2
    %s20 = sadd.s32 %s13, 1
    %s21 = ssub.s32 %s13, %s20
    %p22 = scmp.eq.s32.totalorder %s21, 0
    %s24 = sadd.s32 %s23, 1
    %s25 = scalar_select %p22, %s23, %s24
    %p28 = pneg %p22
    %p29 = scmp.eq.s32.totalorder %s13, 2
    %p30 = por %p28, %p29
    %p31 = scmp.ne.s32.totalorder %s23, %s26
    %p32 = scmp.eq.s32.totalorder %s13, 0
    %p33 = por %p31, %p32
    %p34 = scmp.ne.s32.totalorder %s23, %s26
    %p35 = scmp.eq.s32.totalorder %s18, 2
    %p36 = por %p34, %p35
    %p37 = scmp.ne.s32.totalorder %s26, %s27
    %p38 = scmp.eq.s32.totalorder %s18, 0
    %p39 = por %p37, %p38
    %p40 = scmp.ne.s32.totalorder %s26, %s27
    %p41 = scmp.eq.s32.totalorder %s19, 2
    %p42 = por %p40, %p41
    %p44 = scmp.ne.s32.totalorder %s27, %s43
    %p45 = scmp.eq.s32.totalorder %s19, 0
    %p46 = por %p44, %p45
    %s48 = sadd.s32 %s47, 1
    %p51 = scmp.eq.s32.totalorder %s13, 2
    %p52 = scmp.ne.s32.totalorder %s47, %s49
    %p53 = scmp.eq.s32.totalorder %s13, 0
    %p54 = por %p52, %p53
    %p55 = scmp.ne.s32.totalorder %s47, %s49
    %p56 = scmp.eq.s32.totalorder %s18, 2
    %p57 = por %p55, %p56
    %p58 = scmp.ne.s32.totalorder %s49, %s50
    %p59 = scmp.eq.s32.totalorder %s18, 0
    %p60 = por %p58, %p59
    %p61 = scmp.ne.s32.totalorder %s49, %s50
    %p62 = scmp.eq.s32.totalorder %s19, 2
    %p63 = por %p61, %p62
    %p65 = scmp.ne.s32.totalorder %s50, %s64
    %p66 = scmp.eq.s32.totalorder %s19, 0
    %p67 = por %p65, %p66
    %s69 = sadd.s32 %s68, 1
    %p72 = scmp.eq.s32.totalorder %s13, 2
    %p73 = scmp.ne.s32.totalorder %s68, %s70
    %p74 = scmp.eq.s32.totalorder %s13, 0
    %p75 = por %p73, %p74
    %p76 = scmp.ne.s32.totalorder %s68, %s70
    %p77 = scmp.eq.s32.totalorder %s18, 2
    %p78 = por %p76, %p77
    %p79 = scmp.ne.s32.totalorder %s70, %s71
    %p80 = scmp.eq.s32.totalorder %s18, 0
    %p81 = por %p79, %p80
    %p82 = scmp.ne.s32.totalorder %s70, %s71
    %p83 = scmp.eq.s32.totalorder %s19, 2
    %p84 = por %p82, %p83
    %p86 = scmp.ne.s32.totalorder %s71, %s85
    %p87 = scmp.eq.s32.totalorder %s19, 0
    %p88 = por %p86, %p87
    %s90 = sadd.s32 %s89, 1
    %p93 = scmp.eq.s32.totalorder %s13, 2
    %p94 = scmp.ne.s32.totalorder %s89, %s91
    %p95 = scmp.eq.s32.totalorder %s13, 0
    %p96 = por %p94, %p95
    %p97 = scmp.ne.s32.totalorder %s89, %s91
    %p98 = scmp.eq.s32.totalorder %s18, 2
    %p99 = por %p97, %p98
    %p100 = scmp.ne.s32.totalorder %s91, %s92
    %p101 = scmp.eq.s32.totalorder %s18, 0
    %p102 = por %p100, %p101
    %p103 = scmp.ne.s32.totalorder %s91, %s92
    %p104 = scmp.eq.s32.totalorder %s19, 2
    %p105 = por %p103, %p104
    %p107 = scmp.ne.s32.totalorder %s92, %s106
    %p108 = scmp.eq.s32.totalorder %s19, 0
    %p109 = por %p107, %p108
    %s111 = sadd.s32 %s110, 1
    %p114 = scmp.eq.s32.totalorder %s13, 2
    %p115 = scmp.ne.s32.totalorder %s110, %s112
    %p116 = scmp.eq.s32.totalorder %s13, 0
    %p117 = por %p115, %p116
    %p118 = scmp.ne.s32.totalorder %s110, %s112
    %p119 = scmp.eq.s32.totalorder %s18, 2
    %p120 = por %p118, %p119
    %p121 = scmp.ne.s32.totalorder %s112, %s113
    %p122 = scmp.eq.s32.totalorder %s18, 0
    %p123 = por %p121, %p122
    %p124 = scmp.ne.s32.totalorder %s112, %s113
    %p125 = scmp.eq.s32.totalorder %s19, 2
    %p126 = por %p124, %p125
    %p128 = scmp.ne.s32.totalorder %s113, %s127
    %p129 = scmp.eq.s32.totalorder %s19, 0
    %p130 = por %p128, %p129
    %s132 = sadd.s32 %s131, 1
    %p135 = scmp.eq.s32.totalorder %s13, 2
    %p136 = scmp.ne.s32.totalorder %s131, %s133
    %p137 = scmp.eq.s32.totalorder %s13, 0
    %p138 = por %p136, %p137
    %p139 = scmp.ne.s32.totalorder %s131, %s133
    %p140 = scmp.eq.s32.totalorder %s18, 2
    %p141 = por %p139, %p140
    %p142 = scmp.ne.s32.totalorder %s133, %s134
    %p143 = scmp.eq.s32.totalorder %s18, 0
    %p144 = por %p142, %p143
    %p145 = scmp.ne.s32.totalorder %s133, %s134
    %p146 = scmp.eq.s32.totalorder %s19, 2
    %p147 = por %p145, %p146
    %p149 = scmp.ne.s32.totalorder %s134, %s148
    %p150 = scmp.eq.s32.totalorder %s19, 0
    %p151 = por %p149, %p150
    %s153 = sadd.s32 %s152, 1
    %p156 = scmp.eq.s32.totalorder %s13, 2
    %p157 = scmp.ne.s32.totalorder %s152, %s154
    %p158 = scmp.eq.s32.totalorder %s13, 0
    %p159 = por %p157, %p158
    %p160 = scmp.ne.s32.totalorder %s152, %s154
    %p161 = scmp.eq.s32.totalorder %s18, 2
    %p162 = por %p160, %p161
    %p163 = scmp.ne.s32.totalorder %s154, %s155
    %p164 = scmp.eq.s32.totalorder %s18, 0
    %p165 = por %p163, %p164
    %p166 = scmp.ne.s32.totalorder %s154, %s155
    %p167 = scmp.eq.s32.totalorder %s19, 2
    %p168 = por %p166, %p167
    %p170 = scmp.ne.s32.totalorder %s155, %s169
    %p171 = scmp.eq.s32.totalorder %s19, 0
    %p172 = por %p170, %p171
    %s173 = ssub.s32 %s13, %s20
    %p174 = scmp.eq.s32.totalorder %s173, 0
    %s176 = sadd.s32 %s175, 1
    %s177 = scalar_select %p174, %s175, %s176
    %p180 = pneg %p174
    %p181 = scmp.eq.s32.totalorder %s13, 2
    %p182 = por %p180, %p181
    %p183 = scmp.ne.s32.totalorder %s175, %s178
    %p184 = scmp.eq.s32.totalorder %s13, 0
    %p185 = por %p183, %p184
    %p186 = scmp.ne.s32.totalorder %s175, %s178
    %p187 = scmp.eq.s32.totalorder %s18, 2
    %p188 = por %p186, %p187
    %p189 = scmp.ne.s32.totalorder %s178, %s179
    %p190 = scmp.eq.s32.totalorder %s18, 0
    %p191 = por %p189, %p190
    %p192 = scmp.ne.s32.totalorder %s178, %s179
    %p193 = scmp.eq.s32.totalorder %s19, 2
    %p194 = por %p192, %p193
    %p196 = scmp.ne.s32.totalorder %s179, %s195
    %p197 = scmp.eq.s32.totalorder %s19, 0
    %p198 = por %p196, %p197
    %p199 = scmp.le.s32.totalorder 1, %s13
    %p200 = scmp.lt.s32.totalorder %s13, 4
    %p201 = pnand %p199, %p200
    %p202 = pneg %p201
    // Predicated region
    $region9: #{transformer_forward.11} parent=5 // pred_check
      _
    $region10: #{transformer_forward.11} parent=5 // pred_check_branch
      %204 = sbr.rel (%p201) target = $region12
    $region11: #{transformer_forward.11} parent=5 // pred_region
      %s205 = ssub.s32 %s13, 1
      // Predicated region
      $region13: #{transformer_forward.11} parent=11 // pred_check
        %p206 = pneg %p60
      $region14: #{transformer_forward.11} parent=11 // pred_check_branch
        %208 = sbr.rel (%p206) target = $region16
      $region15: #{transformer_forward.11} parent=11 // pred_region
        _
      $region16: #{transformer_forward.11} parent=11 // pred_fallthru
        _
      // Predicated region
      $region17: #{transformer_forward.11} parent=11 // pred_check
        %p209 = pneg %p81
      $region18: #{transformer_forward.11} parent=11 // pred_check_branch
        %211 = sbr.rel (%p209) target = $region20
      $region19: #{transformer_forward.11} parent=11 // pred_region
        _
      $region20: #{transformer_forward.11} parent=11 // pred_fallthru
        _
      // Predicated region
      $region21: #{transformer_forward.11} parent=11 // pred_check
        %p212 = pneg %p102
      $region22: #{transformer_forward.11} parent=11 // pred_check_branch
        %214 = sbr.rel (%p212) target = $region24
      $region23: #{transformer_forward.11} parent=11 // pred_region
        _
      $region24: #{transformer_forward.11} parent=11 // pred_fallthru
        _
      // Predicated region
      $region25: #{transformer_forward.11} parent=11 // pred_check
        %p215 = pneg %p123
      $region26: #{transformer_forward.11} parent=11 // pred_check_branch
        %217 = sbr.rel (%p215) target = $region28
      $region27: #{transformer_forward.11} parent=11 // pred_region
        _
      $region28: #{transformer_forward.11} parent=11 // pred_fallthru
        _
      // Predicated region
      $region29: #{transformer_forward.11} parent=11 // pred_check
        %p218 = pneg %p144
      $region30: #{transformer_forward.11} parent=11 // pred_check_branch
        %220 = sbr.rel (%p218) target = $region32
      $region31: #{transformer_forward.11} parent=11 // pred_region
        _
      $region32: #{transformer_forward.11} parent=11 // pred_fallthru
        _
      // Predicated region
      $region33: #{transformer_forward.11} parent=11 // pred_check
        %p221 = pneg %p165
      $region34: #{transformer_forward.11} parent=11 // pred_check_branch
        %223 = sbr.rel (%p221) target = $region36
      $region35: #{transformer_forward.11} parent=11 // pred_region
        _
      $region36: #{transformer_forward.11} parent=11 // pred_fallthru
        _
    $region12: #{transformer_forward.11} parent=5 // pred_fallthru
      _
    %p224 = scmp.lt.s32.totalorder %s13, 3
    // Predicated region
    $region37: #{transformer_forward.11} parent=5 // pred_check
      %p225 = pneg %p224
    $region38: #{transformer_forward.11} parent=5 // pred_check_branch
      %227 = sbr.rel (%p225) target = $region40
    $region39: #{transformer_forward.11} parent=5 // pred_region
      // Predicated region
      $region41: #{transformer_forward.11} parent=39 // pred_check
        %p228 = pneg %p33
      $region42: #{transformer_forward.11} parent=39 // pred_check_branch
        %230 = sbr.rel (%p228) target = $region44
      $region43: #{transformer_forward.11} parent=39 // pred_region
        %s231 = smul.u32 2, %s13
        %p232 = scmp.lt.s32.totalorder %s231, 5
        %s233 = scalar_select %p232, %s231, 5
        %s234 = smul.addr %s233, 8
        %s235 = scalar_lea.vmem %s0, %s234
        %s236 = smul.u32 2, %s13
      $region44: #{transformer_forward.11} parent=39 // pred_fallthru
        _
    $region40: #{transformer_forward.11} parent=5 // pred_fallthru
      _
    %p237 = scmp.le.s32.totalorder 1, %s13
    %p238 = scmp.lt.s32.totalorder %s13, 4
    %p239 = pnand %p237, %p238
    %p240 = pneg %p239
    // Predicated region
    $region45: #{transformer_forward.11} parent=5 // pred_check
      _
    $region46: #{transformer_forward.11} parent=5 // pred_check_branch
      %242 = sbr.rel (%p239) target = $region48
    $region47: #{transformer_forward.11} parent=5 // pred_region
      %s243 = ssub.s32 %s13, 1
      %s244 = smul.u32 2, %s18
      %p245 = scmp.lt.s32.totalorder %s244, 5
      %s246 = scalar_select %p245, %s244, 5
      %s247 = smul.addr %s246, 8
      %s248 = scalar_lea.vmem %s0, %s247
      %p249 = pneg %p39
      %p250 = pneg %p36
      %p251 = pneg %p60
      %p252 = pneg %p57
      %p253 = pneg %p81
      %p254 = pneg %p78
      %p255 = pneg %p102
      %p256 = pneg %p99
      %p257 = pneg %p123
      %p258 = pneg %p120
      %p259 = pneg %p144
      %p260 = pneg %p141
      %p261 = pneg %p165
      %p262 = pneg %p162
      %p263 = pneg %p191
      %p264 = pneg %p188
      %s265 = smul.u32 2, %s18
      %p266 = scmp.lt.s32.totalorder %s265, 5
      %s267 = scalar_select %p266, %s265, 5
      %s268 = smul.addr %s267, 8
      %s269 = scalar_lea.vmem %s7, %s268
      %s270 = smul.u32 2, %s18
      %p271 = scmp.lt.s32.totalorder %s270, 5
      %s272 = scalar_select %p271, %s270, 5
      %s273 = smul.addr %s272, 8
      %s274 = scalar_lea.vmem %s0, %s273
      %s275 = smul.u32 2, %s18
      %s276 = smul.u32 2, %s18
      %p277 = scmp.lt.s32.totalorder %s276, 5
      %s278 = scalar_select %p277, %s276, 5
      %s279 = smul.addr %s278, 8
      %s280 = scalar_lea.vmem %s7, %s279
      %s281 = smul.u32 2, %s18
      %v283 = vld [vmem:[%s274] sm:$0xff]
      %v284 = vld [vmem:[%s274 + $0x8] sm:$0xff]
      %vm285 = vcmask 261120
      %v286 = vsel %vm285, %v283, 0.0
      %287 = vadd.xlane.f32.xlu0 %v286
      %v288 = vpop.xlane.xlu0 %287
      %v289 = vsel %vm285, %v284, 0.0
      %290 = vadd.xlane.f32.xlu0 %v289
      %v291 = vpop.xlane.xlu0 %290
      %v292 = vrcp.pop 32.0
      %v293 = vmul.f32 %v288, %v292
      %v294 = vmul.f32 %v291, %v292
      %v295 = vsub.f32 %v283, %v293
      %v296 = vsub.f32 %v284, %v294
      %v297 = vmul.f32 %v295, %v295
      %v298 = vmul.f32 %v296, %v296
      %v299 = vsel %vm285, %v297, 0.0
      %300 = vadd.xlane.f32.xlu0 %v299
      %v301 = vpop.xlane.xlu0 %300
      %v302 = vsel %vm285, %v298, 0.0
      %303 = vadd.xlane.f32.xlu0 %v302
      %v304 = vpop.xlane.xlu0 %303
      %v305 = vmul.f32 %v301, %v292
      %v306 = vmul.f32 %v304, %v292
      %v307 = vadd.f32 %v305, 1e-06
      %v308 = vadd.f32 %v306, 1e-06
      %v309 = vrsqrt.pop %v307
      %v310 = vrsqrt.pop %v308
      %v311 = vmul.f32 %v295, %v309
      %v312 = vmul.f32 %v296, %v310
      %v313 = vld [vmem:[%s1] sm:$0x1]
      %v315 = vlaneseq
      %v316 = vshrl.u32 %v315, 7
      %v317 = vsub.s32 0, %v316
      %v318 = vrot.slane %v313, %v317
      %v320 = vmul.f32 %v311, %v318
      %v321 = vmul.f32 %v312, %v318
      %v322 = vld [vmem:[%s2] sm:$0x1]
      %v324 = vlaneseq
      %v325 = vshrl.u32 %v324, 7
      %v326 = vsub.s32 0, %v325
      %v327 = vrot.slane %v322, %v326
      %v329 = vadd.f32 %v320, %v327
      %v330 = vadd.f32 %v321, %v327
      %v331 = vpack.c.bf16 %v330, %v329
      %v332 = vld [vmem:[%s3] sm:$0xf]
      %v333 = vld [vmem:[%s3 + $0x4] sm:$0xf]
      %v334 = vld [vmem:[%s3 + $0x8] sm:$0xf]
      %v335 = vld [vmem:[%s3 + $0xc] sm:$0xf]
      %v336 = vld [vmem:[%s4] sm:$0x1]
      %v338 = vlaneseq
      %v339 = vshrl.u32 %v338, 7
      %v340 = vsub.s32 0, %v339
      %v341 = vrot.slane %v336, %v340
      %v347 = vunpack.c.l.b16 %v332
      %v348 = vunpack.c.l.b16 %v333
      %v349 = vunpack.c.l.b16 %v334
      %v350 = vunpack.c.l.b16 %v335
      %v351 = vpack.c.b16 %v348, %v347
      %v352 = vpack.c.b16 %v350, %v349
      %v356 = vsel %vm285, %v331, 0
      %358 = vmatprep.subr.bf16.mxu0 0
      %359 = vmatpush1.bf16.msra.mxu0 0
      %360 = vmatprep.subr.bf16.mxu0 0
      %361 = vmatpush1.bf16.msra.mxu0 0
      %362 = vmatprep.subr.bf16.mxu0 0
      %363 = vmatpush1.bf16.msra.mxu0 0
      %364 = vmatprep.subr.bf16.mxu0 0
      %365 = vmatpush1.bf16.msra.mxu0 0
      %366 = vmatprep.subr.bf16.mxu0 0
      %367 = vmatpush1.bf16.msra.mxu0 0
      %368 = vmatprep.subr.bf16.mxu0 0
      %369 = vmatpush1.bf16.msra.mxu0 0
      %370 = vmatprep.subr.bf16.mxu0 0
      %371 = vmatpush1.bf16.msra.mxu0 %v352
      %372 = vmatprep.subr.bf16.mxu0 0
      %373 = vmatpush1.bf16.msra.mxu0 %v351
      %374 = vmatprep.subr.bf16.mxu0 0
      %375 = vmatpush2.bf16.msra.mxu0 0
      %376 = vmatprep.subr.bf16.mxu0 0
      %377 = vmatpush2.bf16.msra.mxu0 0
      %378 = vmatprep.subr.bf16.mxu0 0
      %379 = vmatpush2.bf16.msra.mxu0 0
      %380 = vmatprep.subr.bf16.mxu0 0
      %381 = vmatpush2.bf16.msra.mxu0 0
      %382 = vmatprep.subr.bf16.mxu0 0
      %383 = vmatpush2.bf16.msra.mxu0 0
      %384 = vmatprep.subr.bf16.mxu0 0
      %385 = vmatpush2.bf16.msra.mxu0 0
      %386 = vmatprep.subr.bf16.mxu0 0
      %387 = vmatpush2.bf16.msra.mxu0 0
      %388 = vmatprep.subr.bf16.mxu0 0
      %389 = vmatpush2.bf16.msra.mxu0 0
      %390 = vmatprep.mubr.bf16.mxu0 0
      %391 = vmatmul.mubr.bf16.gmra.mxu0 %v356
      %v392 = vpop.f32.mrf.mxu0
      %v393 = vadd.f32 %v341, %v392
      %v394 = vpop.f32.mrf.mxu0
      %v395 = vpop.f32.mrf.mxu0
      %v396 = vadd.f32 %v341, %v395
      %v397 = vpop.f32.mrf.mxu0
      %398 = vdwg.mxu0
      %v399 = vmul.f32 %v393, 0.5
      %v400 = vmul.f32 %v396, 0.5
      %v401 = vmul.f32 %v393, 0.70710677
      %v402 = vmul.f32 %v396, 0.70710677
      %v403 = verf.f32.pop %v401
      %v404 = verf.f32.pop %v402
      %v405 = vadd.f32 %v403, 1.0
      %v406 = vadd.f32 %v404, 1.0
      %v407 = vmul.f32 %v399, %v405
      %v408 = vmul.f32 %v400, %v406
      %v409 = vpack.c.bf16 %v408, %v407
      %v410 = vld [vmem:[%s5] sm:$0xf]
      %v411 = vld [vmem:[%s5 + $0x4] sm:$0xf]
      %v412 = vld [vmem:[%s5 + $0x8] sm:$0xf]
      %v413 = vld [vmem:[%s5 + $0xc] sm:$0xf]
      %v414 = vld [vmem:[%s5 + $0x10] sm:$0xf]
      %v415 = vld [vmem:[%s5 + $0x14] sm:$0xf]
      %v416 = vld [vmem:[%s5 + $0x18] sm:$0xf]
      %v417 = vld [vmem:[%s5 + $0x1c] sm:$0xf]
      %v418 = vld [vmem:[%s6] sm:$0x1]
      %v420 = vlaneseq
      %v421 = vshrl.u32 %v420, 7
      %v422 = vsub.s32 0, %v421
      %v423 = vrot.slane %v418, %v422
      %v433 = vunpack.c.l.b16 %v410
      %v434 = vunpack.c.l.b16 %v411
      %v435 = vunpack.c.l.b16 %v412
      %v436 = vunpack.c.l.b16 %v413
      %v437 = vunpack.c.l.b16 %v414
      %v438 = vunpack.c.l.b16 %v415
      %v439 = vunpack.c.l.b16 %v416
      %v440 = vunpack.c.l.b16 %v417
      %v441 = vpack.c.b16 %v434, %v433
      %v442 = vpack.c.b16 %v436, %v435
      %v443 = vpack.c.b16 %v438, %v437
      %v444 = vpack.c.b16 %v440, %v439
      %vm449 = vcmask 523264
      %v451 = vsel %vm449, %v409, 0
      %453 = vmatprep.subr.bf16.mxu0 0
      %454 = vmatpush1.bf16.msra.mxu0 0
      %455 = vmatprep.subr.bf16.mxu0 0
      %456 = vmatpush1.bf16.msra.mxu0 0
      %457 = vmatprep.subr.bf16.mxu0 0
      %458 = vmatpush1.bf16.msra.mxu0 0
      %459 = vmatprep.subr.bf16.mxu0 0
      %460 = vmatpush1.bf16.msra.mxu0 0
      %461 = vmatprep.subr.bf16.mxu0 0
      %462 = vmatpush1.bf16.msra.mxu0 %v444
      %463 = vmatprep.subr.bf16.mxu0 0
      %464 = vmatpush1.bf16.msra.mxu0 %v443
      %465 = vmatprep.subr.bf16.mxu0 0
      %466 = vmatpush1.bf16.msra.mxu0 %v442
      %467 = vmatprep.subr.bf16.mxu0 0
      %468 = vmatpush1.bf16.msra.mxu0 %v441
      %469 = vmatprep.subr.bf16.mxu0 0
      %470 = vmatpush2.bf16.msra.mxu0 0
      %471 = vmatprep.subr.bf16.mxu0 0
      %472 = vmatpush2.bf16.msra.mxu0 0
      %473 = vmatprep.subr.bf16.mxu0 0
      %474 = vmatpush2.bf16.msra.mxu0 0
      %475 = vmatprep.subr.bf16.mxu0 0
      %476 = vmatpush2.bf16.msra.mxu0 0
      %477 = vmatprep.subr.bf16.mxu0 0
      %478 = vmatpush2.bf16.msra.mxu0 0
      %479 = vmatprep.subr.bf16.mxu0 0
      %480 = vmatpush2.bf16.msra.mxu0 0
      %481 = vmatprep.subr.bf16.mxu0 0
      %482 = vmatpush2.bf16.msra.mxu0 0
      %483 = vmatprep.subr.bf16.mxu0 0
      %484 = vmatpush2.bf16.msra.mxu0 0
      %485 = vmatprep.mubr.bf16.mxu0 0
      %486 = vmatmul.mubr.bf16.gmra.mxu0 %v451
      %v487 = vpop.f32.mrf.mxu0
      %v488 = vadd.f32 %v423, %v487
      %v489 = vpop.f32.mrf.mxu0
      %v490 = vpop.f32.mrf.mxu0
      %v491 = vadd.f32 %v423, %v490
      %v492 = vpop.f32.mrf.mxu0
      %493 = vdwg.mxu0
      %v494 = vadd.f32 %v283, %v488
      %v495 = vadd.f32 %v284, %v491
      %496 = vst.msk [vmem:[%s280] sm:$0xff] %vm285, %v494
      %497 = vst.msk [vmem:[%s280 + $0x8] sm:$0xff] %vm285, %v495
      %s498 = smul.u32 2, %s18
      %p499 = scmp.lt.s32.totalorder %s498, 5
      %s500 = scalar_select %p499, %s498, 5
      %s501 = smul.addr %s500, 8
      %s502 = scalar_lea.vmem %s7, %s501
      // Predicated region
      $region49: #{transformer_forward.11} parent=47 // pred_check
        %p503 = pneg %p188
      $region50: #{transformer_forward.11} parent=47 // pred_check_branch
        %505 = sbr.rel (%p503) target = $region52
      $region51: #{transformer_forward.11} parent=47 // pred_region
        %s506 = smul.u32 2, %s18
      $region52: #{transformer_forward.11} parent=47 // pred_fallthru
        _
    $region48: #{transformer_forward.11} parent=5 // pred_fallthru
      _
    %p507 = scmp.le.s32.totalorder 2, %s13
    // Predicated region
    $region53: #{transformer_forward.11} parent=5 // pred_check
      %p508 = pneg %p507
    $region54: #{transformer_forward.11} parent=5 // pred_check_branch
      %510 = sbr.rel (%p508) target = $region56
    $region55: #{transformer_forward.11} parent=5 // pred_region
      %s511 = ssub.s32 %s13, 2
      // Predicated region
      $region57: #{transformer_forward.11} parent=55 // pred_check
        %p512 = pneg %p194
      $region58: #{transformer_forward.11} parent=55 // pred_check_branch
        %514 = sbr.rel (%p512) target = $region60
      $region59: #{transformer_forward.11} parent=55 // pred_region
        %s515 = smul.u32 2, %s19
        %p516 = scmp.lt.s32.totalorder %s515, 5
        %s517 = scalar_select %p516, %s515, 5
        %s518 = smul.addr %s517, 8
        %s519 = scalar_lea.vmem %s7, %s518
      $region60: #{transformer_forward.11} parent=55 // pred_fallthru
        _
    $region56: #{transformer_forward.11} parent=5 // pred_fallthru
      _
  $region6: #{transformer_forward.11} parent=0 // loop_footer
    %s17 = sadd.s32 1, %s13
  $region7: #{transformer_forward.11} parent=0 // loop_footer_branch
    %12 = sbr.rel target = $region3
  $region8: #{transformer_forward.11} parent=0 // loop_exit
    _

</llo_original>
